<compile_context>
chip_gen: v6e
topology: v6e:2x2x1
jax: 0.10.0
libtpu: 0.0.40
codegen_flags: <defaults>
</compile_context>

<pallas_src>
import functools

import jax
import jax.numpy as jnp
from jax.experimental import pallas as pl
from jax.experimental.pallas import tpu as pltpu

EPS_LN = 1e-6      # LayerNorm2d eps
EPS_NORM = 1e-12   # F.normalize eps
NEG_INF = -1e30    # off-block mask value for the block-diagonal softmax


def _shift_w(arr, dx, col, W):
    """out[..., j, :] = arr[..., j+dx, :]; zero where column j+dx is outside [0, W)."""
    if dx == 0:
        return arr
    rolled = pltpu.roll(arr, (-dx) % W, axis=1)
    edge = W - 1 if dx > 0 else 0
    return jnp.where(col == edge, 0.0, rolled)


# ------------------------------ kernel 1 -------------------------------------
# spa 3x3 conv + bias -> LayerNorm2d -> 1x1 qkv conv -> depthwise 3x3 conv
# One row-tile of TH output rows per grid step; halo of 2 input rows on each side.

def fused_spa_ln_qkv_dw_kernel(xm_ref, xt_ref, xb_ref,
                               spa_w_ref, spa_b_ref, ln_w_ref, ln_b_ref,
                               qkv_w_ref, dw_w_ref,
                               dec_ref, qkvdw_ref, *, H, TH):
    f32, bf16 = jnp.float32, jnp.bfloat16
    t = pl.program_id(1)
    T = pl.num_programs(1)
    W = xm_ref.shape[2]
    C = xm_ref.shape[3]
    C3 = qkvdw_ref.shape[3]
    He = TH + 2                       # extended output rows: global [t*TH-1, t*TH+TH+1)

    # ---- row-extended input tile (2-row halos, zeroed outside the image) --------
    top = jnp.where(t > 0, xt_ref[0], jnp.zeros_like(xt_ref[0]))         # bf16 [2,W,C]
    bot = jnp.where(t < T - 1, xb_ref[0], jnp.zeros_like(xb_ref[0]))     # bf16 [2,W,C]
    x_ext = jnp.concatenate([top, xm_ref[0], bot], axis=0).astype(f32)   # [TH+4,W,C]

    # ---- spa: dense 3x3 conv as ONE im2col matmul (K = 9*C) + bias --------------
    # spa_w_ref is pre-reordered to column-shift-major tap order (b*3 + a).
    col_x = jax.lax.broadcasted_iota(jnp.int32, (TH + 4, W, 1), 1)
    blocks = []
    for b in range(3):                                   # only one shifted copy live
        sh = _shift_w(x_ext, b - 1, col_x, W)            # [TH+4, W, C] f32
        for a in range(3):
            blocks.append(sh[a:a + He].reshape(He * W, C).astype(bf16))
    im2col = jnp.concatenate(blocks, axis=-1)            # [He*W, 9C] bf16
    acc = jnp.dot(im2col, spa_w_ref[...], preferred_element_type=f32)    # [He*W, C]
    dec_ext = acc.reshape(He, W, C) + spa_b_ref[0]                       # f32
    dec_ref[0] = dec_ext[1:1 + TH].astype(dec_ref.dtype)                 # interior rows

    # ---- LayerNorm2d (over channels) + 1x1 qkv conv ------------------------------
    mu = jnp.mean(dec_ext, axis=-1, keepdims=True)
    xc = dec_ext - mu
    var = jnp.mean(xc * xc, axis=-1, keepdims=True)
    y = xc * jax.lax.rsqrt(var + EPS_LN)
    y = y * ln_w_ref[0] + ln_b_ref[0]
    qkv_ext = jnp.dot(y.reshape(He * W, C).astype(bf16), qkv_w_ref[...],
                      preferred_element_type=f32).reshape(He, W, C3)

    # rows outside the image must be ZERO in qkv space (dwconv zero padding)
    row = jax.lax.broadcasted_iota(jnp.int32, (He, 1, 1), 0)
    g = t * TH - 1 + row
    qkv_ext = jnp.where((g >= 0) & (g < H), qkv_ext, 0.0)

    # ---- depthwise 3x3 conv (one column-shifted copy live at a time) -------------
    col_q = jax.lax.broadcasted_iota(jnp.int32, (He, W, 1), 1)
    acc2 = jnp.zeros((TH, W, C3), f32)
    for b in range(3):
        sh = _shift_w(qkv_ext, b - 1, col_q, W)          # [He, W, 3C] f32
        for a in range(3):
            acc2 = acc2 + sh[a:a + TH] * dw_w_ref[a * 3 + b]
    qkvdw_ref[0] = acc2.astype(qkvdw_ref.dtype)


# ------------------------------ kernel 2 -------------------------------------
# MDTA attention (all heads batched) + project_out + residual(s), whole image per
# batch, [HW, C] layout throughout (no VMEM transposes).
# TODO(synk): for very large H*W (esp. v7x's 64 MiB VMEM) add the HW-tiled two-pass
# variant: pass A accumulates the [C,C] Gram + q/k norm sums, pass B streams HW
# tiles for softmax(attn)@V + project_out + residuals.

def attn_proj_res_kernel(qkv_ref, dec_ref, *rest, heads, has_enc):
    f32, bf16 = jnp.float32, jnp.bfloat16
    if has_enc:
        enc_ref, temp_ref, proj_w_ref, o_ref = rest
    else:
        temp_ref, proj_w_ref, o_ref = rest
        enc_ref = None
    H, W, C = o_ref.shape[1], o_ref.shape[2], o_ref.shape[3]
    HW = H * W
    ch = C // heads

    qkv = qkv_ref[0].reshape(HW, 3 * C)                   # bf16 [HW, 3C]
    q = qkv[:, :C].astype(f32)                            # [HW, C]
    k = qkv[:, C:2 * C].astype(f32)
    v = qkv[:, 2 * C:]                                    # stays bf16 (attn@V operand)

    # F.normalize(dim=-1 over HW): x * rsqrt(max(sum_HW x^2, eps^2))
    qn = (q * jax.lax.rsqrt(
        jnp.maximum(jnp.sum(q * q, axis=0, keepdims=True), EPS_NORM ** 2))).astype(bf16)
    kn = (k * jax.lax.rsqrt(
        jnp.maximum(jnp.sum(k * k, axis=0, keepdims=True), EPS_NORM ** 2))).astype(bf16)

    # All heads in one Gram: contraction over HW, block-diagonal softmax over heads.
    gram = jax.lax.dot_general(qn, kn, (((0,), (0,)), ((), ())),
                               preferred_element_type=f32)           # [C, C]
    head_i = jax.lax.broadcasted_iota(jnp.int32, (C, C), 0) // ch
    head_j = jax.lax.broadcasted_iota(jnp.int32, (C, C), 1) // ch
    hr = jax.lax.broadcasted_iota(jnp.int32, (C, 1), 0) // ch
    temp_row = jnp.zeros((C, 1), f32)
    for h in range(heads):                                # per-head temperature (SMEM)
        temp_row = jnp.where(hr == h, temp_ref[h, 0], temp_row)
    attn = jnp.where(head_i == head_j, gram * temp_row, NEG_INF)
    attn = attn - jnp.max(attn, axis=-1, keepdims=True)
    e = jnp.exp(attn)
    p = (e * pl.reciprocal(jnp.sum(e, axis=-1, keepdims=True), approx=True)).astype(bf16)

    # out[hw, i] = sum_j p[i, j] * v[hw, j]  (p is block-diagonal -> per-head attn@V)
    out_hw_c = jax.lax.dot_general(v, p, (((1,), (1,)), ((), ())),
                                   preferred_element_type=f32)       # [HW, C]

    res = jnp.dot(out_hw_c.astype(bf16), proj_w_ref[...],
                  preferred_element_type=f32)                        # project_out
    res = res + dec_ref[0].astype(f32).reshape(HW, C)                # + dec residual
    if enc_ref is not None:
        res = res + enc_ref[0].astype(f32).reshape(HW, C)            # + enc (if given)
    o_ref[0] = res.reshape(H, W, C).astype(o_ref.dtype)


# ------------------------------ wrapper ---------------------------------------

def init_params(key, channels, num_heads=8):
    C = channels
    ks = jax.random.split(key, 5)
    return {
        "num_heads": num_heads,
        # spa: Conv2d(C, C, 3, 1, 1) with bias — stored as [kh, kw, Cin, Cout]
        "spa_w": jax.random.normal(ks[0], (3, 3, C, C), jnp.float32) * 0.1,
        "spa_b": jax.random.normal(ks[1], (1, C), jnp.float32) * 0.1,
        # LayerNorm2d
        "ln_w": jnp.ones((1, C), jnp.float32),
        "ln_b": jnp.zeros((1, C), jnp.float32),
        # qkv 1x1 conv (no bias) — [Cin, 3C]
        "qkv_w": jax.random.normal(ks[2], (C, 3 * C), jnp.float32) * 0.1,
        # depthwise 3x3 conv (no bias) — [9, 3C], tap = kh*3+kw
        "dw_w": (jax.random.normal(ks[3], (3, 3, 3 * C), jnp.float32) * 0.1).reshape(9, 3 * C),
        # per-head temperature (init ones, like torch)
        "temperature": jnp.ones((num_heads, 1), jnp.float32),
        # project_out 1x1 conv (no bias) — [Cin, Cout]
        "proj_w": jax.random.normal(ks[4], (C, C), jnp.float32) * 0.1,
    }


def _tpu_vmem_capacity_bytes():
    """Generation-aware VMEM capacity; conservative fallback (v7x per-TensorCore)."""
    try:
        cap = getattr(pltpu.get_tpu_info(), "vmem_capacity_bytes", None)
        if cap:
            return int(cap)
    except Exception:
        pass
    return 64 * 1024 * 1024


def _pick_tile_h(H, W, C, budget_bytes):
    """Largest even divisor of H whose rough K1 working set fits the budget."""
    per_row = 112 * W * C          # rough K1 working-set bytes per extended row
    best = None
    for th in range(2, H + 1, 2):
        if H % th == 0 and th * per_row <= budget_bytes:
            best = th
    if best is None:
        # odd-H fallback runs with T == 1; halo blocks are masked so clamped
        # halo indices never contribute.
        best = 2 if (H % 2 == 0 and H >= 2) else H
    return best


def self_fuse_block(params, decfea_nchw, encfea_nchw=None):
    f32, bf16 = jnp.float32, jnp.bfloat16
    x = jnp.transpose(decfea_nchw, (0, 2, 3, 1)).astype(bf16)   # NCHW -> NHWC, bf16 DMA
    N, H, W, C = x.shape
    heads = params["num_heads"]
    C3 = 3 * C

    vmem_cap = _tpu_vmem_capacity_bytes()
    # ~25 MiB scoped limit on v7x (64 MiB), ~51 MiB on v5e/v6e (128 MiB)
    vmem_limit = max(16 * 1024 * 1024, min(int(vmem_cap * 0.40), 96 * 1024 * 1024))
    TH = _pick_tile_h(H, W, C, budget_bytes=vmem_limit // 3)
    T = H // TH

    # spa weight reordered to column-shift-major tap order (kw*3 + kh) and flattened
    # to [9C, C] so the 3x3 conv is a single K=9C matmul.
    spa_w9 = params["spa_w"].transpose(1, 0, 2, 3).reshape(9 * C, C).astype(bf16)
    qkv_w_bf = params["qkv_w"].astype(bf16)
    proj_w_bf = params["proj_w"].astype(bf16)

    # ---- kernel 1: spa conv + LN + qkv 1x1 + dwconv, row-tiled with halos --------
    k1 = functools.partial(fused_spa_ln_qkv_dw_kernel, H=H, TH=TH)
    hb = max(H // 2 - 1, 0)
    dec, qkv_dw = pl.pallas_call(
        k1,
        out_shape=(jax.ShapeDtypeStruct((N, H, W, C), bf16),
                   jax.ShapeDtypeStruct((N, H, W, C3), bf16)),
        grid=(N, T),
        in_specs=[
            pl.BlockSpec((1, TH, W, C), lambda n, t: (n, t, 0, 0)),
            pl.BlockSpec((1, 2, W, C),
                         lambda n, t: (n, jnp.maximum(t * (TH // 2) - 1, 0), 0, 0)),
            pl.BlockSpec((1, 2, W, C),
                         lambda n, t: (n, jnp.minimum(t * (TH // 2) + TH // 2, hb), 0, 0)),
            pl.BlockSpec((9 * C, C), lambda n, t: (0, 0)),
            pl.BlockSpec((1, C), lambda n, t: (0, 0)),
            pl.BlockSpec((1, C), lambda n, t: (0, 0)),
            pl.BlockSpec((1, C), lambda n, t: (0, 0)),
            pl.BlockSpec((C, C3), lambda n, t: (0, 0)),
            pl.BlockSpec((9, C3), lambda n, t: (0, 0)),
        ],
        out_specs=[pl.BlockSpec((1, TH, W, C), lambda n, t: (n, t, 0, 0)),
                   pl.BlockSpec((1, TH, W, C3), lambda n, t: (n, t, 0, 0))],
        compiler_params=pltpu.CompilerParams(
            dimension_semantics=("parallel", "parallel"),
            vmem_limit_bytes=vmem_limit),
    )(x, x, x, spa_w9, params["spa_b"], params["ln_w"], params["ln_b"],
      qkv_w_bf, params["dw_w"])

    # ---- kernel 2: attention (heads batched) + project_out + residuals -----------
    has_enc = encfea_nchw is not None
    k2 = functools.partial(attn_proj_res_kernel, heads=heads, has_enc=has_enc)
    in_arrays = [qkv_dw, dec]
    in_specs = [pl.BlockSpec((1, H, W, C3), lambda n: (n, 0, 0, 0)),
                pl.BlockSpec((1, H, W, C), lambda n: (n, 0, 0, 0))]
    if has_enc:
        enc = jnp.transpose(encfea_nchw, (0, 2, 3, 1)).astype(bf16)
        in_arrays.append(enc)
        in_specs.append(pl.BlockSpec((1, H, W, C), lambda n: (n, 0, 0, 0)))
    in_arrays += [params["temperature"], proj_w_bf]
    in_specs += [pl.BlockSpec(memory_space=pltpu.MemorySpace.SMEM),
                 pl.BlockSpec((C, C), lambda n: (0, 0))]

    out = pl.pallas_call(
        k2,
        out_shape=jax.ShapeDtypeStruct((N, H, W, C), f32),
        grid=(N,),
        in_specs=in_specs,
        out_specs=pl.BlockSpec((1, H, W, C), lambda n: (n, 0, 0, 0)),
        compiler_params=pltpu.CompilerParams(
            dimension_semantics=("parallel",),
            vmem_limit_bytes=vmem_limit),
    )(*in_arrays)

    # TODO(synk): torch's isnan()-check / nan_to_num branch is a host-side runtime
    # guard that is a no-op for finite outputs; omitted (no clean in-kernel equivalent).
    return jnp.transpose(out, (0, 3, 1, 2))  # NHWC -> NCHW


if __name__ == "__main__":
    key = jax.random.PRNGKey(0)
    N, C, H, W = 2, 16, 16, 16           # channels divisible by num_heads=8
    params = init_params(jax.random.fold_in(key, 1), C, num_heads=8)
    decfea = jax.random.normal(jax.random.fold_in(key, 2), (N, C, H, W), jnp.float32)
    encfea = jax.random.normal(jax.random.fold_in(key, 3), (N, C, H, W), jnp.float32)

    out = jax.block_until_ready(self_fuse_block(params, decfea))           # encfea=None
    assert out.shape == (N, C, H, W)
    assert bool(jnp.all(jnp.isfinite(out)))

    out2 = jax.block_until_ready(self_fuse_block(params, decfea, encfea))  # with encfea
    assert out2.shape == (N, C, H, W)
    assert bool(jnp.all(jnp.isfinite(out2)))

    print("KERNEL_OK")
</pallas_src>

<mosaic_0001>
module attributes {stable_mosaic.version = 11 : i64} {
  func.func @fused_spa_ln_qkv_dw_kernel(%arg0: i32, %arg1: i32, %arg2: memref<1x16x16x16xbf16, #tpu.memory_space<vmem>>, %arg3: memref<1x2x16x16xbf16, #tpu.memory_space<vmem>>, %arg4: memref<1x2x16x16xbf16, #tpu.memory_space<vmem>>, %arg5: memref<144x16xbf16, #tpu.memory_space<vmem>>, %arg6: memref<1x16xf32, #tpu.memory_space<vmem>>, %arg7: memref<1x16xf32, #tpu.memory_space<vmem>>, %arg8: memref<1x16xf32, #tpu.memory_space<vmem>>, %arg9: memref<16x48xbf16, #tpu.memory_space<vmem>>, %arg10: memref<9x48xf32, #tpu.memory_space<vmem>>, %arg11: memref<1x16x16x16xbf16, #tpu.memory_space<vmem>>, %arg12: memref<1x16x16x48xbf16, #tpu.memory_space<vmem>>) attributes {dimension_semantics = [#tpu.dimension_semantics<parallel>, #tpu.dimension_semantics<parallel>], iteration_bounds = array<i64: 2, 1>, scalar_prefetch = 0 : i64, scratch_operands = 0 : i64, tpu.core_type = #tpu.core_type<tc>, window_params = [{transform_indices = @transform_0, window_bounds = array<i64: 1, 16, 16, 16>}, {transform_indices = @transform_1, window_bounds = array<i64: 1, 2, 16, 16>}, {transform_indices = @transform_2, window_bounds = array<i64: 1, 2, 16, 16>}, {pipeline_mode = #tpu.pipeline_mode<synchronous>, transform_indices = @transform_3, window_bounds = array<i64: 144, 16>}, {pipeline_mode = #tpu.pipeline_mode<synchronous>, transform_indices = @transform_4, window_bounds = array<i64: 1, 16>}, {pipeline_mode = #tpu.pipeline_mode<synchronous>, transform_indices = @transform_5, window_bounds = array<i64: 1, 16>}, {pipeline_mode = #tpu.pipeline_mode<synchronous>, transform_indices = @transform_6, window_bounds = array<i64: 1, 16>}, {pipeline_mode = #tpu.pipeline_mode<synchronous>, transform_indices = @transform_7, window_bounds = array<i64: 16, 48>}, {pipeline_mode = #tpu.pipeline_mode<synchronous>, transform_indices = @transform_8, window_bounds = array<i64: 9, 48>}, {transform_indices = @transform_9, window_bounds = array<i64: 1, 16, 16, 16>}, {transform_indices = @transform_10, window_bounds = array<i64: 1, 16, 16, 48>}]} {
    %c0_i32 = arith.constant 0 : i32
    %0 = arith.cmpi sgt, %arg1, %c0_i32 : i32
    %c0 = arith.constant 0 : index
    %c0_0 = arith.constant 0 : index
    %c0_1 = arith.constant 0 : index
    %c0_2 = arith.constant 0 : index
    %1 = vector.load %arg3[%c0, %c0_0, %c0_1, %c0_2] : memref<1x2x16x16xbf16, #tpu.memory_space<vmem>>, vector<1x2x16x16xbf16>
    %2 = vector.shape_cast %1 : vector<1x2x16x16xbf16> to vector<2x16x16xbf16>
    %cst = arith.constant 0.000000e+00 : bf16
    %3 = vector.broadcast %cst : bf16 to vector<2x16x16xbf16>
    %4 = arith.select %0, %2, %3 : vector<2x16x16xbf16>
    %c0_i32_3 = arith.constant 0 : i32
    %5 = arith.cmpi slt, %arg1, %c0_i32_3 : i32
    %c0_4 = arith.constant 0 : index
    %c0_5 = arith.constant 0 : index
    %c0_6 = arith.constant 0 : index
    %c0_7 = arith.constant 0 : index
    %6 = vector.load %arg4[%c0_4, %c0_5, %c0_6, %c0_7] : memref<1x2x16x16xbf16, #tpu.memory_space<vmem>>, vector<1x2x16x16xbf16>
    %7 = vector.shape_cast %6 : vector<1x2x16x16xbf16> to vector<2x16x16xbf16>
    %cst_8 = arith.constant 0.000000e+00 : bf16
    %8 = vector.broadcast %cst_8 : bf16 to vector<2x16x16xbf16>
    %9 = arith.select %5, %7, %8 : vector<2x16x16xbf16>
    %c0_9 = arith.constant 0 : index
    %c0_10 = arith.constant 0 : index
    %c0_11 = arith.constant 0 : index
    %c0_12 = arith.constant 0 : index
    %10 = vector.load %arg2[%c0_9, %c0_10, %c0_11, %c0_12] : memref<1x16x16x16xbf16, #tpu.memory_space<vmem>>, vector<1x16x16x16xbf16>
    %11 = vector.shape_cast %10 : vector<1x16x16x16xbf16> to vector<16x16x16xbf16>
    %12 = tpu.concatenate %4, %11, %9 in 0 : vector<2x16x16xbf16>, vector<16x16x16xbf16>, vector<2x16x16xbf16> -> vector<20x16x16xbf16>
    %13 = arith.extf %12 : vector<20x16x16xbf16> to vector<20x16x16xf32>
    %14 = tpu.iota {dimensions = array<i32: 1>} : vector<20x16x1xi32>
    %c1_i32 = arith.constant 1 : i32
    %15 = tpu.dynamic_rotate %13 by %c1_i32 dim 1 : vector<20x16x16xf32>, i32 -> vector<20x16x16xf32>
    %c0_i32_13 = arith.constant 0 : i32
    %16 = vector.broadcast %c0_i32_13 : i32 to vector<20x16x1xi32>
    %17 = arith.cmpi eq, %14, %16 : vector<20x16x1xi32>
    %cst_14 = arith.constant 0.000000e+00 : f32
    %18 = vector.shape_cast %17 : vector<20x16x1xi1> to vector<20x16x1xi1>
    %19 = vector.broadcast %18 : vector<20x16x1xi1> to vector<20x16x16xi1>
    %20 = vector.broadcast %cst_14 : f32 to vector<20x16x16xf32>
    %21 = arith.select %19, %20, %15 : vector<20x16x16xi1>, vector<20x16x16xf32>
    %22 = vector.extract_strided_slice %21 {offsets = [0, 0, 0], sizes = [18, 16, 16], strides = [1, 1, 1]} : vector<20x16x16xf32> to vector<18x16x16xf32>
    %23 = vector.shape_cast %22 : vector<18x16x16xf32> to vector<288x16xf32>
    %24 = arith.truncf %23 : vector<288x16xf32> to vector<288x16xbf16>
    %25 = vector.extract_strided_slice %21 {offsets = [1, 0, 0], sizes = [18, 16, 16], strides = [1, 1, 1]} : vector<20x16x16xf32> to vector<18x16x16xf32>
    %26 = vector.shape_cast %25 : vector<18x16x16xf32> to vector<288x16xf32>
    %27 = arith.truncf %26 : vector<288x16xf32> to vector<288x16xbf16>
    %28 = vector.extract_strided_slice %21 {offsets = [2, 0, 0], sizes = [18, 16, 16], strides = [1, 1, 1]} : vector<20x16x16xf32> to vector<18x16x16xf32>
    %29 = vector.shape_cast %28 : vector<18x16x16xf32> to vector<288x16xf32>
    %30 = arith.truncf %29 : vector<288x16xf32> to vector<288x16xbf16>
    %31 = vector.extract_strided_slice %13 {offsets = [0, 0, 0], sizes = [18, 16, 16], strides = [1, 1, 1]} : vector<20x16x16xf32> to vector<18x16x16xf32>
    %32 = vector.shape_cast %31 : vector<18x16x16xf32> to vector<288x16xf32>
    %33 = arith.truncf %32 : vector<288x16xf32> to vector<288x16xbf16>
    %34 = vector.extract_strided_slice %13 {offsets = [1, 0, 0], sizes = [18, 16, 16], strides = [1, 1, 1]} : vector<20x16x16xf32> to vector<18x16x16xf32>
    %35 = vector.shape_cast %34 : vector<18x16x16xf32> to vector<288x16xf32>
    %36 = arith.truncf %35 : vector<288x16xf32> to vector<288x16xbf16>
    %37 = vector.extract_strided_slice %13 {offsets = [2, 0, 0], sizes = [18, 16, 16], strides = [1, 1, 1]} : vector<20x16x16xf32> to vector<18x16x16xf32>
    %38 = vector.shape_cast %37 : vector<18x16x16xf32> to vector<288x16xf32>
    %39 = arith.truncf %38 : vector<288x16xf32> to vector<288x16xbf16>
    %c15_i32 = arith.constant 15 : i32
    %40 = tpu.dynamic_rotate %13 by %c15_i32 dim 1 : vector<20x16x16xf32>, i32 -> vector<20x16x16xf32>
    %c15_i32_15 = arith.constant 15 : i32
    %41 = vector.broadcast %c15_i32_15 : i32 to vector<20x16x1xi32>
    %42 = arith.cmpi eq, %14, %41 : vector<20x16x1xi32>
    %cst_16 = arith.constant 0.000000e+00 : f32
    %43 = vector.shape_cast %42 : vector<20x16x1xi1> to vector<20x16x1xi1>
    %44 = vector.broadcast %43 : vector<20x16x1xi1> to vector<20x16x16xi1>
    %45 = vector.broadcast %cst_16 : f32 to vector<20x16x16xf32>
    %46 = arith.select %44, %45, %40 : vector<20x16x16xi1>, vector<20x16x16xf32>
    %47 = vector.extract_strided_slice %46 {offsets = [0, 0, 0], sizes = [18, 16, 16], strides = [1, 1, 1]} : vector<20x16x16xf32> to vector<18x16x16xf32>
    %48 = vector.shape_cast %47 : vector<18x16x16xf32> to vector<288x16xf32>
    %49 = arith.truncf %48 : vector<288x16xf32> to vector<288x16xbf16>
    %50 = vector.extract_strided_slice %46 {offsets = [1, 0, 0], sizes = [18, 16, 16], strides = [1, 1, 1]} : vector<20x16x16xf32> to vector<18x16x16xf32>
    %51 = vector.shape_cast %50 : vector<18x16x16xf32> to vector<288x16xf32>
    %52 = arith.truncf %51 : vector<288x16xf32> to vector<288x16xbf16>
    %53 = vector.extract_strided_slice %46 {offsets = [2, 0, 0], sizes = [18, 16, 16], strides = [1, 1, 1]} : vector<20x16x16xf32> to vector<18x16x16xf32>
    %54 = vector.shape_cast %53 : vector<18x16x16xf32> to vector<288x16xf32>
    %55 = arith.truncf %54 : vector<288x16xf32> to vector<288x16xbf16>
    %56 = tpu.concatenate %24, %27, %30, %33, %36, %39, %49, %52, %55 in 1 : vector<288x16xbf16>, vector<288x16xbf16>, vector<288x16xbf16>, vector<288x16xbf16>, vector<288x16xbf16>, vector<288x16xbf16>, vector<288x16xbf16>, vector<288x16xbf16>, vector<288x16xbf16> -> vector<288x144xbf16>
    %c0_17 = arith.constant 0 : index
    %c0_18 = arith.constant 0 : index
    %57 = vector.load %arg5[%c0_17, %c0_18] : memref<144x16xbf16, #tpu.memory_space<vmem>>, vector<144x16xbf16>
    %cst_19 = arith.constant dense<0.000000e+00> : vector<288x16xf32>
    %58 = tpu.matmul %56, %57, %cst_19 {dimension_numbers = #tpu.dot_dimension_numbers<[1], [0], [0], [1], [0, 0, 1, 1], [], []>} : vector<288x144xbf16>, vector<144x16xbf16>, vector<288x16xf32> -> vector<288x16xf32>
    %59 = vector.shape_cast %58 : vector<288x16xf32> to vector<18x16x16xf32>
    %c0_20 = arith.constant 0 : index
    %c0_21 = arith.constant 0 : index
    %60 = vector.load %arg6[%c0_20, %c0_21] : memref<1x16xf32, #tpu.memory_space<vmem>>, vector<1x16xf32>
    %61 = vector.shape_cast %60 : vector<1x16xf32> to vector<16xf32>
    %62 = vector.shape_cast %61 : vector<16xf32> to vector<1x1x16xf32>
    %63 = vector.broadcast %62 : vector<1x1x16xf32> to vector<18x16x16xf32>
    %64 = arith.addf %59, %63 : vector<18x16x16xf32>
    %65 = vector.extract_strided_slice %64 {offsets = [1, 0, 0], sizes = [16, 16, 16], strides = [1, 1, 1]} : vector<18x16x16xf32> to vector<16x16x16xf32>
    %66 = arith.truncf %65 : vector<16x16x16xf32> to vector<16x16x16xbf16>
    %c0_22 = arith.constant 0 : index
    %c0_23 = arith.constant 0 : index
    %c0_24 = arith.constant 0 : index
    %c0_25 = arith.constant 0 : index
    %67 = vector.load %arg11[%c0_22, %c0_23, %c0_24, %c0_25] : memref<1x16x16x16xbf16, #tpu.memory_space<vmem>>, vector<1x16x16x16xbf16>
    %68 = vector.shape_cast %67 : vector<1x16x16x16xbf16> to vector<16x16x16xbf16>
    %69 = vector.shape_cast %66 : vector<16x16x16xbf16> to vector<1x16x16x16xbf16>
    tpu.vector_store %arg11[%c0_22, %c0_23, %c0_24, %c0_25], %69 {strides = array<i32>} : memref<1x16x16x16xbf16, #tpu.memory_space<vmem>>, vector<1x16x16x16xbf16>,
    %cst_26 = arith.constant dense<0.000000e+00> : vector<18x16xf32>
    %70 = vector.multi_reduction <add>, %64, %cst_26 [2] : vector<18x16x16xf32> to vector<18x16xf32>
    %71 = vector.shape_cast %70 : vector<18x16xf32> to vector<18x16x1xf32>
    %cst_27 = arith.constant 1.600000e+01 : f32
    %72 = vector.broadcast %cst_27 : f32 to vector<18x16x1xf32>
    %73 = arith.divf %71, %72 : vector<18x16x1xf32>
    %74 = vector.broadcast %73 : vector<18x16x1xf32> to vector<18x16x16xf32>
    %75 = arith.subf %64, %74 : vector<18x16x16xf32>
    %76 = arith.mulf %75, %75 : vector<18x16x16xf32>
    %cst_28 = arith.constant dense<0.000000e+00> : vector<18x16xf32>
    %77 = vector.multi_reduction <add>, %76, %cst_28 [2] : vector<18x16x16xf32> to vector<18x16xf32>
    %78 = vector.shape_cast %77 : vector<18x16xf32> to vector<18x16x1xf32>
    %cst_29 = arith.constant 1.600000e+01 : f32
    %79 = vector.broadcast %cst_29 : f32 to vector<18x16x1xf32>
    %80 = arith.divf %78, %79 : vector<18x16x1xf32>
    %cst_30 = arith.constant 9.99999997E-7 : f32
    %81 = vector.broadcast %cst_30 : f32 to vector<18x16x1xf32>
    %82 = arith.addf %80, %81 : vector<18x16x1xf32>
    %83 = math.rsqrt %82 : vector<18x16x1xf32>
    %84 = vector.broadcast %83 : vector<18x16x1xf32> to vector<18x16x16xf32>
    %85 = arith.mulf %75, %84 : vector<18x16x16xf32>
    %c0_31 = arith.constant 0 : index
    %c0_32 = arith.constant 0 : index
    %86 = vector.load %arg7[%c0_31, %c0_32] : memref<1x16xf32, #tpu.memory_space<vmem>>, vector<1x16xf32>
    %87 = vector.shape_cast %86 : vector<1x16xf32> to vector<16xf32>
    %88 = vector.shape_cast %87 : vector<16xf32> to vector<1x1x16xf32>
    %89 = vector.broadcast %88 : vector<1x1x16xf32> to vector<18x16x16xf32>
    %90 = arith.mulf %85, %89 : vector<18x16x16xf32>
    %c0_33 = arith.constant 0 : index
    %c0_34 = arith.constant 0 : index
    %91 = vector.load %arg8[%c0_33, %c0_34] : memref<1x16xf32, #tpu.memory_space<vmem>>, vector<1x16xf32>
    %92 = vector.shape_cast %91 : vector<1x16xf32> to vector<16xf32>
    %93 = vector.shape_cast %92 : vector<16xf32> to vector<1x1x16xf32>
    %94 = vector.broadcast %93 : vector<1x1x16xf32> to vector<18x16x16xf32>
    %95 = arith.addf %90, %94 : vector<18x16x16xf32>
    %96 = vector.shape_cast %95 : vector<18x16x16xf32> to vector<288x16xf32>
    %97 = arith.truncf %96 : vector<288x16xf32> to vector<288x16xbf16>
    %c0_35 = arith.constant 0 : index
    %c0_36 = arith.constant 0 : index
    %98 = vector.load %arg9[%c0_35, %c0_36] : memref<16x48xbf16, #tpu.memory_space<vmem>>, vector<16x48xbf16>
    %cst_37 = arith.constant dense<0.000000e+00> : vector<288x48xf32>
    %99 = tpu.matmul %97, %98, %cst_37 {dimension_numbers = #tpu.dot_dimension_numbers<[1], [0], [0], [1], [0, 0, 1, 1], [], []>} : vector<288x16xbf16>, vector<16x48xbf16>, vector<288x48xf32> -> vector<288x48xf32>
    %100 = vector.shape_cast %99 : vector<288x48xf32> to vector<18x16x48xf32>
    %101 = tpu.iota {dimensions = array<i32: 0>} : vector<18x1x1xi32>
    %c16_i32 = arith.constant 16 : i32
    %102 = arith.muli %arg1, %c16_i32 : i32
    %c1_i32_38 = arith.constant 1 : i32
    %103 = arith.subi %102, %c1_i32_38 : i32
    %104 = vector.broadcast %103 : i32 to vector<18x1x1xi32>
    %105 = arith.addi %104, %101 : vector<18x1x1xi32>
    %c0_i32_39 = arith.constant 0 : i32
    %106 = vector.broadcast %c0_i32_39 : i32 to vector<18x1x1xi32>
    %107 = arith.cmpi sge, %105, %106 : vector<18x1x1xi32>
    %c16_i32_40 = arith.constant 16 : i32
    %108 = vector.broadcast %c16_i32_40 : i32 to vector<18x1x1xi32>
    %109 = arith.cmpi slt, %105, %108 : vector<18x1x1xi32>
    %110 = arith.andi %107, %109 : vector<18x1x1xi1>
    %cst_41 = arith.constant 0.000000e+00 : f32
    %111 = vector.shape_cast %110 : vector<18x1x1xi1> to vector<18x1x1xi1>
    %112 = vector.broadcast %111 : vector<18x1x1xi1> to vector<18x16x48xi1>
    %113 = vector.broadcast %cst_41 : f32 to vector<18x16x48xf32>
    %114 = arith.select %112, %100, %113 : vector<18x16x48xi1>, vector<18x16x48xf32>
    %115 = tpu.iota {dimensions = array<i32: 1>} : vector<18x16x1xi32>
    %cst_42 = arith.constant 0.000000e+00 : f32
    %116 = vector.broadcast %cst_42 : f32 to vector<16x16x48xf32>
    %c1_i32_43 = arith.constant 1 : i32
    %117 = tpu.dynamic_rotate %114 by %c1_i32_43 dim 1 : vector<18x16x48xf32>, i32 -> vector<18x16x48xf32>
    %c0_i32_44 = arith.constant 0 : i32
    %118 = vector.broadcast %c0_i32_44 : i32 to vector<18x16x1xi32>
    %119 = arith.cmpi eq, %115, %118 : vector<18x16x1xi32>
    %cst_45 = arith.constant 0.000000e+00 : f32
    %120 = vector.shape_cast %119 : vector<18x16x1xi1> to vector<18x16x1xi1>
    %121 = vector.broadcast %120 : vector<18x16x1xi1> to vector<18x16x48xi1>
    %122 = vector.broadcast %cst_45 : f32 to vector<18x16x48xf32>
    %123 = arith.select %121, %122, %117 : vector<18x16x48xi1>, vector<18x16x48xf32>
    %124 = vector.extract_strided_slice %123 {offsets = [0, 0, 0], sizes = [16, 16, 48], strides = [1, 1, 1]} : vector<18x16x48xf32> to vector<16x16x48xf32>
    %c0_46 = arith.constant 0 : index
    %c0_47 = arith.constant 0 : index
    %125 = vector.load %arg10[%c0_46, %c0_47] : memref<9x48xf32, #tpu.memory_space<vmem>>, vector<1x48xf32>
    %126 = vector.shape_cast %125 : vector<1x48xf32> to vector<48xf32>
    %127 = vector.shape_cast %126 : vector<48xf32> to vector<1x1x48xf32>
    %128 = vector.broadcast %127 : vector<1x1x48xf32> to vector<16x16x48xf32>
    %129 = arith.mulf %124, %128 : vector<16x16x48xf32>
    %130 = arith.addf %116, %129 : vector<16x16x48xf32>
    %131 = vector.extract_strided_slice %123 {offsets = [1, 0, 0], sizes = [16, 16, 48], strides = [1, 1, 1]} : vector<18x16x48xf32> to vector<16x16x48xf32>
    %c3 = arith.constant 3 : index
    %c0_48 = arith.constant 0 : index
    %132 = vector.load %arg10[%c3, %c0_48] : memref<9x48xf32, #tpu.memory_space<vmem>>, vector<1x48xf32>
    %133 = vector.shape_cast %132 : vector<1x48xf32> to vector<48xf32>
    %134 = vector.shape_cast %133 : vector<48xf32> to vector<1x1x48xf32>
    %135 = vector.broadcast %134 : vector<1x1x48xf32> to vector<16x16x48xf32>
    %136 = arith.mulf %131, %135 : vector<16x16x48xf32>
    %137 = arith.addf %130, %136 : vector<16x16x48xf32>
    %138 = vector.extract_strided_slice %123 {offsets = [2, 0, 0], sizes = [16, 16, 48], strides = [1, 1, 1]} : vector<18x16x48xf32> to vector<16x16x48xf32>
    %c6 = arith.constant 6 : index
    %c0_49 = arith.constant 0 : index
    %139 = vector.load %arg10[%c6, %c0_49] : memref<9x48xf32, #tpu.memory_space<vmem>>, vector<1x48xf32>
    %140 = vector.shape_cast %139 : vector<1x48xf32> to vector<48xf32>
    %141 = vector.shape_cast %140 : vector<48xf32> to vector<1x1x48xf32>
    %142 = vector.broadcast %141 : vector<1x1x48xf32> to vector<16x16x48xf32>
    %143 = arith.mulf %138, %142 : vector<16x16x48xf32>
    %144 = arith.addf %137, %143 : vector<16x16x48xf32>
    %145 = vector.extract_strided_slice %114 {offsets = [0, 0, 0], sizes = [16, 16, 48], strides = [1, 1, 1]} : vector<18x16x48xf32> to vector<16x16x48xf32>
    %c1 = arith.constant 1 : index
    %c0_50 = arith.constant 0 : index
    %146 = vector.load %arg10[%c1, %c0_50] : memref<9x48xf32, #tpu.memory_space<vmem>>, vector<1x48xf32>
    %147 = vector.shape_cast %146 : vector<1x48xf32> to vector<48xf32>
    %148 = vector.shape_cast %147 : vector<48xf32> to vector<1x1x48xf32>
    %149 = vector.broadcast %148 : vector<1x1x48xf32> to vector<16x16x48xf32>
    %150 = arith.mulf %145, %149 : vector<16x16x48xf32>
    %151 = arith.addf %144, %150 : vector<16x16x48xf32>
    %152 = vector.extract_strided_slice %114 {offsets = [1, 0, 0], sizes = [16, 16, 48], strides = [1, 1, 1]} : vector<18x16x48xf32> to vector<16x16x48xf32>
    %c4 = arith.constant 4 : index
    %c0_51 = arith.constant 0 : index
    %153 = vector.load %arg10[%c4, %c0_51] : memref<9x48xf32, #tpu.memory_space<vmem>>, vector<1x48xf32>
    %154 = vector.shape_cast %153 : vector<1x48xf32> to vector<48xf32>
    %155 = vector.shape_cast %154 : vector<48xf32> to vector<1x1x48xf32>
    %156 = vector.broadcast %155 : vector<1x1x48xf32> to vector<16x16x48xf32>
    %157 = arith.mulf %152, %156 : vector<16x16x48xf32>
    %158 = arith.addf %151, %157 : vector<16x16x48xf32>
    %159 = vector.extract_strided_slice %114 {offsets = [2, 0, 0], sizes = [16, 16, 48], strides = [1, 1, 1]} : vector<18x16x48xf32> to vector<16x16x48xf32>
    %c7 = arith.constant 7 : index
    %c0_52 = arith.constant 0 : index
    %160 = vector.load %arg10[%c7, %c0_52] : memref<9x48xf32, #tpu.memory_space<vmem>>, vector<1x48xf32>
    %161 = vector.shape_cast %160 : vector<1x48xf32> to vector<48xf32>
    %162 = vector.shape_cast %161 : vector<48xf32> to vector<1x1x48xf32>
    %163 = vector.broadcast %162 : vector<1x1x48xf32> to vector<16x16x48xf32>
    %164 = arith.mulf %159, %163 : vector<16x16x48xf32>
    %165 = arith.addf %158, %164 : vector<16x16x48xf32>
    %c15_i32_53 = arith.constant 15 : i32
    %166 = tpu.dynamic_rotate %114 by %c15_i32_53 dim 1 : vector<18x16x48xf32>, i32 -> vector<18x16x48xf32>
    %c15_i32_54 = arith.constant 15 : i32
    %167 = vector.broadcast %c15_i32_54 : i32 to vector<18x16x1xi32>
    %168 = arith.cmpi eq, %115, %167 : vector<18x16x1xi32>
    %cst_55 = arith.constant 0.000000e+00 : f32
    %169 = vector.shape_cast %168 : vector<18x16x1xi1> to vector<18x16x1xi1>
    %170 = vector.broadcast %169 : vector<18x16x1xi1> to vector<18x16x48xi1>
    %171 = vector.broadcast %cst_55 : f32 to vector<18x16x48xf32>
    %172 = arith.select %170, %171, %166 : vector<18x16x48xi1>, vector<18x16x48xf32>
    %173 = vector.extract_strided_slice %172 {offsets = [0, 0, 0], sizes = [16, 16, 48], strides = [1, 1, 1]} : vector<18x16x48xf32> to vector<16x16x48xf32>
    %c2 = arith.constant 2 : index
    %c0_56 = arith.constant 0 : index
    %174 = vector.load %arg10[%c2, %c0_56] : memref<9x48xf32, #tpu.memory_space<vmem>>, vector<1x48xf32>
    %175 = vector.shape_cast %174 : vector<1x48xf32> to vector<48xf32>
    %176 = vector.shape_cast %175 : vector<48xf32> to vector<1x1x48xf32>
    %177 = vector.broadcast %176 : vector<1x1x48xf32> to vector<16x16x48xf32>
    %178 = arith.mulf %173, %177 : vector<16x16x48xf32>
    %179 = arith.addf %165, %178 : vector<16x16x48xf32>
    %180 = vector.extract_strided_slice %172 {offsets = [1, 0, 0], sizes = [16, 16, 48], strides = [1, 1, 1]} : vector<18x16x48xf32> to vector<16x16x48xf32>
    %c5 = arith.constant 5 : index
    %c0_57 = arith.constant 0 : index
    %181 = vector.load %arg10[%c5, %c0_57] : memref<9x48xf32, #tpu.memory_space<vmem>>, vector<1x48xf32>
    %182 = vector.shape_cast %181 : vector<1x48xf32> to vector<48xf32>
    %183 = vector.shape_cast %182 : vector<48xf32> to vector<1x1x48xf32>
    %184 = vector.broadcast %183 : vector<1x1x48xf32> to vector<16x16x48xf32>
    %185 = arith.mulf %180, %184 : vector<16x16x48xf32>
    %186 = arith.addf %179, %185 : vector<16x16x48xf32>
    %187 = vector.extract_strided_slice %172 {offsets = [2, 0, 0], sizes = [16, 16, 48], strides = [1, 1, 1]} : vector<18x16x48xf32> to vector<16x16x48xf32>
    %c8 = arith.constant 8 : index
    %c0_58 = arith.constant 0 : index
    %188 = vector.load %arg10[%c8, %c0_58] : memref<9x48xf32, #tpu.memory_space<vmem>>, vector<1x48xf32>
    %189 = vector.shape_cast %188 : vector<1x48xf32> to vector<48xf32>
    %190 = vector.shape_cast %189 : vector<48xf32> to vector<1x1x48xf32>
    %191 = vector.broadcast %190 : vector<1x1x48xf32> to vector<16x16x48xf32>
    %192 = arith.mulf %187, %191 : vector<16x16x48xf32>
    %193 = arith.addf %186, %192 : vector<16x16x48xf32>
    %194 = arith.truncf %193 : vector<16x16x48xf32> to vector<16x16x48xbf16>
    %c0_59 = arith.constant 0 : index
    %c0_60 = arith.constant 0 : index
    %c0_61 = arith.constant 0 : index
    %c0_62 = arith.constant 0 : index
    %195 = vector.load %arg12[%c0_59, %c0_60, %c0_61, %c0_62] : memref<1x16x16x48xbf16, #tpu.memory_space<vmem>>, vector<1x16x16x48xbf16>
    %196 = vector.shape_cast %195 : vector<1x16x16x48xbf16> to vector<16x16x48xbf16>
    %197 = vector.shape_cast %194 : vector<16x16x48xbf16> to vector<1x16x16x48xbf16>
    tpu.vector_store %arg12[%c0_59, %c0_60, %c0_61, %c0_62], %197 {strides = array<i32>} : memref<1x16x16x48xbf16, #tpu.memory_space<vmem>>, vector<1x16x16x48xbf16>,
    return
  }
  func.func @transform_0(%arg0: i32, %arg1: i32) -> (i32, i32, i32, i32) {
    %c0_i32 = arith.constant 0 : i32
    %c0_i32_0 = arith.constant 0 : i32
    %c0_i32_1 = arith.constant 0 : i32
    return %arg0, %arg1, %c0_i32, %c0_i32_0 : i32, i32, i32, i32
  }
  func.func @transform_1(%arg0: i32, %arg1: i32) -> (i32, i32, i32, i32) {
    %c8_i32 = arith.constant 8 : i32
    %0 = arith.muli %arg1, %c8_i32 : i32
    %c1_i32 = arith.constant 1 : i32
    %1 = arith.subi %0, %c1_i32 : i32
    %c0_i32 = arith.constant 0 : i32
    %2 = arith.maxsi %1, %c0_i32 : i32
    %c0_i32_0 = arith.constant 0 : i32
    %c0_i32_1 = arith.constant 0 : i32
    %c0_i32_2 = arith.constant 0 : i32
    return %arg0, %2, %c0_i32_0, %c0_i32_1 : i32, i32, i32, i32
  }
  func.func @transform_2(%arg0: i32, %arg1: i32) -> (i32, i32, i32, i32) {
    %c8_i32 = arith.constant 8 : i32
    %0 = arith.muli %arg1, %c8_i32 : i32
    %c8_i32_0 = arith.constant 8 : i32
    %1 = arith.addi %0, %c8_i32_0 : i32
    %c7_i32 = arith.constant 7 : i32
    %2 = arith.minsi %1, %c7_i32 : i32
    %c0_i32 = arith.constant 0 : i32
    %c0_i32_1 = arith.constant 0 : i32
    %c0_i32_2 = arith.constant 0 : i32
    return %arg0, %2, %c0_i32, %c0_i32_1 : i32, i32, i32, i32
  }
  func.func @transform_3(%arg0: i32, %arg1: i32) -> (i32, i32) {
    %c0_i32 = arith.constant 0 : i32
    %c0_i32_0 = arith.constant 0 : i32
    %c0_i32_1 = arith.constant 0 : i32
    return %c0_i32, %c0_i32_0 : i32, i32
  }
  func.func @transform_4(%arg0: i32, %arg1: i32) -> (i32, i32) {
    %c0_i32 = arith.constant 0 : i32
    %c0_i32_0 = arith.constant 0 : i32
    %c0_i32_1 = arith.constant 0 : i32
    return %c0_i32, %c0_i32_0 : i32, i32
  }
  func.func @transform_5(%arg0: i32, %arg1: i32) -> (i32, i32) {
    %c0_i32 = arith.constant 0 : i32
    %c0_i32_0 = arith.constant 0 : i32
    %c0_i32_1 = arith.constant 0 : i32
    return %c0_i32, %c0_i32_0 : i32, i32
  }
  func.func @transform_6(%arg0: i32, %arg1: i32) -> (i32, i32) {
    %c0_i32 = arith.constant 0 : i32
    %c0_i32_0 = arith.constant 0 : i32
    %c0_i32_1 = arith.constant 0 : i32
    return %c0_i32, %c0_i32_0 : i32, i32
  }
  func.func @transform_7(%arg0: i32, %arg1: i32) -> (i32, i32) {
    %c0_i32 = arith.constant 0 : i32
    %c0_i32_0 = arith.constant 0 : i32
    %c0_i32_1 = arith.constant 0 : i32
    return %c0_i32, %c0_i32_0 : i32, i32
  }
  func.func @transform_8(%arg0: i32, %arg1: i32) -> (i32, i32) {
    %c0_i32 = arith.constant 0 : i32
    %c0_i32_0 = arith.constant 0 : i32
    %c0_i32_1 = arith.constant 0 : i32
    return %c0_i32, %c0_i32_0 : i32, i32
  }
  func.func @transform_9(%arg0: i32, %arg1: i32) -> (i32, i32, i32, i32) {
    %c0_i32 = arith.constant 0 : i32
    %c0_i32_0 = arith.constant 0 : i32
    %c0_i32_1 = arith.constant 0 : i32
    return %arg0, %arg1, %c0_i32, %c0_i32_0 : i32, i32, i32, i32
  }
  func.func @transform_10(%arg0: i32, %arg1: i32) -> (i32, i32, i32, i32) {
    %c0_i32 = arith.constant 0 : i32
    %c0_i32_0 = arith.constant 0 : i32
    %c0_i32_1 = arith.constant 0 : i32
    return %arg0, %arg1, %c0_i32, %c0_i32_0 : i32, i32, i32, i32
  }
}

</mosaic_0001>

<llo_original>
// kernel: tpu_custom_call.1
$region0: #{tpu_custom_call.1}
  #allocation0 [shape = 'u32[]', space=smem, size = 0x4, offset = 0x4, fixed_abs, tag = 'smem constant byte address 0x4 - core index']
  #allocation1 [shape = 'u32[144,128]{1,0:T(1,128)}', space=vmem, size = 0x12000, scoped, tag = 'internal scratch']
  %s0 = inlined_call_operand.hbm [shape: bf16[2,16,16,16], index: 0, kind: input, shape index: {}]
  %s1 = inlined_call_operand.hbm [shape: bf16[2,16,16,16], index: 1, kind: input, shape index: {}]
  %s2 = inlined_call_operand.hbm [shape: bf16[2,16,16,16], index: 2, kind: input, shape index: {}]
  %s3 = inlined_call_operand.vmem [shape: bf16[144,16], index: 3, kind: input, shape index: {}]
  %s4 = inlined_call_operand.vmem [shape: f32[1,16], index: 4, kind: input, shape index: {}]
  %s5 = inlined_call_operand.vmem [shape: f32[1,16], index: 5, kind: input, shape index: {}]
  %s6 = inlined_call_operand.vmem [shape: f32[1,16], index: 6, kind: input, shape index: {}]
  %s7 = inlined_call_operand.vmem [shape: bf16[16,48], index: 7, kind: input, shape index: {}]
  %s8 = inlined_call_operand.vmem [shape: f32[9,48], index: 8, kind: input, shape index: {}]
  %s9 = inlined_call_operand.hbm [shape: bf16[2,16,16,16], index: 9, kind: output, shape index: {0}]
  %s10 = inlined_call_operand.hbm [shape: bf16[2,16,16,48], index: 10, kind: output, shape index: {1}]
  %11 = xla_tuple %s9, %s10
  %s12 = sld [smem:[#allocation0]]
  $region89: #{tpu_custom_call.1} parent=0
    _
  %s14 = ssub.s32 1, %s12
  %s15 = scalar_select 0, %s14, %s12
  $region1: #{tpu_custom_call.1} parent=0
    #allocation2 [shape = 'u8[131072]{0}', space=vmem, size = 0x20000, scoped, tag = 'input window, operand 0']
    #allocation3 [shape = 's32[2]{0}', space=sflag, size = 0x8, scoped, tag = 'scoped memory for tpu_custom_call.1']
    #allocation4 [shape = 's32[2]{0}', space=sflag, size = 0x8, scoped, tag = 'scoped memory for tpu_custom_call.1']
    #allocation5 [shape = 'u8[16384]{0}', space=vmem, size = 0x4000, scoped, tag = 'input window, operand 1']
    #allocation6 [shape = 's32[2]{0}', space=sflag, size = 0x8, scoped, tag = 'scoped memory for tpu_custom_call.1']
    #allocation7 [shape = 'u8[16384]{0}', space=vmem, size = 0x4000, scoped, tag = 'input window, operand 2']
    #allocation8 [shape = 'u8[131072]{0}', space=vmem, size = 0x20000, scoped, tag = 'output window, operand 0']
    #allocation9 [shape = 'u8[131072]{0}', space=vmem, size = 0x20000, scoped, tag = 'output window, operand 1']
    #allocation10 [shape = 's32[2]{0}', space=sflag, size = 0x8, scoped, tag = 'scoped memory for tpu_custom_call.1']
    %16 = vsyncpa [#allocation3], 0
    %s17 = scalar_lea.sflag [#allocation3], 1
    %18 = vsyncpa %s17, 0
    %19 = vsyncpa [#allocation6], 0
    %s20 = scalar_lea.sflag [#allocation6], 1
    %21 = vsyncpa %s20, 0
    %22 = vsyncpa [#allocation4], 0
    %s23 = scalar_lea.sflag [#allocation4], 1
    %24 = vsyncpa %s23, 0
    %25 = vsyncpa [#allocation10], 0
    %s26 = scalar_lea.sflag [#allocation10], 1
    %27 = vsyncpa %s26, 0
    loop: start=0, step=1, limit=4
    $region2: #{tpu_custom_call.1} parent=1 // loop_pre_header
      _
    $region3: #{tpu_custom_call.1} parent=1 // loop_header
      %s29 = sphi 0, %s33
      %p30 = scmp.ge.s32.totalorder %s29, 4
      %s36 = sphi 0, %s48
      %s37 = sphi 0, %s44
      %s38 = sphi 0, %s36
      %s39 = sphi 0, %s37
      %s40 = sphi 0, %s38
      %s41 = sphi 0, %s39
      %s53 = sphi 0, %s55
      %s56 = sphi 0, %s53
      %s57 = sphi 0, %s56
      %s73 = sphi 0, %s57
      %s89 = sphi 0, %s91
      %s92 = sphi 0, %s89
      %s93 = sphi 0, %s92
      %s109 = sphi 0, %s93
      %s125 = sphi 0, %s127
      %s128 = sphi 0, %s125
      %s129 = sphi 0, %s128
      %s145 = sphi 0, %s129
      %s149 = sphi 0, %s149
      %s151 = sphi 0, %s149
      %s152 = sphi 0, %s151
      %s166 = sphi 0, %s152
      %s170 = sphi 0, %s170
      %s172 = sphi 0, %s170
      %s173 = sphi 0, %s172
      %s187 = sphi 0, %s173
      %s191 = sphi 0, %s191
      %s193 = sphi 0, %s191
      %s194 = sphi 0, %s193
      %s208 = sphi 0, %s194
      %s212 = sphi 0, %s212
      %s214 = sphi 0, %s212
      %s215 = sphi 0, %s214
      %s229 = sphi 0, %s215
      %s233 = sphi 0, %s233
      %s235 = sphi 0, %s233
      %s236 = sphi 0, %s235
      %s250 = sphi 0, %s236
      %s254 = sphi 0, %s254
      %s256 = sphi 0, %s254
      %s257 = sphi 0, %s256
      %s271 = sphi 0, %s257
      %s279 = sphi 0, %s281
      %s282 = sphi 0, %s279
      %s283 = sphi 0, %s282
      %s299 = sphi 0, %s283
      %s307 = sphi 0, %s309
      %s310 = sphi 0, %s307
      %s311 = sphi 0, %s310
      %s327 = sphi 0, %s311
    $region4: #{tpu_custom_call.1} parent=1 // loop_header_branch
      %32 = sbr.rel (%p30) target = $region8
    $region5: #{tpu_custom_call.1} parent=1 // loop_body
      %s34 = ssub.s32 %s29, 1
      %s35 = ssub.s32 %s29, 2
      %s42 = sadd.s32 1, %s37
      %p43 = scmp.ge.s32.totalorder %s42, 1
      %s44 = scalar_select %p43, 0, %s42
      %s45 = sadd.s32 1, %s36
      %s46 = scalar_select %p43, %s45, %s36
      %p47 = scmp.ge.s32.totalorder %s46, 2
      %s48 = scalar_select %p47, 0, %s46
      %s49 = ssub.s32 %s36, %s48
      %s50 = ssub.s32 %s37, %s44
      %s51 = sor.u32 %s49, %s50
      %p52 = scmp.eq.s32.totalorder %s51, 0
      %s54 = sadd.s32 %s53, 1
      %s55 = scalar_select %p52, %s53, %s54
      %p58 = pneg %p52
      %p59 = scmp.eq.s32.totalorder %s29, 1
      %p60 = por %p58, %p59
      %p61 = scmp.ne.s32.totalorder %s53, %s56
      %p62 = scmp.eq.s32.totalorder %s29, 0
      %p63 = por %p61, %p62
      %p64 = scmp.ne.s32.totalorder %s53, %s56
      %p65 = scmp.eq.s32.totalorder %s34, 1
      %p66 = por %p64, %p65
      %p67 = scmp.ne.s32.totalorder %s56, %s57
      %p68 = scmp.eq.s32.totalorder %s34, 0
      %p69 = por %p67, %p68
      %p70 = scmp.ne.s32.totalorder %s56, %s57
      %p71 = scmp.eq.s32.totalorder %s35, 1
      %p72 = por %p70, %p71
      %p74 = scmp.ne.s32.totalorder %s57, %s73
      %p75 = scmp.eq.s32.totalorder %s35, 0
      %p76 = por %p74, %p75
      %s77 = smul.u32 %s37, 8
      %s78 = ssub.s32 %s77, 1
      %p79 = scmp.gt.s32.totalorder %s78, 0
      %s80 = scalar_select %p79, %s78, 0
      %s81 = smul.u32 %s44, 8
      %s82 = ssub.s32 %s81, 1
      %p83 = scmp.gt.s32.totalorder %s82, 0
      %s84 = scalar_select %p83, %s82, 0
      %s85 = ssub.s32 %s36, %s48
      %s86 = ssub.s32 %s80, %s84
      %s87 = sor.u32 %s85, %s86
      %p88 = scmp.eq.s32.totalorder %s87, 0
      %s90 = sadd.s32 %s89, 1
      %s91 = scalar_select %p88, %s89, %s90
      %p94 = pneg %p88
      %p95 = scmp.eq.s32.totalorder %s29, 1
      %p96 = por %p94, %p95
      %p97 = scmp.ne.s32.totalorder %s89, %s92
      %p98 = scmp.eq.s32.totalorder %s29, 0
      %p99 = por %p97, %p98
      %p100 = scmp.ne.s32.totalorder %s89, %s92
      %p101 = scmp.eq.s32.totalorder %s34, 1
      %p102 = por %p100, %p101
      %p103 = scmp.ne.s32.totalorder %s92, %s93
      %p104 = scmp.eq.s32.totalorder %s34, 0
      %p105 = por %p103, %p104
      %p106 = scmp.ne.s32.totalorder %s92, %s93
      %p107 = scmp.eq.s32.totalorder %s35, 1
      %p108 = por %p106, %p107
      %p110 = scmp.ne.s32.totalorder %s93, %s109
      %p111 = scmp.eq.s32.totalorder %s35, 0
      %p112 = por %p110, %p111
      %s113 = smul.u32 %s37, 8
      %s114 = sadd.s32 %s113, 8
      %p115 = scmp.lt.s32.totalorder %s114, 7
      %s116 = scalar_select %p115, %s114, 7
      %s117 = smul.u32 %s44, 8
      %s118 = sadd.s32 %s117, 8
      %p119 = scmp.lt.s32.totalorder %s118, 7
      %s120 = scalar_select %p119, %s118, 7
      %s121 = ssub.s32 %s36, %s48
      %s122 = ssub.s32 %s116, %s120
      %s123 = sor.u32 %s121, %s122
      %p124 = scmp.eq.s32.totalorder %s123, 0
      %s126 = sadd.s32 %s125, 1
      %s127 = scalar_select %p124, %s125, %s126
      %p130 = pneg %p124
      %p131 = scmp.eq.s32.totalorder %s29, 1
      %p132 = por %p130, %p131
      %p133 = scmp.ne.s32.totalorder %s125, %s128
      %p134 = scmp.eq.s32.totalorder %s29, 0
      %p135 = por %p133, %p134
      %p136 = scmp.ne.s32.totalorder %s125, %s128
      %p137 = scmp.eq.s32.totalorder %s34, 1
      %p138 = por %p136, %p137
      %p139 = scmp.ne.s32.totalorder %s128, %s129
      %p140 = scmp.eq.s32.totalorder %s34, 0
      %p141 = por %p139, %p140
      %p142 = scmp.ne.s32.totalorder %s128, %s129
      %p143 = scmp.eq.s32.totalorder %s35, 1
      %p144 = por %p142, %p143
      %p146 = scmp.ne.s32.totalorder %s129, %s145
      %p147 = scmp.eq.s32.totalorder %s35, 0
      %p148 = por %p146, %p147
      %s150 = sadd.s32 %s149, 1
      %p153 = scmp.eq.s32.totalorder %s29, 1
      %p154 = scmp.ne.s32.totalorder %s149, %s151
      %p155 = scmp.eq.s32.totalorder %s29, 0
      %p156 = por %p154, %p155
      %p157 = scmp.ne.s32.totalorder %s149, %s151
      %p158 = scmp.eq.s32.totalorder %s34, 1
      %p159 = por %p157, %p158
      %p160 = scmp.ne.s32.totalorder %s151, %s152
      %p161 = scmp.eq.s32.totalorder %s34, 0
      %p162 = por %p160, %p161
      %p163 = scmp.ne.s32.totalorder %s151, %s152
      %p164 = scmp.eq.s32.totalorder %s35, 1
      %p165 = por %p163, %p164
      %p167 = scmp.ne.s32.totalorder %s152, %s166
      %p168 = scmp.eq.s32.totalorder %s35, 0
      %p169 = por %p167, %p168
      %s171 = sadd.s32 %s170, 1
      %p174 = scmp.eq.s32.totalorder %s29, 1
      %p175 = scmp.ne.s32.totalorder %s170, %s172
      %p176 = scmp.eq.s32.totalorder %s29, 0
      %p177 = por %p175, %p176
      %p178 = scmp.ne.s32.totalorder %s170, %s172
      %p179 = scmp.eq.s32.totalorder %s34, 1
      %p180 = por %p178, %p179
      %p181 = scmp.ne.s32.totalorder %s172, %s173
      %p182 = scmp.eq.s32.totalorder %s34, 0
      %p183 = por %p181, %p182
      %p184 = scmp.ne.s32.totalorder %s172, %s173
      %p185 = scmp.eq.s32.totalorder %s35, 1
      %p186 = por %p184, %p185
      %p188 = scmp.ne.s32.totalorder %s173, %s187
      %p189 = scmp.eq.s32.totalorder %s35, 0
      %p190 = por %p188, %p189
      %s192 = sadd.s32 %s191, 1
      %p195 = scmp.eq.s32.totalorder %s29, 1
      %p196 = scmp.ne.s32.totalorder %s191, %s193
      %p197 = scmp.eq.s32.totalorder %s29, 0
      %p198 = por %p196, %p197
      %p199 = scmp.ne.s32.totalorder %s191, %s193
      %p200 = scmp.eq.s32.totalorder %s34, 1
      %p201 = por %p199, %p200
      %p202 = scmp.ne.s32.totalorder %s193, %s194
      %p203 = scmp.eq.s32.totalorder %s34, 0
      %p204 = por %p202, %p203
      %p205 = scmp.ne.s32.totalorder %s193, %s194
      %p206 = scmp.eq.s32.totalorder %s35, 1
      %p207 = por %p205, %p206
      %p209 = scmp.ne.s32.totalorder %s194, %s208
      %p210 = scmp.eq.s32.totalorder %s35, 0
      %p211 = por %p209, %p210
      %s213 = sadd.s32 %s212, 1
      %p216 = scmp.eq.s32.totalorder %s29, 1
      %p217 = scmp.ne.s32.totalorder %s212, %s214
      %p218 = scmp.eq.s32.totalorder %s29, 0
      %p219 = por %p217, %p218
      %p220 = scmp.ne.s32.totalorder %s212, %s214
      %p221 = scmp.eq.s32.totalorder %s34, 1
      %p222 = por %p220, %p221
      %p223 = scmp.ne.s32.totalorder %s214, %s215
      %p224 = scmp.eq.s32.totalorder %s34, 0
      %p225 = por %p223, %p224
      %p226 = scmp.ne.s32.totalorder %s214, %s215
      %p227 = scmp.eq.s32.totalorder %s35, 1
      %p228 = por %p226, %p227
      %p230 = scmp.ne.s32.totalorder %s215, %s229
      %p231 = scmp.eq.s32.totalorder %s35, 0
      %p232 = por %p230, %p231
      %s234 = sadd.s32 %s233, 1
      %p237 = scmp.eq.s32.totalorder %s29, 1
      %p238 = scmp.ne.s32.totalorder %s233, %s235
      %p239 = scmp.eq.s32.totalorder %s29, 0
      %p240 = por %p238, %p239
      %p241 = scmp.ne.s32.totalorder %s233, %s235
      %p242 = scmp.eq.s32.totalorder %s34, 1
      %p243 = por %p241, %p242
      %p244 = scmp.ne.s32.totalorder %s235, %s236
      %p245 = scmp.eq.s32.totalorder %s34, 0
      %p246 = por %p244, %p245
      %p247 = scmp.ne.s32.totalorder %s235, %s236
      %p248 = scmp.eq.s32.totalorder %s35, 1
      %p249 = por %p247, %p248
      %p251 = scmp.ne.s32.totalorder %s236, %s250
      %p252 = scmp.eq.s32.totalorder %s35, 0
      %p253 = por %p251, %p252
      %s255 = sadd.s32 %s254, 1
      %p258 = scmp.eq.s32.totalorder %s29, 1
      %p259 = scmp.ne.s32.totalorder %s254, %s256
      %p260 = scmp.eq.s32.totalorder %s29, 0
      %p261 = por %p259, %p260
      %p262 = scmp.ne.s32.totalorder %s254, %s256
      %p263 = scmp.eq.s32.totalorder %s34, 1
      %p264 = por %p262, %p263
      %p265 = scmp.ne.s32.totalorder %s256, %s257
      %p266 = scmp.eq.s32.totalorder %s34, 0
      %p267 = por %p265, %p266
      %p268 = scmp.ne.s32.totalorder %s256, %s257
      %p269 = scmp.eq.s32.totalorder %s35, 1
      %p270 = por %p268, %p269
      %p272 = scmp.ne.s32.totalorder %s257, %s271
      %p273 = scmp.eq.s32.totalorder %s35, 0
      %p274 = por %p272, %p273
      %s275 = ssub.s32 %s36, %s48
      %s276 = ssub.s32 %s37, %s44
      %s277 = sor.u32 %s275, %s276
      %p278 = scmp.eq.s32.totalorder %s277, 0
      %s280 = sadd.s32 %s279, 1
      %s281 = scalar_select %p278, %s279, %s280
      %p284 = pneg %p278
      %p285 = scmp.eq.s32.totalorder %s29, 1
      %p286 = por %p284, %p285
      %p287 = scmp.ne.s32.totalorder %s279, %s282
      %p288 = scmp.eq.s32.totalorder %s29, 0
      %p289 = por %p287, %p288
      %p290 = scmp.ne.s32.totalorder %s279, %s282
      %p291 = scmp.eq.s32.totalorder %s34, 1
      %p292 = por %p290, %p291
      %p293 = scmp.ne.s32.totalorder %s282, %s283
      %p294 = scmp.eq.s32.totalorder %s34, 0
      %p295 = por %p293, %p294
      %p296 = scmp.ne.s32.totalorder %s282, %s283
      %p297 = scmp.eq.s32.totalorder %s35, 1
      %p298 = por %p296, %p297
      %p300 = scmp.ne.s32.totalorder %s283, %s299
      %p301 = scmp.eq.s32.totalorder %s35, 0
      %p302 = por %p300, %p301
      %s303 = ssub.s32 %s36, %s48
      %s304 = ssub.s32 %s37, %s44
      %s305 = sor.u32 %s303, %s304
      %p306 = scmp.eq.s32.totalorder %s305, 0
      %s308 = sadd.s32 %s307, 1
      %s309 = scalar_select %p306, %s307, %s308
      %p312 = pneg %p306
      %p313 = scmp.eq.s32.totalorder %s29, 1
      %p314 = por %p312, %p313
      %p315 = scmp.ne.s32.totalorder %s307, %s310
      %p316 = scmp.eq.s32.totalorder %s29, 0
      %p317 = por %p315, %p316
      %p318 = scmp.ne.s32.totalorder %s307, %s310
      %p319 = scmp.eq.s32.totalorder %s34, 1
      %p320 = por %p318, %p319
      %p321 = scmp.ne.s32.totalorder %s310, %s311
      %p322 = scmp.eq.s32.totalorder %s34, 0
      %p323 = por %p321, %p322
      %p324 = scmp.ne.s32.totalorder %s310, %s311
      %p325 = scmp.eq.s32.totalorder %s35, 1
      %p326 = por %p324, %p325
      %p328 = scmp.ne.s32.totalorder %s311, %s327
      %p329 = scmp.eq.s32.totalorder %s35, 0
      %p330 = por %p328, %p329
      %p331 = scmp.le.s32.totalorder 1, %s29
      %p332 = scmp.lt.s32.totalorder %s29, 3
      %p333 = pnand %p331, %p332
      %p334 = pneg %p333
      // Predicated region
      $region9: #{tpu_custom_call.1} parent=5 // pred_check
        _
      $region10: #{tpu_custom_call.1} parent=5 // pred_check_branch
        %336 = sbr.rel (%p333) target = $region12
      $region11: #{tpu_custom_call.1} parent=5 // pred_region
        %s337 = ssub.s32 %s29, 1
        // Predicated region
        $region13: #{tpu_custom_call.1} parent=11 // pred_check
          %p338 = pneg %p162
        $region14: #{tpu_custom_call.1} parent=11 // pred_check_branch
          %340 = sbr.rel (%p338) target = $region16
        $region15: #{tpu_custom_call.1} parent=11 // pred_region
          _
        $region16: #{tpu_custom_call.1} parent=11 // pred_fallthru
          _
        // Predicated region
        $region17: #{tpu_custom_call.1} parent=11 // pred_check
          %p341 = pneg %p183
        $region18: #{tpu_custom_call.1} parent=11 // pred_check_branch
          %343 = sbr.rel (%p341) target = $region20
        $region19: #{tpu_custom_call.1} parent=11 // pred_region
          _
        $region20: #{tpu_custom_call.1} parent=11 // pred_fallthru
          _
        // Predicated region
        $region21: #{tpu_custom_call.1} parent=11 // pred_check
          %p344 = pneg %p204
        $region22: #{tpu_custom_call.1} parent=11 // pred_check_branch
          %346 = sbr.rel (%p344) target = $region24
        $region23: #{tpu_custom_call.1} parent=11 // pred_region
          _
        $region24: #{tpu_custom_call.1} parent=11 // pred_fallthru
          _
        // Predicated region
        $region25: #{tpu_custom_call.1} parent=11 // pred_check
          %p347 = pneg %p225
        $region26: #{tpu_custom_call.1} parent=11 // pred_check_branch
          %349 = sbr.rel (%p347) target = $region28
        $region27: #{tpu_custom_call.1} parent=11 // pred_region
          _
        $region28: #{tpu_custom_call.1} parent=11 // pred_fallthru
          _
        // Predicated region
        $region29: #{tpu_custom_call.1} parent=11 // pred_check
          %p350 = pneg %p246
        $region30: #{tpu_custom_call.1} parent=11 // pred_check_branch
          %352 = sbr.rel (%p350) target = $region32
        $region31: #{tpu_custom_call.1} parent=11 // pred_region
          _
        $region32: #{tpu_custom_call.1} parent=11 // pred_fallthru
          _
        // Predicated region
        $region33: #{tpu_custom_call.1} parent=11 // pred_check
          %p353 = pneg %p267
        $region34: #{tpu_custom_call.1} parent=11 // pred_check_branch
          %355 = sbr.rel (%p353) target = $region36
        $region35: #{tpu_custom_call.1} parent=11 // pred_region
          _
        $region36: #{tpu_custom_call.1} parent=11 // pred_fallthru
          _
      $region12: #{tpu_custom_call.1} parent=5 // pred_fallthru
        _
      %p356 = scmp.lt.s32.totalorder %s29, 2
      // Predicated region
      $region37: #{tpu_custom_call.1} parent=5 // pred_check
        %p357 = pneg %p356
      $region38: #{tpu_custom_call.1} parent=5 // pred_check_branch
        %359 = sbr.rel (%p357) target = $region40
      $region39: #{tpu_custom_call.1} parent=5 // pred_region
        // Predicated region
        $region41: #{tpu_custom_call.1} parent=39 // pred_check
          %p360 = pneg %p63
        $region42: #{tpu_custom_call.1} parent=39 // pred_check_branch
          %362 = sbr.rel (%p360) target = $region44
        $region43: #{tpu_custom_call.1} parent=39 // pred_region
          %s363 = sand.u32 %s53, 1
          %s364 = scalar_lea.sflag [#allocation3], %s363
          %s365 = sand.u32 %s53, 1
          %s366 = smul.addr %s365, 128
          %s367 = scalar_lea.vmem [#allocation2], %s366
          %s368 = smul.u32 16, %s37
          %s370 = ssub.s32 2048, 2048
          %371 = vsyncadd %s364, %s370
          %s372 = smul.addr %s368, 2
          %s373 = smul.addr %s36, 32
          %s374 = sadd.s32 %s372, %s373
          %s375 = smul.addr %s374, 64
          %s376 = scalar_lea.hbm %s0, %s375
          %s377 = sshll.u32 %s367, 4
          %s378 = int_to_ptr.vmem [resolvable:$true] %s377
          %383 = dma.hbm_to_vmem [thread:$0]  %s376, 2048, %s378, %s364, 64, 64, 4
        $region44: #{tpu_custom_call.1} parent=39 // pred_fallthru
          _
        // Predicated region
        $region45: #{tpu_custom_call.1} parent=39 // pred_check
          %p384 = pneg %p99
        $region46: #{tpu_custom_call.1} parent=39 // pred_check_branch
          %386 = sbr.rel (%p384) target = $region48
        $region47: #{tpu_custom_call.1} parent=39 // pred_region
          %s387 = sand.u32 %s29, 1
          %s388 = scalar_lea.sflag [#allocation6], %s387
          %s389 = sand.u32 %s89, 1
          %s390 = smul.addr %s389, 16
          %s391 = scalar_lea.vmem [#allocation5], %s390
          %s392 = smul.u32 %s37, 8
          %s393 = ssub.s32 %s392, 1
          %p394 = scmp.gt.s32.totalorder %s393, 0
          %s395 = scalar_select %p394, %s393, 0
          %s396 = smul.u32 2, %s395
          %s398 = ssub.s32 256, 256
          %399 = vsyncadd %s388, %s398
          %s400 = smul.addr %s396, 2
          %s401 = smul.addr %s36, 32
          %s402 = sadd.s32 %s400, %s401
          %s403 = smul.addr %s402, 64
          %s404 = scalar_lea.hbm %s1, %s403
          %s405 = sshll.u32 %s391, 4
          %s406 = int_to_ptr.vmem [resolvable:$true] %s405
          %411 = dma.hbm_to_vmem [thread:$0]  %s404, 256, %s406, %s388, 64, 64, 4
        $region48: #{tpu_custom_call.1} parent=39 // pred_fallthru
          _
        // Predicated region
        $region49: #{tpu_custom_call.1} parent=39 // pred_check
          %p412 = pneg %p135
        $region50: #{tpu_custom_call.1} parent=39 // pred_check_branch
          %414 = sbr.rel (%p412) target = $region52
        $region51: #{tpu_custom_call.1} parent=39 // pred_region
          %s415 = sand.u32 %s29, 1
          %s416 = scalar_lea.sflag [#allocation6], %s415
          %s417 = sand.u32 %s125, 1
          %s418 = smul.addr %s417, 16
          %s419 = scalar_lea.vmem [#allocation7], %s418
          %s420 = smul.u32 %s37, 8
          %s421 = sadd.s32 %s420, 8
          %p422 = scmp.lt.s32.totalorder %s421, 7
          %s423 = scalar_select %p422, %s421, 7
          %s424 = smul.u32 2, %s423
          %s426 = ssub.s32 256, 256
          %427 = vsyncadd %s416, %s426
          %s428 = smul.addr %s424, 2
          %s429 = smul.addr %s36, 32
          %s430 = sadd.s32 %s428, %s429
          %s431 = smul.addr %s430, 64
          %s432 = scalar_lea.hbm %s2, %s431
          %s433 = sshll.u32 %s419, 4
          %s434 = int_to_ptr.vmem [resolvable:$true] %s433
          %439 = dma.hbm_to_vmem [thread:$0]  %s432, 256, %s434, %s416, 64, 64, 4
        $region52: #{tpu_custom_call.1} parent=39 // pred_fallthru
          _
      $region40: #{tpu_custom_call.1} parent=5 // pred_fallthru
        _
      %p440 = scmp.le.s32.totalorder 1, %s29
      %p441 = scmp.lt.s32.totalorder %s29, 3
      %p442 = pnand %p440, %p441
      %p443 = pneg %p442
      // Predicated region
      $region53: #{tpu_custom_call.1} parent=5 // pred_check
        _
      $region54: #{tpu_custom_call.1} parent=5 // pred_check_branch
        %445 = sbr.rel (%p442) target = $region56
      $region55: #{tpu_custom_call.1} parent=5 // pred_region
        %s446 = ssub.s32 %s29, 1
        %s447 = sand.u32 %s56, 1
        %s448 = scalar_lea.sflag [#allocation3], %s447
        %s449 = sand.u32 %s56, 1
        %s450 = smul.addr %s449, 128
        %s451 = scalar_lea.vmem [#allocation2], %s450
        // Predicated region
        $region57: #{tpu_custom_call.1} parent=55 // pred_check
          %p452 = pneg %p69
        $region58: #{tpu_custom_call.1} parent=55 // pred_check_branch
          %454 = sbr.rel (%p452) target = $region60
        $region59: #{tpu_custom_call.1} parent=55 // pred_region
          %455 = dma.done %s448, 2048
        $region60: #{tpu_custom_call.1} parent=55 // pred_fallthru
          _
        %s456 = sand.u32 %s34, 1
        %s457 = scalar_lea.sflag [#allocation6], %s456
        %s458 = sand.u32 %s92, 1
        %s459 = smul.addr %s458, 16
        %s460 = scalar_lea.vmem [#allocation5], %s459
        // Predicated region
        $region61: #{tpu_custom_call.1} parent=55 // pred_check
          %p461 = pneg %p105
        $region62: #{tpu_custom_call.1} parent=55 // pred_check_branch
          %463 = sbr.rel (%p461) target = $region64
        $region63: #{tpu_custom_call.1} parent=55 // pred_region
          %464 = dma.done %s457, 256
        $region64: #{tpu_custom_call.1} parent=55 // pred_fallthru
          _
        %s465 = sand.u32 %s34, 1
        %s466 = scalar_lea.sflag [#allocation6], %s465
        %s467 = sand.u32 %s128, 1
        %s468 = smul.addr %s467, 16
        %s469 = scalar_lea.vmem [#allocation7], %s468
        // Predicated region
        $region65: #{tpu_custom_call.1} parent=55 // pred_check
          %p470 = pneg %p141
        $region66: #{tpu_custom_call.1} parent=55 // pred_check_branch
          %472 = sbr.rel (%p470) target = $region68
        $region67: #{tpu_custom_call.1} parent=55 // pred_region
          %473 = dma.done %s466, 256
        $region68: #{tpu_custom_call.1} parent=55 // pred_fallthru
          _
        %s474 = sand.u32 %s56, 1
        %s475 = scalar_lea.sflag [#allocation3], %s474
        %s476 = sand.u32 %s56, 1
        %s477 = smul.addr %s476, 128
        %s478 = scalar_lea.vmem [#allocation2], %s477
        %p479 = pneg %p69
        %p480 = pneg %p66
        %s481 = sand.u32 %s34, 1
        %s482 = scalar_lea.sflag [#allocation6], %s481
        %s483 = sand.u32 %s92, 1
        %s484 = smul.addr %s483, 16
        %s485 = scalar_lea.vmem [#allocation5], %s484
        %p486 = pneg %p105
        %p487 = pneg %p102
        %s488 = sand.u32 %s34, 1
        %s489 = scalar_lea.sflag [#allocation6], %s488
        %s490 = sand.u32 %s128, 1
        %s491 = smul.addr %s490, 16
        %s492 = scalar_lea.vmem [#allocation7], %s491
        %p493 = pneg %p141
        %p494 = pneg %p138
        %p495 = pneg %p162
        %p496 = pneg %p159
        %p497 = pneg %p183
        %p498 = pneg %p180
        %p499 = pneg %p204
        %p500 = pneg %p201
        %p501 = pneg %p225
        %p502 = pneg %p222
        %p503 = pneg %p246
        %p504 = pneg %p243
        %p505 = pneg %p267
        %p506 = pneg %p264
        %p507 = pneg %p295
        %p508 = pneg %p292
        %s509 = sand.u32 %s282, 1
        %s510 = scalar_lea.sflag [#allocation4], %s509
        %s511 = sand.u32 %s282, 1
        %s512 = smul.addr %s511, 128
        %s513 = scalar_lea.vmem [#allocation8], %s512
        %p514 = pneg %p323
        %p515 = pneg %p320
        %s516 = sand.u32 %s310, 1
        %s517 = scalar_lea.sflag [#allocation10], %s516
        %s518 = sand.u32 %s310, 1
        %s519 = smul.addr %s518, 128
        %s520 = scalar_lea.vmem [#allocation9], %s519
        %s521 = smul.u32 16, %s39
        %s522 = smul.u32 %s39, 8
        %s523 = ssub.s32 %s522, 1
        %p524 = scmp.gt.s32.totalorder %s523, 0
        %s525 = scalar_select %p524, %s523, 0
        %s526 = smul.u32 2, %s525
        %s527 = smul.u32 %s39, 8
        %s528 = sadd.s32 %s527, 8
        %p529 = scmp.lt.s32.totalorder %s528, 7
        %s530 = scalar_select %p529, %s528, 7
        %s531 = smul.u32 2, %s530
        %s532 = smul.u32 16, %s39
        %s533 = smul.u32 16, %s39
        %p535 = scmp.gt.s32.totalorder %s39, 0
        %v536 = vld [vmem:[%s460] sm:$0xf]
        %v537 = vld [vmem:[%s460 + $0x4] sm:$0xf]
        %v538 = vld [vmem:[%s460 + $0x8] sm:$0xf]
        %v539 = vld [vmem:[%s460 + $0xc] sm:$0xf]
        %s540 = scalar_select %p535, 1, 0
        %v541 = vstv %s540
        %vm542 = vcmp.eq.s32.totalorder %v541, 1
        %v543 = vsel %vm542, %v536, 0
        %v544 = vsel %vm542, %v537, 0
        %v545 = vsel %vm542, %v538, 0
        %v546 = vsel %vm542, %v539, 0
        %p547 = scmp.lt.s32.totalorder %s39, 0
        %v548 = vld [vmem:[%s469] sm:$0xf]
        %v549 = vld [vmem:[%s469 + $0x4] sm:$0xf]
        %v550 = vld [vmem:[%s469 + $0x8] sm:$0xf]
        %v551 = vld [vmem:[%s469 + $0xc] sm:$0xf]
        %s552 = scalar_select %p547, 1, 0
        %v553 = vstv %s552
        %vm554 = vcmp.eq.s32.totalorder %v553, 1
        %v555 = vsel %vm554, %v548, 0
        %v556 = vsel %vm554, %v549, 0
        %v557 = vsel %vm554, %v550, 0
        %v558 = vsel %vm554, %v551, 0
        %v559 = vld [vmem:[%s451] sm:$0xf]
        %v560 = vld [vmem:[%s451 + $0x4] sm:$0xf]
        %v561 = vld [vmem:[%s451 + $0x8] sm:$0xf]
        %v562 = vld [vmem:[%s451 + $0xc] sm:$0xf]
        %v563 = vld [vmem:[%s451 + $0x10] sm:$0xf]
        %v564 = vld [vmem:[%s451 + $0x14] sm:$0xf]
        %v565 = vld [vmem:[%s451 + $0x18] sm:$0xf]
        %v566 = vld [vmem:[%s451 + $0x1c] sm:$0xf]
        %v567 = vld [vmem:[%s451 + $0x20] sm:$0xf]
        %v568 = vld [vmem:[%s451 + $0x24] sm:$0xf]
        %v569 = vld [vmem:[%s451 + $0x28] sm:$0xf]
        %v570 = vld [vmem:[%s451 + $0x2c] sm:$0xf]
        %v571 = vld [vmem:[%s451 + $0x30] sm:$0xf]
        %v572 = vld [vmem:[%s451 + $0x34] sm:$0xf]
        %v573 = vld [vmem:[%s451 + $0x38] sm:$0xf]
        %v574 = vld [vmem:[%s451 + $0x3c] sm:$0xf]
        %v575 = vld [vmem:[%s451 + $0x40] sm:$0xf]
        %v576 = vld [vmem:[%s451 + $0x44] sm:$0xf]
        %v577 = vld [vmem:[%s451 + $0x48] sm:$0xf]
        %v578 = vld [vmem:[%s451 + $0x4c] sm:$0xf]
        %v579 = vld [vmem:[%s451 + $0x50] sm:$0xf]
        %v580 = vld [vmem:[%s451 + $0x54] sm:$0xf]
        %v581 = vld [vmem:[%s451 + $0x58] sm:$0xf]
        %v582 = vld [vmem:[%s451 + $0x5c] sm:$0xf]
        %v583 = vld [vmem:[%s451 + $0x60] sm:$0xf]
        %v584 = vld [vmem:[%s451 + $0x64] sm:$0xf]
        %v585 = vld [vmem:[%s451 + $0x68] sm:$0xf]
        %v586 = vld [vmem:[%s451 + $0x6c] sm:$0xf]
        %v587 = vld [vmem:[%s451 + $0x70] sm:$0xf]
        %v588 = vld [vmem:[%s451 + $0x74] sm:$0xf]
        %v589 = vld [vmem:[%s451 + $0x78] sm:$0xf]
        %v590 = vld [vmem:[%s451 + $0x7c] sm:$0xf]
        %v591 = vunpack.c.l.bf16 %v543
        %v592 = vunpack.c.l.bf16 %v544
        %v593 = vunpack.c.l.bf16 %v545
        %v594 = vunpack.c.l.bf16 %v546
        %v595 = vunpack.c.l.bf16 %v559
        %v596 = vunpack.c.l.bf16 %v560
        %v597 = vunpack.c.l.bf16 %v561
        %v598 = vunpack.c.l.bf16 %v562
        %v599 = vunpack.c.l.bf16 %v563
        %v600 = vunpack.c.l.bf16 %v564
        %v601 = vunpack.c.l.bf16 %v565
        %v602 = vunpack.c.l.bf16 %v566
        %v603 = vunpack.c.l.bf16 %v567
        %v604 = vunpack.c.l.bf16 %v568
        %v605 = vunpack.c.l.bf16 %v569
        %v606 = vunpack.c.l.bf16 %v570
        %v607 = vunpack.c.l.bf16 %v571
        %v608 = vunpack.c.l.bf16 %v572
        %v609 = vunpack.c.l.bf16 %v573
        %v610 = vunpack.c.l.bf16 %v574
        %v611 = vunpack.c.l.bf16 %v575
        %v612 = vunpack.c.l.bf16 %v576
        %v613 = vunpack.c.l.bf16 %v577
        %v614 = vunpack.c.l.bf16 %v578
        %v615 = vunpack.c.l.bf16 %v579
        %v616 = vunpack.c.l.bf16 %v580
        %v617 = vunpack.c.l.bf16 %v581
        %v618 = vunpack.c.l.bf16 %v582
        %v619 = vunpack.c.l.bf16 %v583
        %v620 = vunpack.c.l.bf16 %v584
        %v621 = vunpack.c.l.bf16 %v585
        %v622 = vunpack.c.l.bf16 %v586
        %v623 = vunpack.c.l.bf16 %v587
        %v624 = vunpack.c.l.bf16 %v588
        %v625 = vunpack.c.l.bf16 %v589
        %v626 = vunpack.c.l.bf16 %v590
        %v627 = vunpack.c.l.bf16 %v555
        %v628 = vunpack.c.l.bf16 %v556
        %v629 = vunpack.c.l.bf16 %v557
        %v630 = vunpack.c.l.bf16 %v558
        %v631 = vlaneseq
        %v632 = vshrl.u32 %v631, 7
        %v633 = vadd.s32 %v632, 8
        %v634 = vrot.slane %v591, 7
        %v635 = vrot.slane %v593, 7
        %v636 = vrot.slane %v595, 7
        %v637 = vrot.slane %v597, 7
        %v638 = vrot.slane %v599, 7
        %v639 = vrot.slane %v601, 7
        %v640 = vrot.slane %v603, 7
        %v641 = vrot.slane %v605, 7
        %v642 = vrot.slane %v607, 7
        %v643 = vrot.slane %v609, 7
        %v644 = vrot.slane %v611, 7
        %v645 = vrot.slane %v613, 7
        %v646 = vrot.slane %v615, 7
        %v647 = vrot.slane %v617, 7
        %v648 = vrot.slane %v619, 7
        %v649 = vrot.slane %v621, 7
        %v650 = vrot.slane %v623, 7
        %v651 = vrot.slane %v625, 7
        %v652 = vrot.slane %v627, 7
        %v653 = vrot.slane %v629, 7
        %v654 = vrot.slane %v592, 7
        %v655 = vrot.slane %v594, 7
        %v656 = vrot.slane %v596, 7
        %v657 = vrot.slane %v598, 7
        %v658 = vrot.slane %v600, 7
        %v659 = vrot.slane %v602, 7
        %v660 = vrot.slane %v604, 7
        %v661 = vrot.slane %v606, 7
        %v662 = vrot.slane %v608, 7
        %v663 = vrot.slane %v610, 7
        %v664 = vrot.slane %v612, 7
        %v665 = vrot.slane %v614, 7
        %v666 = vrot.slane %v616, 7
        %v667 = vrot.slane %v618, 7
        %v668 = vrot.slane %v620, 7
        %v669 = vrot.slane %v622, 7
        %v670 = vrot.slane %v624, 7
        %v671 = vrot.slane %v626, 7
        %v672 = vrot.slane %v628, 7
        %v673 = vrot.slane %v630, 7
        %vm674 = vcmp.lt.s32.totalorder %v632, 1
        %v675 = vsel %vm674, %v634, %v654
        %v676 = vsel %vm674, %v635, %v655
        %v677 = vsel %vm674, %v636, %v656
        %v678 = vsel %vm674, %v637, %v657
        %v679 = vsel %vm674, %v638, %v658
        %v680 = vsel %vm674, %v639, %v659
        %v681 = vsel %vm674, %v640, %v660
        %v682 = vsel %vm674, %v641, %v661
        %v683 = vsel %vm674, %v642, %v662
        %v684 = vsel %vm674, %v643, %v663
        %v685 = vsel %vm674, %v644, %v664
        %v686 = vsel %vm674, %v645, %v665
        %v687 = vsel %vm674, %v646, %v666
        %v688 = vsel %vm674, %v647, %v667
        %v689 = vsel %vm674, %v648, %v668
        %v690 = vsel %vm674, %v649, %v669
        %v691 = vsel %vm674, %v650, %v670
        %v692 = vsel %vm674, %v651, %v671
        %v693 = vsel %vm674, %v652, %v672
        %v694 = vsel %vm674, %v653, %v673
        %v695 = vsel %vm674, %v654, %v634
        %v696 = vsel %vm674, %v655, %v635
        %v697 = vsel %vm674, %v656, %v636
        %v698 = vsel %vm674, %v657, %v637
        %v699 = vsel %vm674, %v658, %v638
        %v700 = vsel %vm674, %v659, %v639
        %v701 = vsel %vm674, %v660, %v640
        %v702 = vsel %vm674, %v661, %v641
        %v703 = vsel %vm674, %v662, %v642
        %v704 = vsel %vm674, %v663, %v643
        %v705 = vsel %vm674, %v664, %v644
        %v706 = vsel %vm674, %v665, %v645
        %v707 = vsel %vm674, %v666, %v646
        %v708 = vsel %vm674, %v667, %v647
        %v709 = vsel %vm674, %v668, %v648
        %v710 = vsel %vm674, %v669, %v649
        %v711 = vsel %vm674, %v670, %v650
        %v712 = vsel %vm674, %v671, %v651
        %v713 = vsel %vm674, %v672, %v652
        %v714 = vsel %vm674, %v673, %v653
        %vm715 = vcmp.eq.s32.totalorder %v632, 0
        %vm716 = vcmp.eq.s32.totalorder %v633, 0
        %v717 = vsel %vm715, 1, 0
        %v718 = vsel %vm716, 1, 0
        %vm719 = vcmp.eq.s32.totalorder %v717, 1
        %vm720 = vcmp.eq.s32.totalorder %v718, 1
        %v721 = vsel %vm719, 0.0, %v695
        %v722 = vsel %vm720, 0.0, %v675
        %v723 = vsel %vm719, 0.0, %v696
        %v724 = vsel %vm720, 0.0, %v676
        %v725 = vsel %vm719, 0.0, %v697
        %v726 = vsel %vm720, 0.0, %v677
        %v727 = vsel %vm719, 0.0, %v698
        %v728 = vsel %vm720, 0.0, %v678
        %v729 = vsel %vm719, 0.0, %v699
        %v730 = vsel %vm720, 0.0, %v679
        %v731 = vsel %vm719, 0.0, %v700
        %v732 = vsel %vm720, 0.0, %v680
        %v733 = vsel %vm719, 0.0, %v701
        %v734 = vsel %vm720, 0.0, %v681
        %v735 = vsel %vm719, 0.0, %v702
        %v736 = vsel %vm720, 0.0, %v682
        %v737 = vsel %vm719, 0.0, %v703
        %v738 = vsel %vm720, 0.0, %v683
        %v739 = vsel %vm719, 0.0, %v704
        %v740 = vsel %vm720, 0.0, %v684
        %v741 = vsel %vm719, 0.0, %v705
        %v742 = vsel %vm720, 0.0, %v685
        %v743 = vsel %vm719, 0.0, %v706
        %v744 = vsel %vm720, 0.0, %v686
        %v745 = vsel %vm719, 0.0, %v707
        %v746 = vsel %vm720, 0.0, %v687
        %v747 = vsel %vm719, 0.0, %v708
        %v748 = vsel %vm720, 0.0, %v688
        %v749 = vsel %vm719, 0.0, %v709
        %v750 = vsel %vm720, 0.0, %v689
        %v751 = vsel %vm719, 0.0, %v710
        %v752 = vsel %vm720, 0.0, %v690
        %v753 = vsel %vm719, 0.0, %v711
        %v754 = vsel %vm720, 0.0, %v691
        %v755 = vsel %vm719, 0.0, %v712
        %v756 = vsel %vm720, 0.0, %v692
        %v757 = vsel %vm719, 0.0, %v713
        %v758 = vsel %vm720, 0.0, %v693
        %v759 = vsel %vm719, 0.0, %v714
        %v760 = vsel %vm720, 0.0, %v694
        %v761 = vpack.c.bf16 %v722, %v721
        %v762 = vpack.c.bf16 %v724, %v723
        %v763 = vpack.c.bf16 %v726, %v725
        %v764 = vpack.c.bf16 %v728, %v727
        %v765 = vpack.c.bf16 %v730, %v729
        %v766 = vpack.c.bf16 %v732, %v731
        %v767 = vpack.c.bf16 %v734, %v733
        %v768 = vpack.c.bf16 %v736, %v735
        %v769 = vpack.c.bf16 %v738, %v737
        %v770 = vpack.c.bf16 %v740, %v739
        %v771 = vpack.c.bf16 %v742, %v741
        %v772 = vpack.c.bf16 %v744, %v743
        %v773 = vpack.c.bf16 %v746, %v745
        %v774 = vpack.c.bf16 %v748, %v747
        %v775 = vpack.c.bf16 %v750, %v749
        %v776 = vpack.c.bf16 %v752, %v751
        %v777 = vpack.c.bf16 %v754, %v753
        %v778 = vpack.c.bf16 %v756, %v755
        %v779 = vpack.c.bf16 %v758, %v757
        %v780 = vpack.c.bf16 %v760, %v759
        %v781 = vpack.c.bf16 %v592, %v591
        %v782 = vpack.c.bf16 %v594, %v593
        %v783 = vpack.c.bf16 %v596, %v595
        %v784 = vpack.c.bf16 %v598, %v597
        %v785 = vpack.c.bf16 %v600, %v599
        %v786 = vpack.c.bf16 %v602, %v601
        %v787 = vpack.c.bf16 %v604, %v603
        %v788 = vpack.c.bf16 %v606, %v605
        %v789 = vpack.c.bf16 %v608, %v607
        %v790 = vpack.c.bf16 %v610, %v609
        %v791 = vpack.c.bf16 %v612, %v611
        %v792 = vpack.c.bf16 %v614, %v613
        %v793 = vpack.c.bf16 %v616, %v615
        %v794 = vpack.c.bf16 %v618, %v617
        %v795 = vpack.c.bf16 %v620, %v619
        %v796 = vpack.c.bf16 %v622, %v621
        %v797 = vpack.c.bf16 %v624, %v623
        %v798 = vpack.c.bf16 %v626, %v625
        %v799 = vpack.c.bf16 %v628, %v627
        %v800 = vpack.c.bf16 %v630, %v629
        %v801 = vrot.slane %v591, 1
        %v802 = vrot.slane %v593, 1
        %v803 = vrot.slane %v595, 1
        %v804 = vrot.slane %v597, 1
        %v805 = vrot.slane %v599, 1
        %v806 = vrot.slane %v601, 1
        %v807 = vrot.slane %v603, 1
        %v808 = vrot.slane %v605, 1
        %v809 = vrot.slane %v607, 1
        %v810 = vrot.slane %v609, 1
        %v811 = vrot.slane %v611, 1
        %v812 = vrot.slane %v613, 1
        %v813 = vrot.slane %v615, 1
        %v814 = vrot.slane %v617, 1
        %v815 = vrot.slane %v619, 1
        %v816 = vrot.slane %v621, 1
        %v817 = vrot.slane %v623, 1
        %v818 = vrot.slane %v625, 1
        %v819 = vrot.slane %v627, 1
        %v820 = vrot.slane %v629, 1
        %v821 = vrot.slane %v592, 1
        %v822 = vrot.slane %v594, 1
        %v823 = vrot.slane %v596, 1
        %v824 = vrot.slane %v598, 1
        %v825 = vrot.slane %v600, 1
        %v826 = vrot.slane %v602, 1
        %v827 = vrot.slane %v604, 1
        %v828 = vrot.slane %v606, 1
        %v829 = vrot.slane %v608, 1
        %v830 = vrot.slane %v610, 1
        %v831 = vrot.slane %v612, 1
        %v832 = vrot.slane %v614, 1
        %v833 = vrot.slane %v616, 1
        %v834 = vrot.slane %v618, 1
        %v835 = vrot.slane %v620, 1
        %v836 = vrot.slane %v622, 1
        %v837 = vrot.slane %v624, 1
        %v838 = vrot.slane %v626, 1
        %v839 = vrot.slane %v628, 1
        %v840 = vrot.slane %v630, 1
        %vm841 = vcmp.lt.s32.totalorder %v632, 7
        %v842 = vsel %vm841, %v801, %v821
        %v843 = vsel %vm841, %v802, %v822
        %v844 = vsel %vm841, %v803, %v823
        %v845 = vsel %vm841, %v804, %v824
        %v846 = vsel %vm841, %v805, %v825
        %v847 = vsel %vm841, %v806, %v826
        %v848 = vsel %vm841, %v807, %v827
        %v849 = vsel %vm841, %v808, %v828
        %v850 = vsel %vm841, %v809, %v829
        %v851 = vsel %vm841, %v810, %v830
        %v852 = vsel %vm841, %v811, %v831
        %v853 = vsel %vm841, %v812, %v832
        %v854 = vsel %vm841, %v813, %v833
        %v855 = vsel %vm841, %v814, %v834
        %v856 = vsel %vm841, %v815, %v835
        %v857 = vsel %vm841, %v816, %v836
        %v858 = vsel %vm841, %v817, %v837
        %v859 = vsel %vm841, %v818, %v838
        %v860 = vsel %vm841, %v819, %v839
        %v861 = vsel %vm841, %v820, %v840
        %v862 = vsel %vm841, %v821, %v801
        %v863 = vsel %vm841, %v822, %v802
        %v864 = vsel %vm841, %v823, %v803
        %v865 = vsel %vm841, %v824, %v804
        %v866 = vsel %vm841, %v825, %v805
        %v867 = vsel %vm841, %v826, %v806
        %v868 = vsel %vm841, %v827, %v807
        %v869 = vsel %vm841, %v828, %v808
        %v870 = vsel %vm841, %v829, %v809
        %v871 = vsel %vm841, %v830, %v810
        %v872 = vsel %vm841, %v831, %v811
        %v873 = vsel %vm841, %v832, %v812
        %v874 = vsel %vm841, %v833, %v813
        %v875 = vsel %vm841, %v834, %v814
        %v876 = vsel %vm841, %v835, %v815
        %v877 = vsel %vm841, %v836, %v816
        %v878 = vsel %vm841, %v837, %v817
        %v879 = vsel %vm841, %v838, %v818
        %v880 = vsel %vm841, %v839, %v819
        %v881 = vsel %vm841, %v840, %v820
        %vm882 = vcmp.eq.s32.totalorder %v632, 15
        %vm883 = vcmp.eq.s32.totalorder %v633, 15
        %v884 = vsel %vm882, 1, 0
        %v885 = vsel %vm883, 1, 0
        %vm886 = vcmp.eq.s32.totalorder %v884, 1
        %vm887 = vcmp.eq.s32.totalorder %v885, 1
        %v888 = vsel %vm886, 0.0, %v842
        %v889 = vsel %vm887, 0.0, %v862
        %v890 = vsel %vm886, 0.0, %v843
        %v891 = vsel %vm887, 0.0, %v863
        %v892 = vsel %vm886, 0.0, %v844
        %v893 = vsel %vm887, 0.0, %v864
        %v894 = vsel %vm886, 0.0, %v845
        %v895 = vsel %vm887, 0.0, %v865
        %v896 = vsel %vm886, 0.0, %v846
        %v897 = vsel %vm887, 0.0, %v866
        %v898 = vsel %vm886, 0.0, %v847
        %v899 = vsel %vm887, 0.0, %v867
        %v900 = vsel %vm886, 0.0, %v848
        %v901 = vsel %vm887, 0.0, %v868
        %v902 = vsel %vm886, 0.0, %v849
        %v903 = vsel %vm887, 0.0, %v869
        %v904 = vsel %vm886, 0.0, %v850
        %v905 = vsel %vm887, 0.0, %v870
        %v906 = vsel %vm886, 0.0, %v851
        %v907 = vsel %vm887, 0.0, %v871
        %v908 = vsel %vm886, 0.0, %v852
        %v909 = vsel %vm887, 0.0, %v872
        %v910 = vsel %vm886, 0.0, %v853
        %v911 = vsel %vm887, 0.0, %v873
        %v912 = vsel %vm886, 0.0, %v854
        %v913 = vsel %vm887, 0.0, %v874
        %v914 = vsel %vm886, 0.0, %v855
        %v915 = vsel %vm887, 0.0, %v875
        %v916 = vsel %vm886, 0.0, %v856
        %v917 = vsel %vm887, 0.0, %v876
        %v918 = vsel %vm886, 0.0, %v857
        %v919 = vsel %vm887, 0.0, %v877
        %v920 = vsel %vm886, 0.0, %v858
        %v921 = vsel %vm887, 0.0, %v878
        %v922 = vsel %vm886, 0.0, %v859
        %v923 = vsel %vm887, 0.0, %v879
        %v924 = vsel %vm886, 0.0, %v860
        %v925 = vsel %vm887, 0.0, %v880
        %v926 = vsel %vm886, 0.0, %v861
        %v927 = vsel %vm887, 0.0, %v881
        %v928 = vpack.c.bf16 %v889, %v888
        %v929 = vpack.c.bf16 %v891, %v890
        %v930 = vpack.c.bf16 %v893, %v892
        %v931 = vpack.c.bf16 %v895, %v894
        %v932 = vpack.c.bf16 %v897, %v896
        %v933 = vpack.c.bf16 %v899, %v898
        %v934 = vpack.c.bf16 %v901, %v900
        %v935 = vpack.c.bf16 %v903, %v902
        %v936 = vpack.c.bf16 %v905, %v904
        %v937 = vpack.c.bf16 %v907, %v906
        %v938 = vpack.c.bf16 %v909, %v908
        %v939 = vpack.c.bf16 %v911, %v910
        %v940 = vpack.c.bf16 %v913, %v912
        %v941 = vpack.c.bf16 %v915, %v914
        %v942 = vpack.c.bf16 %v917, %v916
        %v943 = vpack.c.bf16 %v919, %v918
        %v944 = vpack.c.bf16 %v921, %v920
        %v945 = vpack.c.bf16 %v923, %v922
        %v946 = vpack.c.bf16 %v925, %v924
        %v947 = vpack.c.bf16 %v927, %v926
        %966 = vrot.lane.b32.xlu0 %v762, 16
        %v967 = vpop.permute.xlu0 %966
        %968 = vrot.lane.b32.xlu0 %v763, 16
        %v969 = vpop.permute.xlu0 %968
        %970 = vrot.lane.b32.xlu0 %v764, 16
        %v971 = vpop.permute.xlu0 %970
        %972 = vrot.lane.b32.xlu0 %v765, 16
        %v973 = vpop.permute.xlu0 %972
        %974 = vrot.lane.b32.xlu0 %v766, 16
        %v975 = vpop.permute.xlu0 %974
        %976 = vrot.lane.b32.xlu0 %v767, 16
        %v977 = vpop.permute.xlu0 %976
        %978 = vrot.lane.b32.xlu0 %v768, 16
        %v979 = vpop.permute.xlu0 %978
        %980 = vrot.lane.b32.xlu0 %v769, 16
        %v981 = vpop.permute.xlu0 %980
        %982 = vrot.lane.b32.xlu0 %v770, 16
        %v983 = vpop.permute.xlu0 %982
        %984 = vrot.lane.b32.xlu0 %v771, 16
        %v985 = vpop.permute.xlu0 %984
        %986 = vrot.lane.b32.xlu0 %v772, 16
        %v987 = vpop.permute.xlu0 %986
        %988 = vrot.lane.b32.xlu0 %v773, 16
        %v989 = vpop.permute.xlu0 %988
        %990 = vrot.lane.b32.xlu0 %v774, 16
        %v991 = vpop.permute.xlu0 %990
        %992 = vrot.lane.b32.xlu0 %v775, 16
        %v993 = vpop.permute.xlu0 %992
        %994 = vrot.lane.b32.xlu0 %v776, 16
        %v995 = vpop.permute.xlu0 %994
        %996 = vrot.lane.b32.xlu0 %v777, 16
        %v997 = vpop.permute.xlu0 %996
        %998 = vrot.lane.b32.xlu0 %v778, 16
        %v999 = vpop.permute.xlu0 %998
        %1000 = vrot.lane.b32.xlu0 %v779, 16
        %v1001 = vpop.permute.xlu0 %1000
        %1003 = vrot.lane.b32.xlu0 %v763, 32
        %v1004 = vpop.permute.xlu0 %1003
        %1005 = vrot.lane.b32.xlu0 %v764, 32
        %v1006 = vpop.permute.xlu0 %1005
        %1007 = vrot.lane.b32.xlu0 %v765, 32
        %v1008 = vpop.permute.xlu0 %1007
        %1009 = vrot.lane.b32.xlu0 %v766, 32
        %v1010 = vpop.permute.xlu0 %1009
        %1011 = vrot.lane.b32.xlu0 %v767, 32
        %v1012 = vpop.permute.xlu0 %1011
        %1013 = vrot.lane.b32.xlu0 %v768, 32
        %v1014 = vpop.permute.xlu0 %1013
        %1015 = vrot.lane.b32.xlu0 %v769, 32
        %v1016 = vpop.permute.xlu0 %1015
        %1017 = vrot.lane.b32.xlu0 %v770, 32
        %v1018 = vpop.permute.xlu0 %1017
        %1019 = vrot.lane.b32.xlu0 %v771, 32
        %v1020 = vpop.permute.xlu0 %1019
        %1021 = vrot.lane.b32.xlu0 %v772, 32
        %v1022 = vpop.permute.xlu0 %1021
        %1023 = vrot.lane.b32.xlu0 %v773, 32
        %v1024 = vpop.permute.xlu0 %1023
        %1025 = vrot.lane.b32.xlu0 %v774, 32
        %v1026 = vpop.permute.xlu0 %1025
        %1027 = vrot.lane.b32.xlu0 %v775, 32
        %v1028 = vpop.permute.xlu0 %1027
        %1029 = vrot.lane.b32.xlu0 %v776, 32
        %v1030 = vpop.permute.xlu0 %1029
        %1031 = vrot.lane.b32.xlu0 %v777, 32
        %v1032 = vpop.permute.xlu0 %1031
        %1033 = vrot.lane.b32.xlu0 %v778, 32
        %v1034 = vpop.permute.xlu0 %1033
        %1035 = vrot.lane.b32.xlu0 %v779, 32
        %v1036 = vpop.permute.xlu0 %1035
        %1037 = vrot.lane.b32.xlu0 %v780, 32
        %v1038 = vpop.permute.xlu0 %1037
        %1057 = vrot.lane.b32.xlu0 %v781, 48
        %v1058 = vpop.permute.xlu0 %1057
        %1059 = vrot.lane.b32.xlu0 %v782, 48
        %v1060 = vpop.permute.xlu0 %1059
        %1061 = vrot.lane.b32.xlu0 %v783, 48
        %v1062 = vpop.permute.xlu0 %1061
        %1063 = vrot.lane.b32.xlu0 %v784, 48
        %v1064 = vpop.permute.xlu0 %1063
        %1065 = vrot.lane.b32.xlu0 %v785, 48
        %v1066 = vpop.permute.xlu0 %1065
        %1067 = vrot.lane.b32.xlu0 %v786, 48
        %v1068 = vpop.permute.xlu0 %1067
        %1069 = vrot.lane.b32.xlu0 %v787, 48
        %v1070 = vpop.permute.xlu0 %1069
        %1071 = vrot.lane.b32.xlu0 %v788, 48
        %v1072 = vpop.permute.xlu0 %1071
        %1073 = vrot.lane.b32.xlu0 %v789, 48
        %v1074 = vpop.permute.xlu0 %1073
        %1075 = vrot.lane.b32.xlu0 %v790, 48
        %v1076 = vpop.permute.xlu0 %1075
        %1077 = vrot.lane.b32.xlu0 %v791, 48
        %v1078 = vpop.permute.xlu0 %1077
        %1079 = vrot.lane.b32.xlu0 %v792, 48
        %v1080 = vpop.permute.xlu0 %1079
        %1081 = vrot.lane.b32.xlu0 %v793, 48
        %v1082 = vpop.permute.xlu0 %1081
        %1083 = vrot.lane.b32.xlu0 %v794, 48
        %v1084 = vpop.permute.xlu0 %1083
        %1085 = vrot.lane.b32.xlu0 %v795, 48
        %v1086 = vpop.permute.xlu0 %1085
        %1087 = vrot.lane.b32.xlu0 %v796, 48
        %v1088 = vpop.permute.xlu0 %1087
        %1089 = vrot.lane.b32.xlu0 %v797, 48
        %v1090 = vpop.permute.xlu0 %1089
        %1091 = vrot.lane.b32.xlu0 %v798, 48
        %v1092 = vpop.permute.xlu0 %1091
        %1094 = vrot.lane.b32.xlu0 %v782, 64
        %v1095 = vpop.permute.xlu0 %1094
        %1096 = vrot.lane.b32.xlu0 %v783, 64
        %v1097 = vpop.permute.xlu0 %1096
        %1098 = vrot.lane.b32.xlu0 %v784, 64
        %v1099 = vpop.permute.xlu0 %1098
        %1100 = vrot.lane.b32.xlu0 %v785, 64
        %v1101 = vpop.permute.xlu0 %1100
        %1102 = vrot.lane.b32.xlu0 %v786, 64
        %v1103 = vpop.permute.xlu0 %1102
        %1104 = vrot.lane.b32.xlu0 %v787, 64
        %v1105 = vpop.permute.xlu0 %1104
        %1106 = vrot.lane.b32.xlu0 %v788, 64
        %v1107 = vpop.permute.xlu0 %1106
        %1108 = vrot.lane.b32.xlu0 %v789, 64
        %v1109 = vpop.permute.xlu0 %1108
        %1110 = vrot.lane.b32.xlu0 %v790, 64
        %v1111 = vpop.permute.xlu0 %1110
        %1112 = vrot.lane.b32.xlu0 %v791, 64
        %v1113 = vpop.permute.xlu0 %1112
        %1114 = vrot.lane.b32.xlu0 %v792, 64
        %v1115 = vpop.permute.xlu0 %1114
        %1116 = vrot.lane.b32.xlu0 %v793, 64
        %v1117 = vpop.permute.xlu0 %1116
        %1118 = vrot.lane.b32.xlu0 %v794, 64
        %v1119 = vpop.permute.xlu0 %1118
        %1120 = vrot.lane.b32.xlu0 %v795, 64
        %v1121 = vpop.permute.xlu0 %1120
        %1122 = vrot.lane.b32.xlu0 %v796, 64
        %v1123 = vpop.permute.xlu0 %1122
        %1124 = vrot.lane.b32.xlu0 %v797, 64
        %v1125 = vpop.permute.xlu0 %1124
        %1126 = vrot.lane.b32.xlu0 %v798, 64
        %v1127 = vpop.permute.xlu0 %1126
        %1128 = vrot.lane.b32.xlu0 %v799, 64
        %v1129 = vpop.permute.xlu0 %1128
        %1131 = vrot.lane.b32.xlu0 %v783, 80
        %v1132 = vpop.permute.xlu0 %1131
        %1133 = vrot.lane.b32.xlu0 %v784, 80
        %v1134 = vpop.permute.xlu0 %1133
        %1135 = vrot.lane.b32.xlu0 %v785, 80
        %v1136 = vpop.permute.xlu0 %1135
        %1137 = vrot.lane.b32.xlu0 %v786, 80
        %v1138 = vpop.permute.xlu0 %1137
        %1139 = vrot.lane.b32.xlu0 %v787, 80
        %v1140 = vpop.permute.xlu0 %1139
        %1141 = vrot.lane.b32.xlu0 %v788, 80
        %v1142 = vpop.permute.xlu0 %1141
        %1143 = vrot.lane.b32.xlu0 %v789, 80
        %v1144 = vpop.permute.xlu0 %1143
        %1145 = vrot.lane.b32.xlu0 %v790, 80
        %v1146 = vpop.permute.xlu0 %1145
        %1147 = vrot.lane.b32.xlu0 %v791, 80
        %v1148 = vpop.permute.xlu0 %1147
        %1149 = vrot.lane.b32.xlu0 %v792, 80
        %v1150 = vpop.permute.xlu0 %1149
        %1151 = vrot.lane.b32.xlu0 %v793, 80
        %v1152 = vpop.permute.xlu0 %1151
        %1153 = vrot.lane.b32.xlu0 %v794, 80
        %v1154 = vpop.permute.xlu0 %1153
        %1155 = vrot.lane.b32.xlu0 %v795, 80
        %v1156 = vpop.permute.xlu0 %1155
        %1157 = vrot.lane.b32.xlu0 %v796, 80
        %v1158 = vpop.permute.xlu0 %1157
        %1159 = vrot.lane.b32.xlu0 %v797, 80
        %v1160 = vpop.permute.xlu0 %1159
        %1161 = vrot.lane.b32.xlu0 %v798, 80
        %v1162 = vpop.permute.xlu0 %1161
        %1163 = vrot.lane.b32.xlu0 %v799, 80
        %v1164 = vpop.permute.xlu0 %1163
        %1165 = vrot.lane.b32.xlu0 %v800, 80
        %v1166 = vpop.permute.xlu0 %1165
        %1185 = vrot.lane.b32.xlu0 %v928, 96
        %v1186 = vpop.permute.xlu0 %1185
        %1187 = vrot.lane.b32.xlu0 %v929, 96
        %v1188 = vpop.permute.xlu0 %1187
        %1189 = vrot.lane.b32.xlu0 %v930, 96
        %v1190 = vpop.permute.xlu0 %1189
        %1191 = vrot.lane.b32.xlu0 %v931, 96
        %v1192 = vpop.permute.xlu0 %1191
        %1193 = vrot.lane.b32.xlu0 %v932, 96
        %v1194 = vpop.permute.xlu0 %1193
        %1195 = vrot.lane.b32.xlu0 %v933, 96
        %v1196 = vpop.permute.xlu0 %1195
        %1197 = vrot.lane.b32.xlu0 %v934, 96
        %v1198 = vpop.permute.xlu0 %1197
        %1199 = vrot.lane.b32.xlu0 %v935, 96
        %v1200 = vpop.permute.xlu0 %1199
        %1201 = vrot.lane.b32.xlu0 %v936, 96
        %v1202 = vpop.permute.xlu0 %1201
        %1203 = vrot.lane.b32.xlu0 %v937, 96
        %v1204 = vpop.permute.xlu0 %1203
        %1205 = vrot.lane.b32.xlu0 %v938, 96
        %v1206 = vpop.permute.xlu0 %1205
        %1207 = vrot.lane.b32.xlu0 %v939, 96
        %v1208 = vpop.permute.xlu0 %1207
        %1209 = vrot.lane.b32.xlu0 %v940, 96
        %v1210 = vpop.permute.xlu0 %1209
        %1211 = vrot.lane.b32.xlu0 %v941, 96
        %v1212 = vpop.permute.xlu0 %1211
        %1213 = vrot.lane.b32.xlu0 %v942, 96
        %v1214 = vpop.permute.xlu0 %1213
        %1215 = vrot.lane.b32.xlu0 %v943, 96
        %v1216 = vpop.permute.xlu0 %1215
        %1217 = vrot.lane.b32.xlu0 %v944, 96
        %v1218 = vpop.permute.xlu0 %1217
        %1219 = vrot.lane.b32.xlu0 %v945, 96
        %v1220 = vpop.permute.xlu0 %1219
        %1222 = vrot.lane.b32.xlu0 %v929, 112
        %v1223 = vpop.permute.xlu0 %1222
        %1224 = vrot.lane.b32.xlu0 %v930, 112
        %v1225 = vpop.permute.xlu0 %1224
        %1226 = vrot.lane.b32.xlu0 %v931, 112
        %v1227 = vpop.permute.xlu0 %1226
        %1228 = vrot.lane.b32.xlu0 %v932, 112
        %v1229 = vpop.permute.xlu0 %1228
        %1230 = vrot.lane.b32.xlu0 %v933, 112
        %v1231 = vpop.permute.xlu0 %1230
        %1232 = vrot.lane.b32.xlu0 %v934, 112
        %v1233 = vpop.permute.xlu0 %1232
        %1234 = vrot.lane.b32.xlu0 %v935, 112
        %v1235 = vpop.permute.xlu0 %1234
        %1236 = vrot.lane.b32.xlu0 %v936, 112
        %v1237 = vpop.permute.xlu0 %1236
        %1238 = vrot.lane.b32.xlu0 %v937, 112
        %v1239 = vpop.permute.xlu0 %1238
        %1240 = vrot.lane.b32.xlu0 %v938, 112
        %v1241 = vpop.permute.xlu0 %1240
        %1242 = vrot.lane.b32.xlu0 %v939, 112
        %v1243 = vpop.permute.xlu0 %1242
        %1244 = vrot.lane.b32.xlu0 %v940, 112
        %v1245 = vpop.permute.xlu0 %1244
        %1246 = vrot.lane.b32.xlu0 %v941, 112
        %v1247 = vpop.permute.xlu0 %1246
        %1248 = vrot.lane.b32.xlu0 %v942, 112
        %v1249 = vpop.permute.xlu0 %1248
        %1250 = vrot.lane.b32.xlu0 %v943, 112
        %v1251 = vpop.permute.xlu0 %1250
        %1252 = vrot.lane.b32.xlu0 %v944, 112
        %v1253 = vpop.permute.xlu0 %1252
        %1254 = vrot.lane.b32.xlu0 %v945, 112
        %v1255 = vpop.permute.xlu0 %1254
        %1256 = vrot.lane.b32.xlu0 %v946, 112
        %v1257 = vpop.permute.xlu0 %1256
        %vm1258 = vcmask 130048
        %v1261 = vsel %vm1258, %v761, %v967
        %v1264 = vsel %vm1258, %v762, %v969
        %v1267 = vsel %vm1258, %v763, %v971
        %v1270 = vsel %vm1258, %v764, %v973
        %v1273 = vsel %vm1258, %v765, %v975
        %v1276 = vsel %vm1258, %v766, %v977
        %v1279 = vsel %vm1258, %v767, %v979
        %v1282 = vsel %vm1258, %v768, %v981
        %v1285 = vsel %vm1258, %v769, %v983
        %v1288 = vsel %vm1258, %v770, %v985
        %v1291 = vsel %vm1258, %v771, %v987
        %v1294 = vsel %vm1258, %v772, %v989
        %v1297 = vsel %vm1258, %v773, %v991
        %v1300 = vsel %vm1258, %v774, %v993
        %v1303 = vsel %vm1258, %v775, %v995
        %v1306 = vsel %vm1258, %v776, %v997
        %v1309 = vsel %vm1258, %v777, %v999
        %v1312 = vsel %vm1258, %v778, %v1001
        %vm1313 = vcmask 261120
        %v1315 = vsel %vm1313, %v1261, %v1004
        %v1317 = vsel %vm1313, %v1264, %v1006
        %v1319 = vsel %vm1313, %v1267, %v1008
        %v1321 = vsel %vm1313, %v1270, %v1010
        %v1323 = vsel %vm1313, %v1273, %v1012
        %v1325 = vsel %vm1313, %v1276, %v1014
        %v1327 = vsel %vm1313, %v1279, %v1016
        %v1329 = vsel %vm1313, %v1282, %v1018
        %v1331 = vsel %vm1313, %v1285, %v1020
        %v1333 = vsel %vm1313, %v1288, %v1022
        %v1335 = vsel %vm1313, %v1291, %v1024
        %v1337 = vsel %vm1313, %v1294, %v1026
        %v1339 = vsel %vm1313, %v1297, %v1028
        %v1341 = vsel %vm1313, %v1300, %v1030
        %v1343 = vsel %vm1313, %v1303, %v1032
        %v1345 = vsel %vm1313, %v1306, %v1034
        %v1347 = vsel %vm1313, %v1309, %v1036
        %v1349 = vsel %vm1313, %v1312, %v1038
        %vm1350 = vcmask 392192
        %v1352 = vsel %vm1350, %v1315, %v1058
        %v1354 = vsel %vm1350, %v1317, %v1060
        %v1356 = vsel %vm1350, %v1319, %v1062
        %v1358 = vsel %vm1350, %v1321, %v1064
        %v1360 = vsel %vm1350, %v1323, %v1066
        %v1362 = vsel %vm1350, %v1325, %v1068
        %v1364 = vsel %vm1350, %v1327, %v1070
        %v1366 = vsel %vm1350, %v1329, %v1072
        %v1368 = vsel %vm1350, %v1331, %v1074
        %v1370 = vsel %vm1350, %v1333, %v1076
        %v1372 = vsel %vm1350, %v1335, %v1078
        %v1374 = vsel %vm1350, %v1337, %v1080
        %v1376 = vsel %vm1350, %v1339, %v1082
        %v1378 = vsel %vm1350, %v1341, %v1084
        %v1380 = vsel %vm1350, %v1343, %v1086
        %v1382 = vsel %vm1350, %v1345, %v1088
        %v1384 = vsel %vm1350, %v1347, %v1090
        %v1386 = vsel %vm1350, %v1349, %v1092
        %vm1387 = vcmask 523264
        %v1389 = vsel %vm1387, %v1352, %v1095
        %v1391 = vsel %vm1387, %v1354, %v1097
        %v1393 = vsel %vm1387, %v1356, %v1099
        %v1395 = vsel %vm1387, %v1358, %v1101
        %v1397 = vsel %vm1387, %v1360, %v1103
        %v1399 = vsel %vm1387, %v1362, %v1105
        %v1401 = vsel %vm1387, %v1364, %v1107
        %v1403 = vsel %vm1387, %v1366, %v1109
        %v1405 = vsel %vm1387, %v1368, %v1111
        %v1407 = vsel %vm1387, %v1370, %v1113
        %v1409 = vsel %vm1387, %v1372, %v1115
        %v1411 = vsel %vm1387, %v1374, %v1117
        %v1413 = vsel %vm1387, %v1376, %v1119
        %v1415 = vsel %vm1387, %v1378, %v1121
        %v1417 = vsel %vm1387, %v1380, %v1123
        %v1419 = vsel %vm1387, %v1382, %v1125
        %v1421 = vsel %vm1387, %v1384, %v1127
        %v1423 = vsel %vm1387, %v1386, %v1129
        %vm1424 = vcmask 654336
        %v1426 = vsel %vm1424, %v1389, %v1132
        %v1428 = vsel %vm1424, %v1391, %v1134
        %v1430 = vsel %vm1424, %v1393, %v1136
        %v1432 = vsel %vm1424, %v1395, %v1138
        %v1434 = vsel %vm1424, %v1397, %v1140
        %v1436 = vsel %vm1424, %v1399, %v1142
        %v1438 = vsel %vm1424, %v1401, %v1144
        %v1440 = vsel %vm1424, %v1403, %v1146
        %v1442 = vsel %vm1424, %v1405, %v1148
        %v1444 = vsel %vm1424, %v1407, %v1150
        %v1446 = vsel %vm1424, %v1409, %v1152
        %v1448 = vsel %vm1424, %v1411, %v1154
        %v1450 = vsel %vm1424, %v1413, %v1156
        %v1452 = vsel %vm1424, %v1415, %v1158
        %v1454 = vsel %vm1424, %v1417, %v1160
        %v1456 = vsel %vm1424, %v1419, %v1162
        %v1458 = vsel %vm1424, %v1421, %v1164
        %v1460 = vsel %vm1424, %v1423, %v1166
        %vm1461 = vcmask 785408
        %v1463 = vsel %vm1461, %v1426, %v1186
        %v1465 = vsel %vm1461, %v1428, %v1188
        %v1467 = vsel %vm1461, %v1430, %v1190
        %v1469 = vsel %vm1461, %v1432, %v1192
        %v1471 = vsel %vm1461, %v1434, %v1194
        %v1473 = vsel %vm1461, %v1436, %v1196
        %v1475 = vsel %vm1461, %v1438, %v1198
        %v1477 = vsel %vm1461, %v1440, %v1200
        %v1479 = vsel %vm1461, %v1442, %v1202
        %v1481 = vsel %vm1461, %v1444, %v1204
        %v1483 = vsel %vm1461, %v1446, %v1206
        %v1485 = vsel %vm1461, %v1448, %v1208
        %v1487 = vsel %vm1461, %v1450, %v1210
        %v1489 = vsel %vm1461, %v1452, %v1212
        %v1491 = vsel %vm1461, %v1454, %v1214
        %v1493 = vsel %vm1461, %v1456, %v1216
        %v1495 = vsel %vm1461, %v1458, %v1218
        %v1497 = vsel %vm1461, %v1460, %v1220
        %vm1498 = vcmask 916480
        %v1500 = vsel %vm1498, %v1463, %v1223
        %v1503 = vsel %vm1498, %v1465, %v1225
        %v1506 = vsel %vm1498, %v1467, %v1227
        %v1509 = vsel %vm1498, %v1469, %v1229
        %v1512 = vsel %vm1498, %v1471, %v1231
        %v1515 = vsel %vm1498, %v1473, %v1233
        %v1518 = vsel %vm1498, %v1475, %v1235
        %v1521 = vsel %vm1498, %v1477, %v1237
        %v1524 = vsel %vm1498, %v1479, %v1239
        %v1527 = vsel %vm1498, %v1481, %v1241
        %v1530 = vsel %vm1498, %v1483, %v1243
        %v1533 = vsel %vm1498, %v1485, %v1245
        %v1536 = vsel %vm1498, %v1487, %v1247
        %v1539 = vsel %vm1498, %v1489, %v1249
        %v1542 = vsel %vm1498, %v1491, %v1251
        %v1545 = vsel %vm1498, %v1493, %v1253
        %v1548 = vsel %vm1498, %v1495, %v1255
        %v1551 = vsel %vm1498, %v1497, %v1257
        %v1553 = vld [vmem:[%s3] sm:$0xf]
        %v1554 = vld [vmem:[%s3 + $0x4] sm:$0xf]
        %v1555 = vld [vmem:[%s3 + $0x8] sm:$0xf]
        %v1556 = vld [vmem:[%s3 + $0xc] sm:$0xf]
        %v1557 = vld [vmem:[%s3 + $0x10] sm:$0xf]
        %v1558 = vld [vmem:[%s3 + $0x14] sm:$0xf]
        %v1559 = vld [vmem:[%s3 + $0x18] sm:$0xf]
        %v1560 = vld [vmem:[%s3 + $0x1c] sm:$0xf]
        %v1561 = vld [vmem:[%s3 + $0x20] sm:$0xf]
        %v1562 = vld [vmem:[%s3 + $0x24] sm:$0xf]
        %v1563 = vld [vmem:[%s3 + $0x28] sm:$0xf]
        %v1564 = vld [vmem:[%s3 + $0x2c] sm:$0xf]
        %v1565 = vld [vmem:[%s3 + $0x30] sm:$0xf]
        %v1566 = vld [vmem:[%s3 + $0x34] sm:$0xf]
        %v1567 = vld [vmem:[%s3 + $0x38] sm:$0xf]
        %v1568 = vld [vmem:[%s3 + $0x3c] sm:$0xf]
        %v1569 = vld [vmem:[%s3 + $0x40] sm:$0xf]
        %v1570 = vld [vmem:[%s3 + $0x44] sm:$0xf]
        %v1589 = vunpack.c.l.b16 %v1553
        %v1590 = vunpack.c.l.b16 %v1554
        %v1591 = vunpack.c.l.b16 %v1555
        %v1592 = vunpack.c.l.b16 %v1556
        %v1593 = vunpack.c.l.b16 %v1557
        %v1594 = vunpack.c.l.b16 %v1558
        %v1595 = vunpack.c.l.b16 %v1559
        %v1596 = vunpack.c.l.b16 %v1560
        %v1597 = vunpack.c.l.b16 %v1561
        %v1598 = vunpack.c.l.b16 %v1562
        %v1599 = vunpack.c.l.b16 %v1563
        %v1600 = vunpack.c.l.b16 %v1564
        %v1601 = vunpack.c.l.b16 %v1565
        %v1602 = vunpack.c.l.b16 %v1566
        %v1603 = vunpack.c.l.b16 %v1567
        %v1604 = vunpack.c.l.b16 %v1568
        %v1605 = vunpack.c.l.b16 %v1569
        %v1606 = vunpack.c.l.b16 %v1570
        %v1607 = vpack.c.b16 %v1590, %v1589
        %v1608 = vpack.c.b16 %v1592, %v1591
        %v1609 = vpack.c.b16 %v1594, %v1593
        %v1610 = vpack.c.b16 %v1596, %v1595
        %v1611 = vpack.c.b16 %v1598, %v1597
        %v1612 = vpack.c.b16 %v1600, %v1599
        %v1613 = vpack.c.b16 %v1602, %v1601
        %v1614 = vpack.c.b16 %v1604, %v1603
        %v1615 = vpack.c.b16 %v1606, %v1605
        %v1626 = vsel %vm1258, %v930, 0
        %v1629 = vsel %vm1258, %v931, 0
        %v1632 = vsel %vm1258, %v932, 0
        %v1635 = vsel %vm1258, %v933, 0
        %v1638 = vsel %vm1258, %v934, 0
        %v1641 = vsel %vm1258, %v935, 0
        %v1644 = vsel %vm1258, %v936, 0
        %v1647 = vsel %vm1258, %v937, 0
        %v1650 = vsel %vm1258, %v938, 0
        %v1653 = vsel %vm1258, %v939, 0
        %v1656 = vsel %vm1258, %v940, 0
        %v1659 = vsel %vm1258, %v941, 0
        %v1662 = vsel %vm1258, %v942, 0
        %v1665 = vsel %vm1258, %v943, 0
        %v1668 = vsel %vm1258, %v944, 0
        %v1671 = vsel %vm1258, %v945, 0
        %v1674 = vsel %vm1258, %v946, 0
        %v1677 = vsel %vm1258, %v947, 0
        %1679 = vmatprep.subr.bf16.mxu0 0
        %1680 = vmatpush1.bf16.msra.mxu0 %v1614
        %1681 = vmatprep.subr.bf16.mxu0 0
        %1682 = vmatpush1.bf16.msra.mxu0 %v1613
        %1683 = vmatprep.subr.bf16.mxu0 0
        %1684 = vmatpush1.bf16.msra.mxu0 %v1612
        %1685 = vmatprep.subr.bf16.mxu0 0
        %1686 = vmatpush1.bf16.msra.mxu0 %v1611
        %1687 = vmatprep.subr.bf16.mxu0 0
        %1688 = vmatpush1.bf16.msra.mxu0 %v1610
        %1689 = vmatprep.subr.bf16.mxu0 0
        %1690 = vmatpush1.bf16.msra.mxu0 %v1609
        %1691 = vmatprep.subr.bf16.mxu0 0
        %1692 = vmatpush1.bf16.msra.mxu0 %v1608
        %1693 = vmatprep.subr.bf16.mxu0 0
        %1694 = vmatpush1.bf16.msra.mxu0 %v1607
        %1695 = vmatprep.subr.bf16.mxu0 0
        %1696 = vmatpush2.bf16.msra.mxu0 0
        %1697 = vmatprep.subr.bf16.mxu0 0
        %1698 = vmatpush2.bf16.msra.mxu0 0
        %1699 = vmatprep.subr.bf16.mxu0 0
        %1700 = vmatpush2.bf16.msra.mxu0 0
        %1701 = vmatprep.subr.bf16.mxu0 0
        %1702 = vmatpush2.bf16.msra.mxu0 0
        %1703 = vmatprep.subr.bf16.mxu0 0
        %1704 = vmatpush2.bf16.msra.mxu0 0
        %1705 = vmatprep.subr.bf16.mxu0 0
        %1706 = vmatpush2.bf16.msra.mxu0 0
        %1707 = vmatprep.subr.bf16.mxu0 0
        %1708 = vmatpush2.bf16.msra.mxu0 0
        %1709 = vmatprep.subr.bf16.mxu0 0
        %1710 = vmatpush2.bf16.msra.mxu0 %v1615
        %1711 = vmatprep.mubr.bf16.mxu0 %v1626
        %1712 = vmatmul.mubr.bf16.gmra.mxu0 %v1500
        %v1713 = vpop.f32.mrf.mxu0
        %v1714 = vadd.f32 0.0, %v1713
        %v1715 = vpop.f32.mrf.mxu0
        %v1716 = vpop.f32.mrf.mxu0
        %v1717 = vadd.f32 0.0, %v1716
        %v1718 = vpop.f32.mrf.mxu0
        %1719 = vmatprep.mubr.bf16.mxu0 %v1629
        %1720 = vmatmul.mubr.bf16.gmra.mxu0 %v1503
        %v1721 = vpop.f32.mrf.mxu0
        %v1722 = vadd.f32 0.0, %v1721
        %v1723 = vpop.f32.mrf.mxu0
        %v1724 = vpop.f32.mrf.mxu0
        %v1725 = vadd.f32 0.0, %v1724
        %v1726 = vpop.f32.mrf.mxu0
        %1727 = vmatprep.mubr.bf16.mxu0 %v1632
        %1728 = vmatmul.mubr.bf16.gmra.mxu0 %v1506
        %v1729 = vpop.f32.mrf.mxu0
        %v1730 = vadd.f32 0.0, %v1729
        %v1731 = vpop.f32.mrf.mxu0
        %v1732 = vpop.f32.mrf.mxu0
        %v1733 = vadd.f32 0.0, %v1732
        %v1734 = vpop.f32.mrf.mxu0
        %1735 = vmatprep.mubr.bf16.mxu0 %v1635
        %1736 = vmatmul.mubr.bf16.gmra.mxu0 %v1509
        %v1737 = vpop.f32.mrf.mxu0
        %v1738 = vadd.f32 0.0, %v1737
        %v1739 = vpop.f32.mrf.mxu0
        %v1740 = vpop.f32.mrf.mxu0
        %v1741 = vadd.f32 0.0, %v1740
        %v1742 = vpop.f32.mrf.mxu0
        %1743 = vmatprep.mubr.bf16.mxu0 %v1638
        %1744 = vmatmul.mubr.bf16.gmra.mxu0 %v1512
        %v1745 = vpop.f32.mrf.mxu0
        %v1746 = vadd.f32 0.0, %v1745
        %v1747 = vpop.f32.mrf.mxu0
        %v1748 = vpop.f32.mrf.mxu0
        %v1749 = vadd.f32 0.0, %v1748
        %v1750 = vpop.f32.mrf.mxu0
        %1751 = vmatprep.mubr.bf16.mxu0 %v1641
        %1752 = vmatmul.mubr.bf16.gmra.mxu0 %v1515
        %v1753 = vpop.f32.mrf.mxu0
        %v1754 = vadd.f32 0.0, %v1753
        %v1755 = vpop.f32.mrf.mxu0
        %v1756 = vpop.f32.mrf.mxu0
        %v1757 = vadd.f32 0.0, %v1756
        %v1758 = vpop.f32.mrf.mxu0
        %1759 = vmatprep.mubr.bf16.mxu0 %v1644
        %1760 = vmatmul.mubr.bf16.gmra.mxu0 %v1518
        %v1761 = vpop.f32.mrf.mxu0
        %v1762 = vadd.f32 0.0, %v1761
        %v1763 = vpop.f32.mrf.mxu0
        %v1764 = vpop.f32.mrf.mxu0
        %v1765 = vadd.f32 0.0, %v1764
        %v1766 = vpop.f32.mrf.mxu0
        %1767 = vmatprep.mubr.bf16.mxu0 %v1647
        %1768 = vmatmul.mubr.bf16.gmra.mxu0 %v1521
        %v1769 = vpop.f32.mrf.mxu0
        %v1770 = vadd.f32 0.0, %v1769
        %v1771 = vpop.f32.mrf.mxu0
        %v1772 = vpop.f32.mrf.mxu0
        %v1773 = vadd.f32 0.0, %v1772
        %v1774 = vpop.f32.mrf.mxu0
        %1775 = vmatprep.mubr.bf16.mxu0 %v1650
        %1776 = vmatmul.mubr.bf16.gmra.mxu0 %v1524
        %v1777 = vpop.f32.mrf.mxu0
        %v1778 = vadd.f32 0.0, %v1777
        %v1779 = vpop.f32.mrf.mxu0
        %v1780 = vpop.f32.mrf.mxu0
        %v1781 = vadd.f32 0.0, %v1780
        %v1782 = vpop.f32.mrf.mxu0
        %1783 = vmatprep.mubr.bf16.mxu0 %v1653
        %1784 = vmatmul.mubr.bf16.gmra.mxu0 %v1527
        %v1785 = vpop.f32.mrf.mxu0
        %v1786 = vadd.f32 0.0, %v1785
        %v1787 = vpop.f32.mrf.mxu0
        %v1788 = vpop.f32.mrf.mxu0
        %v1789 = vadd.f32 0.0, %v1788
        %v1790 = vpop.f32.mrf.mxu0
        %1791 = vmatprep.mubr.bf16.mxu0 %v1656
        %1792 = vmatmul.mubr.bf16.gmra.mxu0 %v1530
        %v1793 = vpop.f32.mrf.mxu0
        %v1794 = vadd.f32 0.0, %v1793
        %v1795 = vpop.f32.mrf.mxu0
        %v1796 = vpop.f32.mrf.mxu0
        %v1797 = vadd.f32 0.0, %v1796
        %v1798 = vpop.f32.mrf.mxu0
        %1799 = vmatprep.mubr.bf16.mxu0 %v1659
        %1800 = vmatmul.mubr.bf16.gmra.mxu0 %v1533
        %v1801 = vpop.f32.mrf.mxu0
        %v1802 = vadd.f32 0.0, %v1801
        %v1803 = vpop.f32.mrf.mxu0
        %v1804 = vpop.f32.mrf.mxu0
        %v1805 = vadd.f32 0.0, %v1804
        %v1806 = vpop.f32.mrf.mxu0
        %1807 = vmatprep.mubr.bf16.mxu0 %v1662
        %1808 = vmatmul.mubr.bf16.gmra.mxu0 %v1536
        %v1809 = vpop.f32.mrf.mxu0
        %v1810 = vadd.f32 0.0, %v1809
        %v1811 = vpop.f32.mrf.mxu0
        %v1812 = vpop.f32.mrf.mxu0
        %v1813 = vadd.f32 0.0, %v1812
        %v1814 = vpop.f32.mrf.mxu0
        %1815 = vmatprep.mubr.bf16.mxu0 %v1665
        %1816 = vmatmul.mubr.bf16.gmra.mxu0 %v1539
        %v1817 = vpop.f32.mrf.mxu0
        %v1818 = vadd.f32 0.0, %v1817
        %v1819 = vpop.f32.mrf.mxu0
        %v1820 = vpop.f32.mrf.mxu0
        %v1821 = vadd.f32 0.0, %v1820
        %v1822 = vpop.f32.mrf.mxu0
        %1823 = vmatprep.mubr.bf16.mxu0 %v1668
        %1824 = vmatmul.mubr.bf16.gmra.mxu0 %v1542
        %v1825 = vpop.f32.mrf.mxu0
        %v1826 = vadd.f32 0.0, %v1825
        %v1827 = vpop.f32.mrf.mxu0
        %v1828 = vpop.f32.mrf.mxu0
        %v1829 = vadd.f32 0.0, %v1828
        %v1830 = vpop.f32.mrf.mxu0
        %1831 = vmatprep.mubr.bf16.mxu0 %v1671
        %1832 = vmatmul.mubr.bf16.gmra.mxu0 %v1545
        %v1833 = vpop.f32.mrf.mxu0
        %v1834 = vadd.f32 0.0, %v1833
        %v1835 = vpop.f32.mrf.mxu0
        %v1836 = vpop.f32.mrf.mxu0
        %v1837 = vadd.f32 0.0, %v1836
        %v1838 = vpop.f32.mrf.mxu0
        %1839 = vmatprep.mubr.bf16.mxu0 %v1674
        %1840 = vmatmul.mubr.bf16.gmra.mxu0 %v1548
        %v1841 = vpop.f32.mrf.mxu0
        %v1842 = vadd.f32 0.0, %v1841
        %v1843 = vpop.f32.mrf.mxu0
        %v1844 = vpop.f32.mrf.mxu0
        %v1845 = vadd.f32 0.0, %v1844
        %v1846 = vpop.f32.mrf.mxu0
        %1847 = vmatprep.mubr.bf16.mxu0 %v1677
        %1848 = vmatmul.mubr.bf16.gmra.mxu0 %v1551
        %v1849 = vpop.f32.mrf.mxu0
        %v1850 = vadd.f32 0.0, %v1849
        %v1851 = vpop.f32.mrf.mxu0
        %v1852 = vpop.f32.mrf.mxu0
        %v1853 = vadd.f32 0.0, %v1852
        %v1854 = vpop.f32.mrf.mxu0
        %1855 = vdwg.mxu0
        %v1856 = vld [vmem:[%s4] sm:$0x1]
        %v1858 = vlaneseq
        %v1859 = vshrl.u32 %v1858, 7
        %v1860 = vsub.s32 0, %v1859
        %v1861 = vrot.slane %v1856, %v1860
        %v1863 = vadd.f32 %v1714, %v1861
        %v1864 = vadd.f32 %v1717, %v1861
        %v1865 = vadd.f32 %v1722, %v1861
        %v1866 = vadd.f32 %v1725, %v1861
        %v1867 = vadd.f32 %v1730, %v1861
        %v1868 = vadd.f32 %v1733, %v1861
        %v1869 = vadd.f32 %v1738, %v1861
        %v1870 = vadd.f32 %v1741, %v1861
        %v1871 = vadd.f32 %v1746, %v1861
        %v1872 = vadd.f32 %v1749, %v1861
        %v1873 = vadd.f32 %v1754, %v1861
        %v1874 = vadd.f32 %v1757, %v1861
        %v1875 = vadd.f32 %v1762, %v1861
        %v1876 = vadd.f32 %v1765, %v1861
        %v1877 = vadd.f32 %v1770, %v1861
        %v1878 = vadd.f32 %v1773, %v1861
        %v1879 = vadd.f32 %v1778, %v1861
        %v1880 = vadd.f32 %v1781, %v1861
        %v1881 = vadd.f32 %v1786, %v1861
        %v1882 = vadd.f32 %v1789, %v1861
        %v1883 = vadd.f32 %v1794, %v1861
        %v1884 = vadd.f32 %v1797, %v1861
        %v1885 = vadd.f32 %v1802, %v1861
        %v1886 = vadd.f32 %v1805, %v1861
        %v1887 = vadd.f32 %v1810, %v1861
        %v1888 = vadd.f32 %v1813, %v1861
        %v1889 = vadd.f32 %v1818, %v1861
        %v1890 = vadd.f32 %v1821, %v1861
        %v1891 = vadd.f32 %v1826, %v1861
        %v1892 = vadd.f32 %v1829, %v1861
        %v1893 = vadd.f32 %v1834, %v1861
        %v1894 = vadd.f32 %v1837, %v1861
        %v1895 = vadd.f32 %v1842, %v1861
        %v1896 = vadd.f32 %v1845, %v1861
        %v1897 = vadd.f32 %v1850, %v1861
        %v1898 = vadd.f32 %v1853, %v1861
        %v1899 = vpack.c.bf16 %v1866, %v1865
        %v1900 = vpack.c.bf16 %v1868, %v1867
        %v1901 = vpack.c.bf16 %v1870, %v1869
        %v1902 = vpack.c.bf16 %v1872, %v1871
        %v1903 = vpack.c.bf16 %v1874, %v1873
        %v1904 = vpack.c.bf16 %v1876, %v1875
        %v1905 = vpack.c.bf16 %v1878, %v1877
        %v1906 = vpack.c.bf16 %v1880, %v1879
        %v1907 = vpack.c.bf16 %v1882, %v1881
        %v1908 = vpack.c.bf16 %v1884, %v1883
        %v1909 = vpack.c.bf16 %v1886, %v1885
        %v1910 = vpack.c.bf16 %v1888, %v1887
        %v1911 = vpack.c.bf16 %v1890, %v1889
        %v1912 = vpack.c.bf16 %v1892, %v1891
        %v1913 = vpack.c.bf16 %v1894, %v1893
        %v1914 = vpack.c.bf16 %v1896, %v1895
        %v1931 = vunpack.c.l.b16 %v1899
        %v1932 = vunpack.c.h.b16 %v1899
        %v1933 = vunpack.c.l.b16 %v1900
        %v1934 = vunpack.c.h.b16 %v1900
        %v1935 = vunpack.c.l.b16 %v1901
        %v1936 = vunpack.c.h.b16 %v1901
        %v1937 = vunpack.c.l.b16 %v1902
        %v1938 = vunpack.c.h.b16 %v1902
        %v1939 = vunpack.c.l.b16 %v1903
        %v1940 = vunpack.c.h.b16 %v1903
        %v1941 = vunpack.c.l.b16 %v1904
        %v1942 = vunpack.c.h.b16 %v1904
        %v1943 = vunpack.c.l.b16 %v1905
        %v1944 = vunpack.c.h.b16 %v1905
        %v1945 = vunpack.c.l.b16 %v1906
        %v1946 = vunpack.c.h.b16 %v1906
        %v1947 = vunpack.c.l.b16 %v1907
        %v1948 = vunpack.c.h.b16 %v1907
        %v1949 = vunpack.c.l.b16 %v1908
        %v1950 = vunpack.c.h.b16 %v1908
        %v1951 = vunpack.c.l.b16 %v1909
        %v1952 = vunpack.c.h.b16 %v1909
        %v1953 = vunpack.c.l.b16 %v1910
        %v1954 = vunpack.c.h.b16 %v1910
        %v1955 = vunpack.c.l.b16 %v1911
        %v1956 = vunpack.c.h.b16 %v1911
        %v1957 = vunpack.c.l.b16 %v1912
        %v1958 = vunpack.c.h.b16 %v1912
        %v1959 = vunpack.c.l.b16 %v1913
        %v1960 = vunpack.c.h.b16 %v1913
        %v1961 = vunpack.c.l.b16 %v1914
        %v1962 = vunpack.c.h.b16 %v1914
        %v1963 = vpack.c.b16 %v1931, %v1931
        %v1964 = vpack.c.b16 %v1932, %v1932
        %v1965 = vpack.c.b16 %v1933, %v1933
        %v1966 = vpack.c.b16 %v1934, %v1934
        %v1967 = vpack.c.b16 %v1935, %v1935
        %v1968 = vpack.c.b16 %v1936, %v1936
        %v1969 = vpack.c.b16 %v1937, %v1937
        %v1970 = vpack.c.b16 %v1938, %v1938
        %v1971 = vpack.c.b16 %v1939, %v1939
        %v1972 = vpack.c.b16 %v1940, %v1940
        %v1973 = vpack.c.b16 %v1941, %v1941
        %v1974 = vpack.c.b16 %v1942, %v1942
        %v1975 = vpack.c.b16 %v1943, %v1943
        %v1976 = vpack.c.b16 %v1944, %v1944
        %v1977 = vpack.c.b16 %v1945, %v1945
        %v1978 = vpack.c.b16 %v1946, %v1946
        %v1979 = vpack.c.b16 %v1947, %v1947
        %v1980 = vpack.c.b16 %v1948, %v1948
        %v1981 = vpack.c.b16 %v1949, %v1949
        %v1982 = vpack.c.b16 %v1950, %v1950
        %v1983 = vpack.c.b16 %v1951, %v1951
        %v1984 = vpack.c.b16 %v1952, %v1952
        %v1985 = vpack.c.b16 %v1953, %v1953
        %v1986 = vpack.c.b16 %v1954, %v1954
        %v1987 = vpack.c.b16 %v1955, %v1955
        %v1988 = vpack.c.b16 %v1956, %v1956
        %v1989 = vpack.c.b16 %v1957, %v1957
        %v1990 = vpack.c.b16 %v1958, %v1958
        %v1991 = vpack.c.b16 %v1959, %v1959
        %v1992 = vpack.c.b16 %v1960, %v1960
        %v1993 = vpack.c.b16 %v1961, %v1961
        %v1994 = vpack.c.b16 %v1962, %v1962
        %vm2027 = vcmask 125952
        %2028 = vst.msk [vmem:[%s513] sm:$0xf] %vm2027, %v1963
        %2029 = vst.msk [vmem:[%s513 + $0x4] sm:$0xf] %vm2027, %v1964
        %2030 = vst.msk [vmem:[%s513 + $0x8] sm:$0xf] %vm2027, %v1965
        %2031 = vst.msk [vmem:[%s513 + $0xc] sm:$0xf] %vm2027, %v1966
        %2032 = vst.msk [vmem:[%s513 + $0x10] sm:$0xf] %vm2027, %v1967
        %2033 = vst.msk [vmem:[%s513 + $0x14] sm:$0xf] %vm2027, %v1968
        %2034 = vst.msk [vmem:[%s513 + $0x18] sm:$0xf] %vm2027, %v1969
        %2035 = vst.msk [vmem:[%s513 + $0x1c] sm:$0xf] %vm2027, %v1970
        %2036 = vst.msk [vmem:[%s513 + $0x20] sm:$0xf] %vm2027, %v1971
        %2037 = vst.msk [vmem:[%s513 + $0x24] sm:$0xf] %vm2027, %v1972
        %2038 = vst.msk [vmem:[%s513 + $0x28] sm:$0xf] %vm2027, %v1973
        %2039 = vst.msk [vmem:[%s513 + $0x2c] sm:$0xf] %vm2027, %v1974
        %2040 = vst.msk [vmem:[%s513 + $0x30] sm:$0xf] %vm2027, %v1975
        %2041 = vst.msk [vmem:[%s513 + $0x34] sm:$0xf] %vm2027, %v1976
        %2042 = vst.msk [vmem:[%s513 + $0x38] sm:$0xf] %vm2027, %v1977
        %2043 = vst.msk [vmem:[%s513 + $0x3c] sm:$0xf] %vm2027, %v1978
        %2044 = vst.msk [vmem:[%s513 + $0x40] sm:$0xf] %vm2027, %v1979
        %2045 = vst.msk [vmem:[%s513 + $0x44] sm:$0xf] %vm2027, %v1980
        %2046 = vst.msk [vmem:[%s513 + $0x48] sm:$0xf] %vm2027, %v1981
        %2047 = vst.msk [vmem:[%s513 + $0x4c] sm:$0xf] %vm2027, %v1982
        %2048 = vst.msk [vmem:[%s513 + $0x50] sm:$0xf] %vm2027, %v1983
        %2049 = vst.msk [vmem:[%s513 + $0x54] sm:$0xf] %vm2027, %v1984
        %2050 = vst.msk [vmem:[%s513 + $0x58] sm:$0xf] %vm2027, %v1985
        %2051 = vst.msk [vmem:[%s513 + $0x5c] sm:$0xf] %vm2027, %v1986
        %2052 = vst.msk [vmem:[%s513 + $0x60] sm:$0xf] %vm2027, %v1987
        %2053 = vst.msk [vmem:[%s513 + $0x64] sm:$0xf] %vm2027, %v1988
        %2054 = vst.msk [vmem:[%s513 + $0x68] sm:$0xf] %vm2027, %v1989
        %2055 = vst.msk [vmem:[%s513 + $0x6c] sm:$0xf] %vm2027, %v1990
        %2056 = vst.msk [vmem:[%s513 + $0x70] sm:$0xf] %vm2027, %v1991
        %2057 = vst.msk [vmem:[%s513 + $0x74] sm:$0xf] %vm2027, %v1992
        %2058 = vst.msk [vmem:[%s513 + $0x78] sm:$0xf] %vm2027, %v1993
        %2059 = vst.msk [vmem:[%s513 + $0x7c] sm:$0xf] %vm2027, %v1994
        %v2060 = vsel %vm1258, %v1863, 0.0
        %2061 = vadd.xlane.f32.xlu0 %v2060
        %v2062 = vpop.xlane.xlu0 %2061
        %v2063 = vsel %vm1258, %v1864, 0.0
        %2064 = vadd.xlane.f32.xlu0 %v2063
        %v2065 = vpop.xlane.xlu0 %2064
        %v2066 = vsel %vm1258, %v1865, 0.0
        %2067 = vadd.xlane.f32.xlu0 %v2066
        %v2068 = vpop.xlane.xlu0 %2067
        %v2069 = vsel %vm1258, %v1866, 0.0
        %2070 = vadd.xlane.f32.xlu0 %v2069
        %v2071 = vpop.xlane.xlu0 %2070
        %v2072 = vsel %vm1258, %v1867, 0.0
        %2073 = vadd.xlane.f32.xlu0 %v2072
        %v2074 = vpop.xlane.xlu0 %2073
        %v2075 = vsel %vm1258, %v1868, 0.0
        %2076 = vadd.xlane.f32.xlu0 %v2075
        %v2077 = vpop.xlane.xlu0 %2076
        %v2078 = vsel %vm1258, %v1869, 0.0
        %2079 = vadd.xlane.f32.xlu0 %v2078
        %v2080 = vpop.xlane.xlu0 %2079
        %v2081 = vsel %vm1258, %v1870, 0.0
        %2082 = vadd.xlane.f32.xlu0 %v2081
        %v2083 = vpop.xlane.xlu0 %2082
        %v2084 = vsel %vm1258, %v1871, 0.0
        %2085 = vadd.xlane.f32.xlu0 %v2084
        %v2086 = vpop.xlane.xlu0 %2085
        %v2087 = vsel %vm1258, %v1872, 0.0
        %2088 = vadd.xlane.f32.xlu0 %v2087
        %v2089 = vpop.xlane.xlu0 %2088
        %v2090 = vsel %vm1258, %v1873, 0.0
        %2091 = vadd.xlane.f32.xlu0 %v2090
        %v2092 = vpop.xlane.xlu0 %2091
        %v2093 = vsel %vm1258, %v1874, 0.0
        %2094 = vadd.xlane.f32.xlu0 %v2093
        %v2095 = vpop.xlane.xlu0 %2094
        %v2096 = vsel %vm1258, %v1875, 0.0
        %2097 = vadd.xlane.f32.xlu0 %v2096
        %v2098 = vpop.xlane.xlu0 %2097
        %v2099 = vsel %vm1258, %v1876, 0.0
        %2100 = vadd.xlane.f32.xlu0 %v2099
        %v2101 = vpop.xlane.xlu0 %2100
        %v2102 = vsel %vm1258, %v1877, 0.0
        %2103 = vadd.xlane.f32.xlu0 %v2102
        %v2104 = vpop.xlane.xlu0 %2103
        %v2105 = vsel %vm1258, %v1878, 0.0
        %2106 = vadd.xlane.f32.xlu0 %v2105
        %v2107 = vpop.xlane.xlu0 %2106
        %v2108 = vsel %vm1258, %v1879, 0.0
        %2109 = vadd.xlane.f32.xlu0 %v2108
        %v2110 = vpop.xlane.xlu0 %2109
        %v2111 = vsel %vm1258, %v1880, 0.0
        %2112 = vadd.xlane.f32.xlu0 %v2111
        %v2113 = vpop.xlane.xlu0 %2112
        %v2114 = vsel %vm1258, %v1881, 0.0
        %2115 = vadd.xlane.f32.xlu0 %v2114
        %v2116 = vpop.xlane.xlu0 %2115
        %v2117 = vsel %vm1258, %v1882, 0.0
        %2118 = vadd.xlane.f32.xlu0 %v2117
        %v2119 = vpop.xlane.xlu0 %2118
        %v2120 = vsel %vm1258, %v1883, 0.0
        %2121 = vadd.xlane.f32.xlu0 %v2120
        %v2122 = vpop.xlane.xlu0 %2121
        %v2123 = vsel %vm1258, %v1884, 0.0
        %2124 = vadd.xlane.f32.xlu0 %v2123
        %v2125 = vpop.xlane.xlu0 %2124
        %v2126 = vsel %vm1258, %v1885, 0.0
        %2127 = vadd.xlane.f32.xlu0 %v2126
        %v2128 = vpop.xlane.xlu0 %2127
        %v2129 = vsel %vm1258, %v1886, 0.0
        %2130 = vadd.xlane.f32.xlu0 %v2129
        %v2131 = vpop.xlane.xlu0 %2130
        %v2132 = vsel %vm1258, %v1887, 0.0
        %2133 = vadd.xlane.f32.xlu0 %v2132
        %v2134 = vpop.xlane.xlu0 %2133
        %v2135 = vsel %vm1258, %v1888, 0.0
        %2136 = vadd.xlane.f32.xlu0 %v2135
        %v2137 = vpop.xlane.xlu0 %2136
        %v2138 = vsel %vm1258, %v1889, 0.0
        %2139 = vadd.xlane.f32.xlu0 %v2138
        %v2140 = vpop.xlane.xlu0 %2139
        %v2141 = vsel %vm1258, %v1890, 0.0
        %2142 = vadd.xlane.f32.xlu0 %v2141
        %v2143 = vpop.xlane.xlu0 %2142
        %v2144 = vsel %vm1258, %v1891, 0.0
        %2145 = vadd.xlane.f32.xlu0 %v2144
        %v2146 = vpop.xlane.xlu0 %2145
        %v2147 = vsel %vm1258, %v1892, 0.0
        %2148 = vadd.xlane.f32.xlu0 %v2147
        %v2149 = vpop.xlane.xlu0 %2148
        %v2150 = vsel %vm1258, %v1893, 0.0
        %2151 = vadd.xlane.f32.xlu0 %v2150
        %v2152 = vpop.xlane.xlu0 %2151
        %v2153 = vsel %vm1258, %v1894, 0.0
        %2154 = vadd.xlane.f32.xlu0 %v2153
        %v2155 = vpop.xlane.xlu0 %2154
        %v2156 = vsel %vm1258, %v1895, 0.0
        %2157 = vadd.xlane.f32.xlu0 %v2156
        %v2158 = vpop.xlane.xlu0 %2157
        %v2159 = vsel %vm1258, %v1896, 0.0
        %2160 = vadd.xlane.f32.xlu0 %v2159
        %v2161 = vpop.xlane.xlu0 %2160
        %v2162 = vsel %vm1258, %v1897, 0.0
        %2163 = vadd.xlane.f32.xlu0 %v2162
        %v2164 = vpop.xlane.xlu0 %2163
        %v2165 = vsel %vm1258, %v1898, 0.0
        %2166 = vadd.xlane.f32.xlu0 %v2165
        %v2167 = vpop.xlane.xlu0 %2166
        %v2168 = vrcp.pop 16.0
        %v2169 = vmul.f32 %v2062, %v2168
        %v2170 = vmul.f32 %v2065, %v2168
        %v2171 = vmul.f32 %v2068, %v2168
        %v2172 = vmul.f32 %v2071, %v2168
        %v2173 = vmul.f32 %v2074, %v2168
        %v2174 = vmul.f32 %v2077, %v2168
        %v2175 = vmul.f32 %v2080, %v2168
        %v2176 = vmul.f32 %v2083, %v2168
        %v2177 = vmul.f32 %v2086, %v2168
        %v2178 = vmul.f32 %v2089, %v2168
        %v2179 = vmul.f32 %v2092, %v2168
        %v2180 = vmul.f32 %v2095, %v2168
        %v2181 = vmul.f32 %v2098, %v2168
        %v2182 = vmul.f32 %v2101, %v2168
        %v2183 = vmul.f32 %v2104, %v2168
        %v2184 = vmul.f32 %v2107, %v2168
        %v2185 = vmul.f32 %v2110, %v2168
        %v2186 = vmul.f32 %v2113, %v2168
        %v2187 = vmul.f32 %v2116, %v2168
        %v2188 = vmul.f32 %v2119, %v2168
        %v2189 = vmul.f32 %v2122, %v2168
        %v2190 = vmul.f32 %v2125, %v2168
        %v2191 = vmul.f32 %v2128, %v2168
        %v2192 = vmul.f32 %v2131, %v2168
        %v2193 = vmul.f32 %v2134, %v2168
        %v2194 = vmul.f32 %v2137, %v2168
        %v2195 = vmul.f32 %v2140, %v2168
        %v2196 = vmul.f32 %v2143, %v2168
        %v2197 = vmul.f32 %v2146, %v2168
        %v2198 = vmul.f32 %v2149, %v2168
        %v2199 = vmul.f32 %v2152, %v2168
        %v2200 = vmul.f32 %v2155, %v2168
        %v2201 = vmul.f32 %v2158, %v2168
        %v2202 = vmul.f32 %v2161, %v2168
        %v2203 = vmul.f32 %v2164, %v2168
        %v2204 = vmul.f32 %v2167, %v2168
        %v2205 = vsub.f32 %v1863, %v2169
        %v2206 = vsub.f32 %v1864, %v2170
        %v2207 = vsub.f32 %v1865, %v2171
        %v2208 = vsub.f32 %v1866, %v2172
        %v2209 = vsub.f32 %v1867, %v2173
        %v2210 = vsub.f32 %v1868, %v2174
        %v2211 = vsub.f32 %v1869, %v2175
        %v2212 = vsub.f32 %v1870, %v2176
        %v2213 = vsub.f32 %v1871, %v2177
        %v2214 = vsub.f32 %v1872, %v2178
        %v2215 = vsub.f32 %v1873, %v2179
        %v2216 = vsub.f32 %v1874, %v2180
        %v2217 = vsub.f32 %v1875, %v2181
        %v2218 = vsub.f32 %v1876, %v2182
        %v2219 = vsub.f32 %v1877, %v2183
        %v2220 = vsub.f32 %v1878, %v2184
        %v2221 = vsub.f32 %v1879, %v2185
        %v2222 = vsub.f32 %v1880, %v2186
        %v2223 = vsub.f32 %v1881, %v2187
        %v2224 = vsub.f32 %v1882, %v2188
        %v2225 = vsub.f32 %v1883, %v2189
        %v2226 = vsub.f32 %v1884, %v2190
        %v2227 = vsub.f32 %v1885, %v2191
        %v2228 = vsub.f32 %v1886, %v2192
        %v2229 = vsub.f32 %v1887, %v2193
        %v2230 = vsub.f32 %v1888, %v2194
        %v2231 = vsub.f32 %v1889, %v2195
        %v2232 = vsub.f32 %v1890, %v2196
        %v2233 = vsub.f32 %v1891, %v2197
        %v2234 = vsub.f32 %v1892, %v2198
        %v2235 = vsub.f32 %v1893, %v2199
        %v2236 = vsub.f32 %v1894, %v2200
        %v2237 = vsub.f32 %v1895, %v2201
        %v2238 = vsub.f32 %v1896, %v2202
        %v2239 = vsub.f32 %v1897, %v2203
        %v2240 = vsub.f32 %v1898, %v2204
        %v2241 = vmul.f32 %v2205, %v2205
        %v2242 = vmul.f32 %v2206, %v2206
        %v2243 = vmul.f32 %v2207, %v2207
        %v2244 = vmul.f32 %v2208, %v2208
        %v2245 = vmul.f32 %v2209, %v2209
        %v2246 = vmul.f32 %v2210, %v2210
        %v2247 = vmul.f32 %v2211, %v2211
        %v2248 = vmul.f32 %v2212, %v2212
        %v2249 = vmul.f32 %v2213, %v2213
        %v2250 = vmul.f32 %v2214, %v2214
        %v2251 = vmul.f32 %v2215, %v2215
        %v2252 = vmul.f32 %v2216, %v2216
        %v2253 = vmul.f32 %v2217, %v2217
        %v2254 = vmul.f32 %v2218, %v2218
        %v2255 = vmul.f32 %v2219, %v2219
        %v2256 = vmul.f32 %v2220, %v2220
        %v2257 = vmul.f32 %v2221, %v2221
        %v2258 = vmul.f32 %v2222, %v2222
        %v2259 = vmul.f32 %v2223, %v2223
        %v2260 = vmul.f32 %v2224, %v2224
        %v2261 = vmul.f32 %v2225, %v2225
        %v2262 = vmul.f32 %v2226, %v2226
        %v2263 = vmul.f32 %v2227, %v2227
        %v2264 = vmul.f32 %v2228, %v2228
        %v2265 = vmul.f32 %v2229, %v2229
        %v2266 = vmul.f32 %v2230, %v2230
        %v2267 = vmul.f32 %v2231, %v2231
        %v2268 = vmul.f32 %v2232, %v2232
        %v2269 = vmul.f32 %v2233, %v2233
        %v2270 = vmul.f32 %v2234, %v2234
        %v2271 = vmul.f32 %v2235, %v2235
        %v2272 = vmul.f32 %v2236, %v2236
        %v2273 = vmul.f32 %v2237, %v2237
        %v2274 = vmul.f32 %v2238, %v2238
        %v2275 = vmul.f32 %v2239, %v2239
        %v2276 = vmul.f32 %v2240, %v2240
        %v2277 = vsel %vm1258, %v2241, 0.0
        %2278 = vadd.xlane.f32.xlu0 %v2277
        %v2279 = vpop.xlane.xlu0 %2278
        %v2280 = vsel %vm1258, %v2242, 0.0
        %2281 = vadd.xlane.f32.xlu0 %v2280
        %v2282 = vpop.xlane.xlu0 %2281
        %v2283 = vsel %vm1258, %v2243, 0.0
        %2284 = vadd.xlane.f32.xlu0 %v2283
        %v2285 = vpop.xlane.xlu0 %2284
        %v2286 = vsel %vm1258, %v2244, 0.0
        %2287 = vadd.xlane.f32.xlu0 %v2286
        %v2288 = vpop.xlane.xlu0 %2287
        %v2289 = vsel %vm1258, %v2245, 0.0
        %2290 = vadd.xlane.f32.xlu0 %v2289
        %v2291 = vpop.xlane.xlu0 %2290
        %v2292 = vsel %vm1258, %v2246, 0.0
        %2293 = vadd.xlane.f32.xlu0 %v2292
        %v2294 = vpop.xlane.xlu0 %2293
        %v2295 = vsel %vm1258, %v2247, 0.0
        %2296 = vadd.xlane.f32.xlu0 %v2295
        %v2297 = vpop.xlane.xlu0 %2296
        %v2298 = vsel %vm1258, %v2248, 0.0
        %2299 = vadd.xlane.f32.xlu0 %v2298
        %v2300 = vpop.xlane.xlu0 %2299
        %v2301 = vsel %vm1258, %v2249, 0.0
        %2302 = vadd.xlane.f32.xlu0 %v2301
        %v2303 = vpop.xlane.xlu0 %2302
        %v2304 = vsel %vm1258, %v2250, 0.0
        %2305 = vadd.xlane.f32.xlu0 %v2304
        %v2306 = vpop.xlane.xlu0 %2305
        %v2307 = vsel %vm1258, %v2251, 0.0
        %2308 = vadd.xlane.f32.xlu0 %v2307
        %v2309 = vpop.xlane.xlu0 %2308
        %v2310 = vsel %vm1258, %v2252, 0.0
        %2311 = vadd.xlane.f32.xlu0 %v2310
        %v2312 = vpop.xlane.xlu0 %2311
        %v2313 = vsel %vm1258, %v2253, 0.0
        %2314 = vadd.xlane.f32.xlu0 %v2313
        %v2315 = vpop.xlane.xlu0 %2314
        %v2316 = vsel %vm1258, %v2254, 0.0
        %2317 = vadd.xlane.f32.xlu0 %v2316
        %v2318 = vpop.xlane.xlu0 %2317
        %v2319 = vsel %vm1258, %v2255, 0.0
        %2320 = vadd.xlane.f32.xlu0 %v2319
        %v2321 = vpop.xlane.xlu0 %2320
        %v2322 = vsel %vm1258, %v2256, 0.0
        %2323 = vadd.xlane.f32.xlu0 %v2322
        %v2324 = vpop.xlane.xlu0 %2323
        %v2325 = vsel %vm1258, %v2257, 0.0
        %2326 = vadd.xlane.f32.xlu0 %v2325
        %v2327 = vpop.xlane.xlu0 %2326
        %v2328 = vsel %vm1258, %v2258, 0.0
        %2329 = vadd.xlane.f32.xlu0 %v2328
        %v2330 = vpop.xlane.xlu0 %2329
        %v2331 = vsel %vm1258, %v2259, 0.0
        %2332 = vadd.xlane.f32.xlu0 %v2331
        %v2333 = vpop.xlane.xlu0 %2332
        %v2334 = vsel %vm1258, %v2260, 0.0
        %2335 = vadd.xlane.f32.xlu0 %v2334
        %v2336 = vpop.xlane.xlu0 %2335
        %v2337 = vsel %vm1258, %v2261, 0.0
        %2338 = vadd.xlane.f32.xlu0 %v2337
        %v2339 = vpop.xlane.xlu0 %2338
        %v2340 = vsel %vm1258, %v2262, 0.0
        %2341 = vadd.xlane.f32.xlu0 %v2340
        %v2342 = vpop.xlane.xlu0 %2341
        %v2343 = vsel %vm1258, %v2263, 0.0
        %2344 = vadd.xlane.f32.xlu0 %v2343
        %v2345 = vpop.xlane.xlu0 %2344
        %v2346 = vsel %vm1258, %v2264, 0.0
        %2347 = vadd.xlane.f32.xlu0 %v2346
        %v2348 = vpop.xlane.xlu0 %2347
        %v2349 = vsel %vm1258, %v2265, 0.0
        %2350 = vadd.xlane.f32.xlu0 %v2349
        %v2351 = vpop.xlane.xlu0 %2350
        %v2352 = vsel %vm1258, %v2266, 0.0
        %2353 = vadd.xlane.f32.xlu0 %v2352
        %v2354 = vpop.xlane.xlu0 %2353
        %v2355 = vsel %vm1258, %v2267, 0.0
        %2356 = vadd.xlane.f32.xlu0 %v2355
        %v2357 = vpop.xlane.xlu0 %2356
        %v2358 = vsel %vm1258, %v2268, 0.0
        %2359 = vadd.xlane.f32.xlu0 %v2358
        %v2360 = vpop.xlane.xlu0 %2359
        %v2361 = vsel %vm1258, %v2269, 0.0
        %2362 = vadd.xlane.f32.xlu0 %v2361
        %v2363 = vpop.xlane.xlu0 %2362
        %v2364 = vsel %vm1258, %v2270, 0.0
        %2365 = vadd.xlane.f32.xlu0 %v2364
        %v2366 = vpop.xlane.xlu0 %2365
        %v2367 = vsel %vm1258, %v2271, 0.0
        %2368 = vadd.xlane.f32.xlu0 %v2367
        %v2369 = vpop.xlane.xlu0 %2368
        %v2370 = vsel %vm1258, %v2272, 0.0
        %2371 = vadd.xlane.f32.xlu0 %v2370
        %v2372 = vpop.xlane.xlu0 %2371
        %v2373 = vsel %vm1258, %v2273, 0.0
        %2374 = vadd.xlane.f32.xlu0 %v2373
        %v2375 = vpop.xlane.xlu0 %2374
        %v2376 = vsel %vm1258, %v2274, 0.0
        %2377 = vadd.xlane.f32.xlu0 %v2376
        %v2378 = vpop.xlane.xlu0 %2377
        %v2379 = vsel %vm1258, %v2275, 0.0
        %2380 = vadd.xlane.f32.xlu0 %v2379
        %v2381 = vpop.xlane.xlu0 %2380
        %v2382 = vsel %vm1258, %v2276, 0.0
        %2383 = vadd.xlane.f32.xlu0 %v2382
        %v2384 = vpop.xlane.xlu0 %2383
        %v2385 = vmul.f32 %v2279, %v2168
        %v2386 = vmul.f32 %v2282, %v2168
        %v2387 = vmul.f32 %v2285, %v2168
        %v2388 = vmul.f32 %v2288, %v2168
        %v2389 = vmul.f32 %v2291, %v2168
        %v2390 = vmul.f32 %v2294, %v2168
        %v2391 = vmul.f32 %v2297, %v2168
        %v2392 = vmul.f32 %v2300, %v2168
        %v2393 = vmul.f32 %v2303, %v2168
        %v2394 = vmul.f32 %v2306, %v2168
        %v2395 = vmul.f32 %v2309, %v2168
        %v2396 = vmul.f32 %v2312, %v2168
        %v2397 = vmul.f32 %v2315, %v2168
        %v2398 = vmul.f32 %v2318, %v2168
        %v2399 = vmul.f32 %v2321, %v2168
        %v2400 = vmul.f32 %v2324, %v2168
        %v2401 = vmul.f32 %v2327, %v2168
        %v2402 = vmul.f32 %v2330, %v2168
        %v2403 = vmul.f32 %v2333, %v2168
        %v2404 = vmul.f32 %v2336, %v2168
        %v2405 = vmul.f32 %v2339, %v2168
        %v2406 = vmul.f32 %v2342, %v2168
        %v2407 = vmul.f32 %v2345, %v2168
        %v2408 = vmul.f32 %v2348, %v2168
        %v2409 = vmul.f32 %v2351, %v2168
        %v2410 = vmul.f32 %v2354, %v2168
        %v2411 = vmul.f32 %v2357, %v2168
        %v2412 = vmul.f32 %v2360, %v2168
        %v2413 = vmul.f32 %v2363, %v2168
        %v2414 = vmul.f32 %v2366, %v2168
        %v2415 = vmul.f32 %v2369, %v2168
        %v2416 = vmul.f32 %v2372, %v2168
        %v2417 = vmul.f32 %v2375, %v2168
        %v2418 = vmul.f32 %v2378, %v2168
        %v2419 = vmul.f32 %v2381, %v2168
        %v2420 = vmul.f32 %v2384, %v2168
        %v2421 = vadd.f32 %v2385, 1e-06
        %v2422 = vadd.f32 %v2386, 1e-06
        %v2423 = vadd.f32 %v2387, 1e-06
        %v2424 = vadd.f32 %v2388, 1e-06
        %v2425 = vadd.f32 %v2389, 1e-06
        %v2426 = vadd.f32 %v2390, 1e-06
        %v2427 = vadd.f32 %v2391, 1e-06
        %v2428 = vadd.f32 %v2392, 1e-06
        %v2429 = vadd.f32 %v2393, 1e-06
        %v2430 = vadd.f32 %v2394, 1e-06
        %v2431 = vadd.f32 %v2395, 1e-06
        %v2432 = vadd.f32 %v2396, 1e-06
        %v2433 = vadd.f32 %v2397, 1e-06
        %v2434 = vadd.f32 %v2398, 1e-06
        %v2435 = vadd.f32 %v2399, 1e-06
        %v2436 = vadd.f32 %v2400, 1e-06
        %v2437 = vadd.f32 %v2401, 1e-06
        %v2438 = vadd.f32 %v2402, 1e-06
        %v2439 = vadd.f32 %v2403, 1e-06
        %v2440 = vadd.f32 %v2404, 1e-06
        %v2441 = vadd.f32 %v2405, 1e-06
        %v2442 = vadd.f32 %v2406, 1e-06
        %v2443 = vadd.f32 %v2407, 1e-06
        %v2444 = vadd.f32 %v2408, 1e-06
        %v2445 = vadd.f32 %v2409, 1e-06
        %v2446 = vadd.f32 %v2410, 1e-06
        %v2447 = vadd.f32 %v2411, 1e-06
        %v2448 = vadd.f32 %v2412, 1e-06
        %v2449 = vadd.f32 %v2413, 1e-06
        %v2450 = vadd.f32 %v2414, 1e-06
        %v2451 = vadd.f32 %v2415, 1e-06
        %v2452 = vadd.f32 %v2416, 1e-06
        %v2453 = vadd.f32 %v2417, 1e-06
        %v2454 = vadd.f32 %v2418, 1e-06
        %v2455 = vadd.f32 %v2419, 1e-06
        %v2456 = vadd.f32 %v2420, 1e-06
        %v2457 = vrsqrt.pop %v2421
        %v2458 = vrsqrt.pop %v2422
        %v2459 = vrsqrt.pop %v2423
        %v2460 = vrsqrt.pop %v2424
        %v2461 = vrsqrt.pop %v2425
        %v2462 = vrsqrt.pop %v2426
        %v2463 = vrsqrt.pop %v2427
        %v2464 = vrsqrt.pop %v2428
        %v2465 = vrsqrt.pop %v2429
        %v2466 = vrsqrt.pop %v2430
        %v2467 = vrsqrt.pop %v2431
        %v2468 = vrsqrt.pop %v2432
        %v2469 = vrsqrt.pop %v2433
        %v2470 = vrsqrt.pop %v2434
        %v2471 = vrsqrt.pop %v2435
        %v2472 = vrsqrt.pop %v2436
        %v2473 = vrsqrt.pop %v2437
        %v2474 = vrsqrt.pop %v2438
        %v2475 = vrsqrt.pop %v2439
        %v2476 = vrsqrt.pop %v2440
        %v2477 = vrsqrt.pop %v2441
        %v2478 = vrsqrt.pop %v2442
        %v2479 = vrsqrt.pop %v2443
        %v2480 = vrsqrt.pop %v2444
        %v2481 = vrsqrt.pop %v2445
        %v2482 = vrsqrt.pop %v2446
        %v2483 = vrsqrt.pop %v2447
        %v2484 = vrsqrt.pop %v2448
        %v2485 = vrsqrt.pop %v2449
        %v2486 = vrsqrt.pop %v2450
        %v2487 = vrsqrt.pop %v2451
        %v2488 = vrsqrt.pop %v2452
        %v2489 = vrsqrt.pop %v2453
        %v2490 = vrsqrt.pop %v2454
        %v2491 = vrsqrt.pop %v2455
        %v2492 = vrsqrt.pop %v2456
        %v2493 = vmul.f32 %v2205, %v2457
        %v2494 = vmul.f32 %v2206, %v2458
        %v2495 = vmul.f32 %v2207, %v2459
        %v2496 = vmul.f32 %v2208, %v2460
        %v2497 = vmul.f32 %v2209, %v2461
        %v2498 = vmul.f32 %v2210, %v2462
        %v2499 = vmul.f32 %v2211, %v2463
        %v2500 = vmul.f32 %v2212, %v2464
        %v2501 = vmul.f32 %v2213, %v2465
        %v2502 = vmul.f32 %v2214, %v2466
        %v2503 = vmul.f32 %v2215, %v2467
        %v2504 = vmul.f32 %v2216, %v2468
        %v2505 = vmul.f32 %v2217, %v2469
        %v2506 = vmul.f32 %v2218, %v2470
        %v2507 = vmul.f32 %v2219, %v2471
        %v2508 = vmul.f32 %v2220, %v2472
        %v2509 = vmul.f32 %v2221, %v2473
        %v2510 = vmul.f32 %v2222, %v2474
        %v2511 = vmul.f32 %v2223, %v2475
        %v2512 = vmul.f32 %v2224, %v2476
        %v2513 = vmul.f32 %v2225, %v2477
        %v2514 = vmul.f32 %v2226, %v2478
        %v2515 = vmul.f32 %v2227, %v2479
        %v2516 = vmul.f32 %v2228, %v2480
        %v2517 = vmul.f32 %v2229, %v2481
        %v2518 = vmul.f32 %v2230, %v2482
        %v2519 = vmul.f32 %v2231, %v2483
        %v2520 = vmul.f32 %v2232, %v2484
        %v2521 = vmul.f32 %v2233, %v2485
        %v2522 = vmul.f32 %v2234, %v2486
        %v2523 = vmul.f32 %v2235, %v2487
        %v2524 = vmul.f32 %v2236, %v2488
        %v2525 = vmul.f32 %v2237, %v2489
        %v2526 = vmul.f32 %v2238, %v2490
        %v2527 = vmul.f32 %v2239, %v2491
        %v2528 = vmul.f32 %v2240, %v2492
        %v2529 = vld [vmem:[%s5] sm:$0x1]
        %v2531 = vlaneseq
        %v2532 = vshrl.u32 %v2531, 7
        %v2533 = vsub.s32 0, %v2532
        %v2534 = vrot.slane %v2529, %v2533
        %v2536 = vmul.f32 %v2493, %v2534
        %v2537 = vmul.f32 %v2494, %v2534
        %v2538 = vmul.f32 %v2495, %v2534
        %v2539 = vmul.f32 %v2496, %v2534
        %v2540 = vmul.f32 %v2497, %v2534
        %v2541 = vmul.f32 %v2498, %v2534
        %v2542 = vmul.f32 %v2499, %v2534
        %v2543 = vmul.f32 %v2500, %v2534
        %v2544 = vmul.f32 %v2501, %v2534
        %v2545 = vmul.f32 %v2502, %v2534
        %v2546 = vmul.f32 %v2503, %v2534
        %v2547 = vmul.f32 %v2504, %v2534
        %v2548 = vmul.f32 %v2505, %v2534
        %v2549 = vmul.f32 %v2506, %v2534
        %v2550 = vmul.f32 %v2507, %v2534
        %v2551 = vmul.f32 %v2508, %v2534
        %v2552 = vmul.f32 %v2509, %v2534
        %v2553 = vmul.f32 %v2510, %v2534
        %v2554 = vmul.f32 %v2511, %v2534
        %v2555 = vmul.f32 %v2512, %v2534
        %v2556 = vmul.f32 %v2513, %v2534
        %v2557 = vmul.f32 %v2514, %v2534
        %v2558 = vmul.f32 %v2515, %v2534
        %v2559 = vmul.f32 %v2516, %v2534
        %v2560 = vmul.f32 %v2517, %v2534
        %v2561 = vmul.f32 %v2518, %v2534
        %v2562 = vmul.f32 %v2519, %v2534
        %v2563 = vmul.f32 %v2520, %v2534
        %v2564 = vmul.f32 %v2521, %v2534
        %v2565 = vmul.f32 %v2522, %v2534
        %v2566 = vmul.f32 %v2523, %v2534
        %v2567 = vmul.f32 %v2524, %v2534
        %v2568 = vmul.f32 %v2525, %v2534
        %v2569 = vmul.f32 %v2526, %v2534
        %v2570 = vmul.f32 %v2527, %v2534
        %v2571 = vmul.f32 %v2528, %v2534
        %v2572 = vld [vmem:[%s6] sm:$0x1]
        %v2574 = vlaneseq
        %v2575 = vshrl.u32 %v2574, 7
        %v2576 = vsub.s32 0, %v2575
        %v2577 = vrot.slane %v2572, %v2576
        %v2579 = vadd.f32 %v2536, %v2577
        %v2580 = vadd.f32 %v2537, %v2577
        %v2581 = vadd.f32 %v2538, %v2577
        %v2582 = vadd.f32 %v2539, %v2577
        %v2583 = vadd.f32 %v2540, %v2577
        %v2584 = vadd.f32 %v2541, %v2577
        %v2585 = vadd.f32 %v2542, %v2577
        %v2586 = vadd.f32 %v2543, %v2577
        %v2587 = vadd.f32 %v2544, %v2577
        %v2588 = vadd.f32 %v2545, %v2577
        %v2589 = vadd.f32 %v2546, %v2577
        %v2590 = vadd.f32 %v2547, %v2577
        %v2591 = vadd.f32 %v2548, %v2577
        %v2592 = vadd.f32 %v2549, %v2577
        %v2593 = vadd.f32 %v2550, %v2577
        %v2594 = vadd.f32 %v2551, %v2577
        %v2595 = vadd.f32 %v2552, %v2577
        %v2596 = vadd.f32 %v2553, %v2577
        %v2597 = vadd.f32 %v2554, %v2577
        %v2598 = vadd.f32 %v2555, %v2577
        %v2599 = vadd.f32 %v2556, %v2577
        %v2600 = vadd.f32 %v2557, %v2577
        %v2601 = vadd.f32 %v2558, %v2577
        %v2602 = vadd.f32 %v2559, %v2577
        %v2603 = vadd.f32 %v2560, %v2577
        %v2604 = vadd.f32 %v2561, %v2577
        %v2605 = vadd.f32 %v2562, %v2577
        %v2606 = vadd.f32 %v2563, %v2577
        %v2607 = vadd.f32 %v2564, %v2577
        %v2608 = vadd.f32 %v2565, %v2577
        %v2609 = vadd.f32 %v2566, %v2577
        %v2610 = vadd.f32 %v2567, %v2577
        %v2611 = vadd.f32 %v2568, %v2577
        %v2612 = vadd.f32 %v2569, %v2577
        %v2613 = vadd.f32 %v2570, %v2577
        %v2614 = vadd.f32 %v2571, %v2577
        %v2615 = vpack.c.bf16 %v2580, %v2579
        %v2616 = vpack.c.bf16 %v2582, %v2581
        %v2617 = vpack.c.bf16 %v2584, %v2583
        %v2618 = vpack.c.bf16 %v2586, %v2585
        %v2619 = vpack.c.bf16 %v2588, %v2587
        %v2620 = vpack.c.bf16 %v2590, %v2589
        %v2621 = vpack.c.bf16 %v2592, %v2591
        %v2622 = vpack.c.bf16 %v2594, %v2593
        %v2623 = vpack.c.bf16 %v2596, %v2595
        %v2624 = vpack.c.bf16 %v2598, %v2597
        %v2625 = vpack.c.bf16 %v2600, %v2599
        %v2626 = vpack.c.bf16 %v2602, %v2601
        %v2627 = vpack.c.bf16 %v2604, %v2603
        %v2628 = vpack.c.bf16 %v2606, %v2605
        %v2629 = vpack.c.bf16 %v2608, %v2607
        %v2630 = vpack.c.bf16 %v2610, %v2609
        %v2631 = vpack.c.bf16 %v2612, %v2611
        %v2632 = vpack.c.bf16 %v2614, %v2613
        %v2633 = vld [vmem:[%s7] sm:$0xf]
        %v2634 = vld [vmem:[%s7 + $0x4] sm:$0xf]
        %v2637 = vunpack.c.l.b16 %v2633
        %v2638 = vunpack.c.l.b16 %v2634
        %v2639 = vpack.c.b16 %v2638, %v2637
        %v2642 = vsel %vm1258, %v2615, 0
        %v2645 = vsel %vm1258, %v2616, 0
        %v2648 = vsel %vm1258, %v2617, 0
        %v2651 = vsel %vm1258, %v2618, 0
        %v2654 = vsel %vm1258, %v2619, 0
        %v2657 = vsel %vm1258, %v2620, 0
        %v2660 = vsel %vm1258, %v2621, 0
        %v2663 = vsel %vm1258, %v2622, 0
        %v2666 = vsel %vm1258, %v2623, 0
        %v2669 = vsel %vm1258, %v2624, 0
        %v2672 = vsel %vm1258, %v2625, 0
        %v2675 = vsel %vm1258, %v2626, 0
        %v2678 = vsel %vm1258, %v2627, 0
        %v2681 = vsel %vm1258, %v2628, 0
        %v2684 = vsel %vm1258, %v2629, 0
        %v2687 = vsel %vm1258, %v2630, 0
        %v2690 = vsel %vm1258, %v2631, 0
        %v2693 = vsel %vm1258, %v2632, 0
        %2695 = vmatprep.subr.bf16.mxu0 0
        %2696 = vmatpush1.bf16.msra.mxu0 0
        %2697 = vmatprep.subr.bf16.mxu0 0
        %2698 = vmatpush1.bf16.msra.mxu0 0
        %2699 = vmatprep.subr.bf16.mxu0 0
        %2700 = vmatpush1.bf16.msra.mxu0 0
        %2701 = vmatprep.subr.bf16.mxu0 0
        %2702 = vmatpush1.bf16.msra.mxu0 0
        %2703 = vmatprep.subr.bf16.mxu0 0
        %2704 = vmatpush1.bf16.msra.mxu0 0
        %2705 = vmatprep.subr.bf16.mxu0 0
        %2706 = vmatpush1.bf16.msra.mxu0 0
        %2707 = vmatprep.subr.bf16.mxu0 0
        %2708 = vmatpush1.bf16.msra.mxu0 0
        %2709 = vmatprep.subr.bf16.mxu0 0
        %2710 = vmatpush1.bf16.msra.mxu0 %v2639
        %2711 = vmatprep.subr.bf16.mxu0 0
        %2712 = vmatpush2.bf16.msra.mxu0 0
        %2713 = vmatprep.subr.bf16.mxu0 0
        %2714 = vmatpush2.bf16.msra.mxu0 0
        %2715 = vmatprep.subr.bf16.mxu0 0
        %2716 = vmatpush2.bf16.msra.mxu0 0
        %2717 = vmatprep.subr.bf16.mxu0 0
        %2718 = vmatpush2.bf16.msra.mxu0 0
        %2719 = vmatprep.subr.bf16.mxu0 0
        %2720 = vmatpush2.bf16.msra.mxu0 0
        %2721 = vmatprep.subr.bf16.mxu0 0
        %2722 = vmatpush2.bf16.msra.mxu0 0
        %2723 = vmatprep.subr.bf16.mxu0 0
        %2724 = vmatpush2.bf16.msra.mxu0 0
        %2725 = vmatprep.subr.bf16.mxu0 0
        %2726 = vmatpush2.bf16.msra.mxu0 0
        %2727 = vmatprep.mubr.bf16.mxu0 0
        %2728 = vmatmul.mubr.bf16.gmra.mxu0 %v2642
        %v2729 = vpop.f32.mrf.mxu0
        %v2730 = vadd.f32 0.0, %v2729
        %v2731 = vpop.f32.mrf.mxu0
        %v2732 = vpop.f32.mrf.mxu0
        %v2733 = vadd.f32 0.0, %v2732
        %v2734 = vpop.f32.mrf.mxu0
        %2735 = vmatprep.mubr.bf16.mxu0 0
        %2736 = vmatmul.mubr.bf16.gmra.mxu0 %v2645
        %v2737 = vpop.f32.mrf.mxu0
        %v2738 = vadd.f32 0.0, %v2737
        %v2739 = vpop.f32.mrf.mxu0
        %v2740 = vpop.f32.mrf.mxu0
        %v2741 = vadd.f32 0.0, %v2740
        %v2742 = vpop.f32.mrf.mxu0
        %2743 = vmatprep.mubr.bf16.mxu0 0
        %2744 = vmatmul.mubr.bf16.gmra.mxu0 %v2648
        %v2745 = vpop.f32.mrf.mxu0
        %v2746 = vadd.f32 0.0, %v2745
        %v2747 = vpop.f32.mrf.mxu0
        %v2748 = vpop.f32.mrf.mxu0
        %v2749 = vadd.f32 0.0, %v2748
        %v2750 = vpop.f32.mrf.mxu0
        %2751 = vmatprep.mubr.bf16.mxu0 0
        %2752 = vmatmul.mubr.bf16.gmra.mxu0 %v2651
        %v2753 = vpop.f32.mrf.mxu0
        %v2754 = vadd.f32 0.0, %v2753
        %v2755 = vpop.f32.mrf.mxu0
        %v2756 = vpop.f32.mrf.mxu0
        %v2757 = vadd.f32 0.0, %v2756
        %v2758 = vpop.f32.mrf.mxu0
        %2759 = vmatprep.mubr.bf16.mxu0 0
        %2760 = vmatmul.mubr.bf16.gmra.mxu0 %v2654
        %v2761 = vpop.f32.mrf.mxu0
        %v2762 = vadd.f32 0.0, %v2761
        %v2763 = vpop.f32.mrf.mxu0
        %v2764 = vpop.f32.mrf.mxu0
        %v2765 = vadd.f32 0.0, %v2764
        %v2766 = vpop.f32.mrf.mxu0
        %2767 = vmatprep.mubr.bf16.mxu0 0
        %2768 = vmatmul.mubr.bf16.gmra.mxu0 %v2657
        %v2769 = vpop.f32.mrf.mxu0
        %v2770 = vadd.f32 0.0, %v2769
        %v2771 = vpop.f32.mrf.mxu0
        %v2772 = vpop.f32.mrf.mxu0
        %v2773 = vadd.f32 0.0, %v2772
        %v2774 = vpop.f32.mrf.mxu0
        %2775 = vmatprep.mubr.bf16.mxu0 0
        %2776 = vmatmul.mubr.bf16.gmra.mxu0 %v2660
        %v2777 = vpop.f32.mrf.mxu0
        %v2778 = vadd.f32 0.0, %v2777
        %v2779 = vpop.f32.mrf.mxu0
        %v2780 = vpop.f32.mrf.mxu0
        %v2781 = vadd.f32 0.0, %v2780
        %v2782 = vpop.f32.mrf.mxu0
        %2783 = vmatprep.mubr.bf16.mxu0 0
        %2784 = vmatmul.mubr.bf16.gmra.mxu0 %v2663
        %v2785 = vpop.f32.mrf.mxu0
        %v2786 = vadd.f32 0.0, %v2785
        %v2787 = vpop.f32.mrf.mxu0
        %v2788 = vpop.f32.mrf.mxu0
        %v2789 = vadd.f32 0.0, %v2788
        %v2790 = vpop.f32.mrf.mxu0
        %2791 = vmatprep.mubr.bf16.mxu0 0
        %2792 = vmatmul.mubr.bf16.gmra.mxu0 %v2666
        %v2793 = vpop.f32.mrf.mxu0
        %v2794 = vadd.f32 0.0, %v2793
        %v2795 = vpop.f32.mrf.mxu0
        %v2796 = vpop.f32.mrf.mxu0
        %v2797 = vadd.f32 0.0, %v2796
        %v2798 = vpop.f32.mrf.mxu0
        %2799 = vmatprep.mubr.bf16.mxu0 0
        %2800 = vmatmul.mubr.bf16.gmra.mxu0 %v2669
        %v2801 = vpop.f32.mrf.mxu0
        %v2802 = vadd.f32 0.0, %v2801
        %v2803 = vpop.f32.mrf.mxu0
        %v2804 = vpop.f32.mrf.mxu0
        %v2805 = vadd.f32 0.0, %v2804
        %v2806 = vpop.f32.mrf.mxu0
        %2807 = vmatprep.mubr.bf16.mxu0 0
        %2808 = vmatmul.mubr.bf16.gmra.mxu0 %v2672
        %v2809 = vpop.f32.mrf.mxu0
        %v2810 = vadd.f32 0.0, %v2809
        %v2811 = vpop.f32.mrf.mxu0
        %v2812 = vpop.f32.mrf.mxu0
        %v2813 = vadd.f32 0.0, %v2812
        %v2814 = vpop.f32.mrf.mxu0
        %2815 = vmatprep.mubr.bf16.mxu0 0
        %2816 = vmatmul.mubr.bf16.gmra.mxu0 %v2675
        %v2817 = vpop.f32.mrf.mxu0
        %v2818 = vadd.f32 0.0, %v2817
        %v2819 = vpop.f32.mrf.mxu0
        %v2820 = vpop.f32.mrf.mxu0
        %v2821 = vadd.f32 0.0, %v2820
        %v2822 = vpop.f32.mrf.mxu0
        %2823 = vmatprep.mubr.bf16.mxu0 0
        %2824 = vmatmul.mubr.bf16.gmra.mxu0 %v2678
        %v2825 = vpop.f32.mrf.mxu0
        %v2826 = vadd.f32 0.0, %v2825
        %v2827 = vpop.f32.mrf.mxu0
        %v2828 = vpop.f32.mrf.mxu0
        %v2829 = vadd.f32 0.0, %v2828
        %v2830 = vpop.f32.mrf.mxu0
        %2831 = vmatprep.mubr.bf16.mxu0 0
        %2832 = vmatmul.mubr.bf16.gmra.mxu0 %v2681
        %v2833 = vpop.f32.mrf.mxu0
        %v2834 = vadd.f32 0.0, %v2833
        %v2835 = vpop.f32.mrf.mxu0
        %v2836 = vpop.f32.mrf.mxu0
        %v2837 = vadd.f32 0.0, %v2836
        %v2838 = vpop.f32.mrf.mxu0
        %2839 = vmatprep.mubr.bf16.mxu0 0
        %2840 = vmatmul.mubr.bf16.gmra.mxu0 %v2684
        %v2841 = vpop.f32.mrf.mxu0
        %v2842 = vadd.f32 0.0, %v2841
        %v2843 = vpop.f32.mrf.mxu0
        %v2844 = vpop.f32.mrf.mxu0
        %v2845 = vadd.f32 0.0, %v2844
        %v2846 = vpop.f32.mrf.mxu0
        %2847 = vmatprep.mubr.bf16.mxu0 0
        %2848 = vmatmul.mubr.bf16.gmra.mxu0 %v2687
        %v2849 = vpop.f32.mrf.mxu0
        %v2850 = vadd.f32 0.0, %v2849
        %v2851 = vpop.f32.mrf.mxu0
        %v2852 = vpop.f32.mrf.mxu0
        %v2853 = vadd.f32 0.0, %v2852
        %v2854 = vpop.f32.mrf.mxu0
        %2855 = vmatprep.mubr.bf16.mxu0 0
        %2856 = vmatmul.mubr.bf16.gmra.mxu0 %v2690
        %v2857 = vpop.f32.mrf.mxu0
        %v2858 = vadd.f32 0.0, %v2857
        %v2859 = vpop.f32.mrf.mxu0
        %v2860 = vpop.f32.mrf.mxu0
        %v2861 = vadd.f32 0.0, %v2860
        %v2862 = vpop.f32.mrf.mxu0
        %2863 = vmatprep.mubr.bf16.mxu0 0
        %2864 = vmatmul.mubr.bf16.gmra.mxu0 %v2693
        %v2865 = vpop.f32.mrf.mxu0
        %v2866 = vadd.f32 0.0, %v2865
        %v2867 = vpop.f32.mrf.mxu0
        %v2868 = vpop.f32.mrf.mxu0
        %v2869 = vadd.f32 0.0, %v2868
        %v2870 = vpop.f32.mrf.mxu0
        %2871 = vdwg.mxu0
        %s2872 = smul.u32 %s39, 16
        %s2873 = ssub.s32 %s2872, 1
        %v2874 = vstv %s2873
        %v2875 = vadd.s32 %v2874, 1
        %v2876 = vadd.s32 %v2874, 2
        %v2877 = vadd.s32 %v2874, 3
        %v2878 = vadd.s32 %v2874, 4
        %v2879 = vadd.s32 %v2874, 5
        %v2880 = vadd.s32 %v2874, 6
        %v2881 = vadd.s32 %v2874, 7
        %v2882 = vadd.s32 %v2874, 8
        %v2883 = vadd.s32 %v2874, 9
        %v2884 = vadd.s32 %v2874, 10
        %v2885 = vadd.s32 %v2874, 11
        %v2886 = vadd.s32 %v2874, 12
        %v2887 = vadd.s32 %v2874, 13
        %v2888 = vadd.s32 %v2874, 14
        %v2889 = vadd.s32 %v2874, 15
        %v2890 = vadd.s32 %v2874, 16
        %v2891 = vadd.s32 %v2874, 17
        %vm2892 = vcmp.ge.s32.totalorder %v2874, 0
        %vm2893 = vcmp.ge.s32.totalorder %v2875, 0
        %vm2894 = vcmp.ge.s32.totalorder %v2876, 0
        %vm2895 = vcmp.ge.s32.totalorder %v2877, 0
        %vm2896 = vcmp.ge.s32.totalorder %v2878, 0
        %vm2897 = vcmp.ge.s32.totalorder %v2879, 0
        %vm2898 = vcmp.ge.s32.totalorder %v2880, 0
        %vm2899 = vcmp.ge.s32.totalorder %v2881, 0
        %vm2900 = vcmp.ge.s32.totalorder %v2882, 0
        %vm2901 = vcmp.ge.s32.totalorder %v2883, 0
        %vm2902 = vcmp.ge.s32.totalorder %v2884, 0
        %vm2903 = vcmp.ge.s32.totalorder %v2885, 0
        %vm2904 = vcmp.ge.s32.totalorder %v2886, 0
        %vm2905 = vcmp.ge.s32.totalorder %v2887, 0
        %vm2906 = vcmp.ge.s32.totalorder %v2888, 0
        %vm2907 = vcmp.ge.s32.totalorder %v2889, 0
        %vm2908 = vcmp.ge.s32.totalorder %v2890, 0
        %vm2909 = vcmp.ge.s32.totalorder %v2891, 0
        %vm2910 = vcmp.lt.s32.totalorder %v2874, 16
        %vm2911 = vcmp.lt.s32.totalorder %v2875, 16
        %vm2912 = vcmp.lt.s32.totalorder %v2876, 16
        %vm2913 = vcmp.lt.s32.totalorder %v2877, 16
        %vm2914 = vcmp.lt.s32.totalorder %v2878, 16
        %vm2915 = vcmp.lt.s32.totalorder %v2879, 16
        %vm2916 = vcmp.lt.s32.totalorder %v2880, 16
        %vm2917 = vcmp.lt.s32.totalorder %v2881, 16
        %vm2918 = vcmp.lt.s32.totalorder %v2882, 16
        %vm2919 = vcmp.lt.s32.totalorder %v2883, 16
        %vm2920 = vcmp.lt.s32.totalorder %v2884, 16
        %vm2921 = vcmp.lt.s32.totalorder %v2885, 16
        %vm2922 = vcmp.lt.s32.totalorder %v2886, 16
        %vm2923 = vcmp.lt.s32.totalorder %v2887, 16
        %vm2924 = vcmp.lt.s32.totalorder %v2888, 16
        %vm2925 = vcmp.lt.s32.totalorder %v2889, 16
        %vm2926 = vcmp.lt.s32.totalorder %v2890, 16
        %vm2927 = vcmp.lt.s32.totalorder %v2891, 16
        %vm2928 = vmand %vm2892, %vm2910
        %vm2929 = vmand %vm2893, %vm2911
        %vm2930 = vmand %vm2894, %vm2912
        %vm2931 = vmand %vm2895, %vm2913
        %vm2932 = vmand %vm2896, %vm2914
        %vm2933 = vmand %vm2897, %vm2915
        %vm2934 = vmand %vm2898, %vm2916
        %vm2935 = vmand %vm2899, %vm2917
        %vm2936 = vmand %vm2900, %vm2918
        %vm2937 = vmand %vm2901, %vm2919
        %vm2938 = vmand %vm2902, %vm2920
        %vm2939 = vmand %vm2903, %vm2921
        %vm2940 = vmand %vm2904, %vm2922
        %vm2941 = vmand %vm2905, %vm2923
        %vm2942 = vmand %vm2906, %vm2924
        %vm2943 = vmand %vm2907, %vm2925
        %vm2944 = vmand %vm2908, %vm2926
        %vm2945 = vmand %vm2909, %vm2927
        %v2946 = vsel %vm2928, 1, 0
        %v2947 = vsel %vm2929, 1, 0
        %v2948 = vsel %vm2930, 1, 0
        %v2949 = vsel %vm2931, 1, 0
        %v2950 = vsel %vm2932, 1, 0
        %v2951 = vsel %vm2933, 1, 0
        %v2952 = vsel %vm2934, 1, 0
        %v2953 = vsel %vm2935, 1, 0
        %v2954 = vsel %vm2936, 1, 0
        %v2955 = vsel %vm2937, 1, 0
        %v2956 = vsel %vm2938, 1, 0
        %v2957 = vsel %vm2939, 1, 0
        %v2958 = vsel %vm2940, 1, 0
        %v2959 = vsel %vm2941, 1, 0
        %v2960 = vsel %vm2942, 1, 0
        %v2961 = vsel %vm2943, 1, 0
        %v2962 = vsel %vm2944, 1, 0
        %v2963 = vsel %vm2945, 1, 0
        %vm2964 = vcmp.eq.s32.totalorder %v2946, 1
        %vm2965 = vcmp.eq.s32.totalorder %v2947, 1
        %vm2966 = vcmp.eq.s32.totalorder %v2948, 1
        %vm2967 = vcmp.eq.s32.totalorder %v2949, 1
        %vm2968 = vcmp.eq.s32.totalorder %v2950, 1
        %vm2969 = vcmp.eq.s32.totalorder %v2951, 1
        %vm2970 = vcmp.eq.s32.totalorder %v2952, 1
        %vm2971 = vcmp.eq.s32.totalorder %v2953, 1
        %vm2972 = vcmp.eq.s32.totalorder %v2954, 1
        %vm2973 = vcmp.eq.s32.totalorder %v2955, 1
        %vm2974 = vcmp.eq.s32.totalorder %v2956, 1
        %vm2975 = vcmp.eq.s32.totalorder %v2957, 1
        %vm2976 = vcmp.eq.s32.totalorder %v2958, 1
        %vm2977 = vcmp.eq.s32.totalorder %v2959, 1
        %vm2978 = vcmp.eq.s32.totalorder %v2960, 1
        %vm2979 = vcmp.eq.s32.totalorder %v2961, 1
        %vm2980 = vcmp.eq.s32.totalorder %v2962, 1
        %vm2981 = vcmp.eq.s32.totalorder %v2963, 1
        %v2982 = vsel %vm2964, %v2730, 0.0
        %v2983 = vsel %vm2964, %v2733, 0.0
        %v2984 = vsel %vm2965, %v2738, 0.0
        %v2985 = vsel %vm2965, %v2741, 0.0
        %v2986 = vsel %vm2966, %v2746, 0.0
        %v2987 = vsel %vm2966, %v2749, 0.0
        %v2988 = vsel %vm2967, %v2754, 0.0
        %v2989 = vsel %vm2967, %v2757, 0.0
        %v2990 = vsel %vm2968, %v2762, 0.0
        %v2991 = vsel %vm2968, %v2765, 0.0
        %v2992 = vsel %vm2969, %v2770, 0.0
        %v2993 = vsel %vm2969, %v2773, 0.0
        %v2994 = vsel %vm2970, %v2778, 0.0
        %v2995 = vsel %vm2970, %v2781, 0.0
        %v2996 = vsel %vm2971, %v2786, 0.0
        %v2997 = vsel %vm2971, %v2789, 0.0
        %v2998 = vsel %vm2972, %v2794, 0.0
        %v2999 = vsel %vm2972, %v2797, 0.0
        %v3000 = vsel %vm2973, %v2802, 0.0
        %v3001 = vsel %vm2973, %v2805, 0.0
        %v3002 = vsel %vm2974, %v2810, 0.0
        %v3003 = vsel %vm2974, %v2813, 0.0
        %v3004 = vsel %vm2975, %v2818, 0.0
        %v3005 = vsel %vm2975, %v2821, 0.0
        %v3006 = vsel %vm2976, %v2826, 0.0
        %v3007 = vsel %vm2976, %v2829, 0.0
        %v3008 = vsel %vm2977, %v2834, 0.0
        %v3009 = vsel %vm2977, %v2837, 0.0
        %v3010 = vsel %vm2978, %v2842, 0.0
        %v3011 = vsel %vm2978, %v2845, 0.0
        %v3012 = vsel %vm2979, %v2850, 0.0
        %v3013 = vsel %vm2979, %v2853, 0.0
        %v3014 = vsel %vm2980, %v2858, 0.0
        %v3015 = vsel %vm2980, %v2861, 0.0
        %v3016 = vsel %vm2981, %v2866, 0.0
        %v3017 = vsel %vm2981, %v2869, 0.0
        %v3018 = vrot.slane %v2982, 7
        %v3019 = vrot.slane %v2984, 7
        %v3020 = vrot.slane %v2986, 7
        %v3021 = vrot.slane %v2988, 7
        %v3022 = vrot.slane %v2990, 7
        %v3023 = vrot.slane %v2992, 7
        %v3024 = vrot.slane %v2994, 7
        %v3025 = vrot.slane %v2996, 7
        %v3026 = vrot.slane %v2998, 7
        %v3027 = vrot.slane %v3000, 7
        %v3028 = vrot.slane %v3002, 7
        %v3029 = vrot.slane %v3004, 7
        %v3030 = vrot.slane %v3006, 7
        %v3031 = vrot.slane %v3008, 7
        %v3032 = vrot.slane %v3010, 7
        %v3033 = vrot.slane %v3012, 7
        %v3034 = vrot.slane %v3014, 7
        %v3035 = vrot.slane %v3016, 7
        %v3036 = vrot.slane %v2983, 7
        %v3037 = vrot.slane %v2985, 7
        %v3038 = vrot.slane %v2987, 7
        %v3039 = vrot.slane %v2989, 7
        %v3040 = vrot.slane %v2991, 7
        %v3041 = vrot.slane %v2993, 7
        %v3042 = vrot.slane %v2995, 7
        %v3043 = vrot.slane %v2997, 7
        %v3044 = vrot.slane %v2999, 7
        %v3045 = vrot.slane %v3001, 7
        %v3046 = vrot.slane %v3003, 7
        %v3047 = vrot.slane %v3005, 7
        %v3048 = vrot.slane %v3007, 7
        %v3049 = vrot.slane %v3009, 7
        %v3050 = vrot.slane %v3011, 7
        %v3051 = vrot.slane %v3013, 7
        %v3052 = vrot.slane %v3015, 7
        %v3053 = vrot.slane %v3017, 7
        %v3054 = vsel %vm674, %v3018, %v3036
        %v3055 = vsel %vm674, %v3019, %v3037
        %v3056 = vsel %vm674, %v3020, %v3038
        %v3057 = vsel %vm674, %v3021, %v3039
        %v3058 = vsel %vm674, %v3022, %v3040
        %v3059 = vsel %vm674, %v3023, %v3041
        %v3060 = vsel %vm674, %v3024, %v3042
        %v3061 = vsel %vm674, %v3025, %v3043
        %v3062 = vsel %vm674, %v3026, %v3044
        %v3063 = vsel %vm674, %v3027, %v3045
        %v3064 = vsel %vm674, %v3028, %v3046
        %v3065 = vsel %vm674, %v3029, %v3047
        %v3066 = vsel %vm674, %v3030, %v3048
        %v3067 = vsel %vm674, %v3031, %v3049
        %v3068 = vsel %vm674, %v3032, %v3050
        %v3069 = vsel %vm674, %v3033, %v3051
        %v3070 = vsel %vm674, %v3034, %v3052
        %v3071 = vsel %vm674, %v3035, %v3053
        %v3072 = vsel %vm674, %v3036, %v3018
        %v3073 = vsel %vm674, %v3037, %v3019
        %v3074 = vsel %vm674, %v3038, %v3020
        %v3075 = vsel %vm674, %v3039, %v3021
        %v3076 = vsel %vm674, %v3040, %v3022
        %v3077 = vsel %vm674, %v3041, %v3023
        %v3078 = vsel %vm674, %v3042, %v3024
        %v3079 = vsel %vm674, %v3043, %v3025
        %v3080 = vsel %vm674, %v3044, %v3026
        %v3081 = vsel %vm674, %v3045, %v3027
        %v3082 = vsel %vm674, %v3046, %v3028
        %v3083 = vsel %vm674, %v3047, %v3029
        %v3084 = vsel %vm674, %v3048, %v3030
        %v3085 = vsel %vm674, %v3049, %v3031
        %v3086 = vsel %vm674, %v3050, %v3032
        %v3087 = vsel %vm674, %v3051, %v3033
        %v3088 = vsel %vm674, %v3052, %v3034
        %v3089 = vsel %vm674, %v3053, %v3035
        %v3090 = vsel %vm719, 0.0, %v3072
        %v3091 = vsel %vm720, 0.0, %v3054
        %v3092 = vsel %vm719, 0.0, %v3073
        %v3093 = vsel %vm720, 0.0, %v3055
        %v3094 = vsel %vm719, 0.0, %v3074
        %v3095 = vsel %vm720, 0.0, %v3056
        %v3096 = vsel %vm719, 0.0, %v3075
        %v3097 = vsel %vm720, 0.0, %v3057
        %v3098 = vsel %vm719, 0.0, %v3076
        %v3099 = vsel %vm720, 0.0, %v3058
        %v3100 = vsel %vm719, 0.0, %v3077
        %v3101 = vsel %vm720, 0.0, %v3059
        %v3102 = vsel %vm719, 0.0, %v3078
        %v3103 = vsel %vm720, 0.0, %v3060
        %v3104 = vsel %vm719, 0.0, %v3079
        %v3105 = vsel %vm720, 0.0, %v3061
        %v3106 = vsel %vm719, 0.0, %v3080
        %v3107 = vsel %vm720, 0.0, %v3062
        %v3108 = vsel %vm719, 0.0, %v3081
        %v3109 = vsel %vm720, 0.0, %v3063
        %v3110 = vsel %vm719, 0.0, %v3082
        %v3111 = vsel %vm720, 0.0, %v3064
        %v3112 = vsel %vm719, 0.0, %v3083
        %v3113 = vsel %vm720, 0.0, %v3065
        %v3114 = vsel %vm719, 0.0, %v3084
        %v3115 = vsel %vm720, 0.0, %v3066
        %v3116 = vsel %vm719, 0.0, %v3085
        %v3117 = vsel %vm720, 0.0, %v3067
        %v3118 = vsel %vm719, 0.0, %v3086
        %v3119 = vsel %vm720, 0.0, %v3068
        %v3120 = vsel %vm719, 0.0, %v3087
        %v3121 = vsel %vm720, 0.0, %v3069
        %v3122 = vsel %vm719, 0.0, %v3088
        %v3123 = vsel %vm720, 0.0, %v3070
        %v3124 = vsel %vm719, 0.0, %v3089
        %v3125 = vsel %vm720, 0.0, %v3071
        %v3126 = vld [vmem:[%s8] sm:$0x1]
        %v3127 = vlaneseq
        %v3128 = vshrl.u32 %v3127, 7
        %v3129 = vsub.s32 0, %v3128
        %v3130 = vrot.slane %v3126, %v3129
        %v3131 = vmul.f32 %v3090, %v3130
        %v3132 = vmul.f32 %v3091, %v3130
        %v3133 = vmul.f32 %v3092, %v3130
        %v3134 = vmul.f32 %v3093, %v3130
        %v3135 = vmul.f32 %v3094, %v3130
        %v3136 = vmul.f32 %v3095, %v3130
        %v3137 = vmul.f32 %v3096, %v3130
        %v3138 = vmul.f32 %v3097, %v3130
        %v3139 = vmul.f32 %v3098, %v3130
        %v3140 = vmul.f32 %v3099, %v3130
        %v3141 = vmul.f32 %v3100, %v3130
        %v3142 = vmul.f32 %v3101, %v3130
        %v3143 = vmul.f32 %v3102, %v3130
        %v3144 = vmul.f32 %v3103, %v3130
        %v3145 = vmul.f32 %v3104, %v3130
        %v3146 = vmul.f32 %v3105, %v3130
        %v3147 = vmul.f32 %v3106, %v3130
        %v3148 = vmul.f32 %v3107, %v3130
        %v3149 = vmul.f32 %v3108, %v3130
        %v3150 = vmul.f32 %v3109, %v3130
        %v3151 = vmul.f32 %v3110, %v3130
        %v3152 = vmul.f32 %v3111, %v3130
        %v3153 = vmul.f32 %v3112, %v3130
        %v3154 = vmul.f32 %v3113, %v3130
        %v3155 = vmul.f32 %v3114, %v3130
        %v3156 = vmul.f32 %v3115, %v3130
        %v3157 = vmul.f32 %v3116, %v3130
        %v3158 = vmul.f32 %v3117, %v3130
        %v3159 = vmul.f32 %v3118, %v3130
        %v3160 = vmul.f32 %v3119, %v3130
        %v3161 = vmul.f32 %v3120, %v3130
        %v3162 = vmul.f32 %v3121, %v3130
        %v3163 = vadd.f32 %v3131, 0.0
        %v3164 = vadd.f32 %v3132, 0.0
        %v3165 = vadd.f32 %v3133, 0.0
        %v3166 = vadd.f32 %v3134, 0.0
        %v3167 = vadd.f32 %v3135, 0.0
        %v3168 = vadd.f32 %v3136, 0.0
        %v3169 = vadd.f32 %v3137, 0.0
        %v3170 = vadd.f32 %v3138, 0.0
        %v3171 = vadd.f32 %v3139, 0.0
        %v3172 = vadd.f32 %v3140, 0.0
        %v3173 = vadd.f32 %v3141, 0.0
        %v3174 = vadd.f32 %v3142, 0.0
        %v3175 = vadd.f32 %v3143, 0.0
        %v3176 = vadd.f32 %v3144, 0.0
        %v3177 = vadd.f32 %v3145, 0.0
        %v3178 = vadd.f32 %v3146, 0.0
        %v3179 = vadd.f32 %v3147, 0.0
        %v3180 = vadd.f32 %v3148, 0.0
        %v3181 = vadd.f32 %v3149, 0.0
        %v3182 = vadd.f32 %v3150, 0.0
        %v3183 = vadd.f32 %v3151, 0.0
        %v3184 = vadd.f32 %v3152, 0.0
        %v3185 = vadd.f32 %v3153, 0.0
        %v3186 = vadd.f32 %v3154, 0.0
        %v3187 = vadd.f32 %v3155, 0.0
        %v3188 = vadd.f32 %v3156, 0.0
        %v3189 = vadd.f32 %v3157, 0.0
        %v3190 = vadd.f32 %v3158, 0.0
        %v3191 = vadd.f32 %v3159, 0.0
        %v3192 = vadd.f32 %v3160, 0.0
        %v3193 = vadd.f32 %v3161, 0.0
        %v3194 = vadd.f32 %v3162, 0.0
        %v3195 = vld [vmem:[%s8 + $0x3] sm:$0x1]
        %v3196 = vlaneseq
        %v3197 = vshrl.u32 %v3196, 7
        %v3198 = vsub.s32 0, %v3197
        %v3199 = vrot.slane %v3195, %v3198
        %v3200 = vmul.f32 %v3092, %v3199
        %v3201 = vmul.f32 %v3093, %v3199
        %v3202 = vmul.f32 %v3094, %v3199
        %v3203 = vmul.f32 %v3095, %v3199
        %v3204 = vmul.f32 %v3096, %v3199
        %v3205 = vmul.f32 %v3097, %v3199
        %v3206 = vmul.f32 %v3098, %v3199
        %v3207 = vmul.f32 %v3099, %v3199
        %v3208 = vmul.f32 %v3100, %v3199
        %v3209 = vmul.f32 %v3101, %v3199
        %v3210 = vmul.f32 %v3102, %v3199
        %v3211 = vmul.f32 %v3103, %v3199
        %v3212 = vmul.f32 %v3104, %v3199
        %v3213 = vmul.f32 %v3105, %v3199
        %v3214 = vmul.f32 %v3106, %v3199
        %v3215 = vmul.f32 %v3107, %v3199
        %v3216 = vmul.f32 %v3108, %v3199
        %v3217 = vmul.f32 %v3109, %v3199
        %v3218 = vmul.f32 %v3110, %v3199
        %v3219 = vmul.f32 %v3111, %v3199
        %v3220 = vmul.f32 %v3112, %v3199
        %v3221 = vmul.f32 %v3113, %v3199
        %v3222 = vmul.f32 %v3114, %v3199
        %v3223 = vmul.f32 %v3115, %v3199
        %v3224 = vmul.f32 %v3116, %v3199
        %v3225 = vmul.f32 %v3117, %v3199
        %v3226 = vmul.f32 %v3118, %v3199
        %v3227 = vmul.f32 %v3119, %v3199
        %v3228 = vmul.f32 %v3120, %v3199
        %v3229 = vmul.f32 %v3121, %v3199
        %v3230 = vmul.f32 %v3122, %v3199
        %v3231 = vmul.f32 %v3123, %v3199
        %v3232 = vadd.f32 %v3163, %v3200
        %v3233 = vadd.f32 %v3164, %v3201
        %v3234 = vadd.f32 %v3165, %v3202
        %v3235 = vadd.f32 %v3166, %v3203
        %v3236 = vadd.f32 %v3167, %v3204
        %v3237 = vadd.f32 %v3168, %v3205
        %v3238 = vadd.f32 %v3169, %v3206
        %v3239 = vadd.f32 %v3170, %v3207
        %v3240 = vadd.f32 %v3171, %v3208
        %v3241 = vadd.f32 %v3172, %v3209
        %v3242 = vadd.f32 %v3173, %v3210
        %v3243 = vadd.f32 %v3174, %v3211
        %v3244 = vadd.f32 %v3175, %v3212
        %v3245 = vadd.f32 %v3176, %v3213
        %v3246 = vadd.f32 %v3177, %v3214
        %v3247 = vadd.f32 %v3178, %v3215
        %v3248 = vadd.f32 %v3179, %v3216
        %v3249 = vadd.f32 %v3180, %v3217
        %v3250 = vadd.f32 %v3181, %v3218
        %v3251 = vadd.f32 %v3182, %v3219
        %v3252 = vadd.f32 %v3183, %v3220
        %v3253 = vadd.f32 %v3184, %v3221
        %v3254 = vadd.f32 %v3185, %v3222
        %v3255 = vadd.f32 %v3186, %v3223
        %v3256 = vadd.f32 %v3187, %v3224
        %v3257 = vadd.f32 %v3188, %v3225
        %v3258 = vadd.f32 %v3189, %v3226
        %v3259 = vadd.f32 %v3190, %v3227
        %v3260 = vadd.f32 %v3191, %v3228
        %v3261 = vadd.f32 %v3192, %v3229
        %v3262 = vadd.f32 %v3193, %v3230
        %v3263 = vadd.f32 %v3194, %v3231
        %v3264 = vld [vmem:[%s8 + $0x6] sm:$0x1]
        %v3265 = vlaneseq
        %v3266 = vshrl.u32 %v3265, 7
        %v3267 = vsub.s32 0, %v3266
        %v3268 = vrot.slane %v3264, %v3267
        %v3269 = vmul.f32 %v3094, %v3268
        %v3270 = vmul.f32 %v3095, %v3268
        %v3271 = vmul.f32 %v3096, %v3268
        %v3272 = vmul.f32 %v3097, %v3268
        %v3273 = vmul.f32 %v3098, %v3268
        %v3274 = vmul.f32 %v3099, %v3268
        %v3275 = vmul.f32 %v3100, %v3268
        %v3276 = vmul.f32 %v3101, %v3268
        %v3277 = vmul.f32 %v3102, %v3268
        %v3278 = vmul.f32 %v3103, %v3268
        %v3279 = vmul.f32 %v3104, %v3268
        %v3280 = vmul.f32 %v3105, %v3268
        %v3281 = vmul.f32 %v3106, %v3268
        %v3282 = vmul.f32 %v3107, %v3268
        %v3283 = vmul.f32 %v3108, %v3268
        %v3284 = vmul.f32 %v3109, %v3268
        %v3285 = vmul.f32 %v3110, %v3268
        %v3286 = vmul.f32 %v3111, %v3268
        %v3287 = vmul.f32 %v3112, %v3268
        %v3288 = vmul.f32 %v3113, %v3268
        %v3289 = vmul.f32 %v3114, %v3268
        %v3290 = vmul.f32 %v3115, %v3268
        %v3291 = vmul.f32 %v3116, %v3268
        %v3292 = vmul.f32 %v3117, %v3268
        %v3293 = vmul.f32 %v3118, %v3268
        %v3294 = vmul.f32 %v3119, %v3268
        %v3295 = vmul.f32 %v3120, %v3268
        %v3296 = vmul.f32 %v3121, %v3268
        %v3297 = vmul.f32 %v3122, %v3268
        %v3298 = vmul.f32 %v3123, %v3268
        %v3299 = vmul.f32 %v3124, %v3268
        %v3300 = vmul.f32 %v3125, %v3268
        %v3301 = vadd.f32 %v3232, %v3269
        %v3302 = vadd.f32 %v3233, %v3270
        %v3303 = vadd.f32 %v3234, %v3271
        %v3304 = vadd.f32 %v3235, %v3272
        %v3305 = vadd.f32 %v3236, %v3273
        %v3306 = vadd.f32 %v3237, %v3274
        %v3307 = vadd.f32 %v3238, %v3275
        %v3308 = vadd.f32 %v3239, %v3276
        %v3309 = vadd.f32 %v3240, %v3277
        %v3310 = vadd.f32 %v3241, %v3278
        %v3311 = vadd.f32 %v3242, %v3279
        %v3312 = vadd.f32 %v3243, %v3280
        %v3313 = vadd.f32 %v3244, %v3281
        %v3314 = vadd.f32 %v3245, %v3282
        %v3315 = vadd.f32 %v3246, %v3283
        %v3316 = vadd.f32 %v3247, %v3284
        %v3317 = vadd.f32 %v3248, %v3285
        %v3318 = vadd.f32 %v3249, %v3286
        %v3319 = vadd.f32 %v3250, %v3287
        %v3320 = vadd.f32 %v3251, %v3288
        %v3321 = vadd.f32 %v3252, %v3289
        %v3322 = vadd.f32 %v3253, %v3290
        %v3323 = vadd.f32 %v3254, %v3291
        %v3324 = vadd.f32 %v3255, %v3292
        %v3325 = vadd.f32 %v3256, %v3293
        %v3326 = vadd.f32 %v3257, %v3294
        %v3327 = vadd.f32 %v3258, %v3295
        %v3328 = vadd.f32 %v3259, %v3296
        %v3329 = vadd.f32 %v3260, %v3297
        %v3330 = vadd.f32 %v3261, %v3298
        %v3331 = vadd.f32 %v3262, %v3299
        %v3332 = vadd.f32 %v3263, %v3300
        %v3333 = vld [vmem:[%s8 + $0x1] sm:$0x1]
        %v3334 = vlaneseq
        %v3335 = vshrl.u32 %v3334, 7
        %v3336 = vsub.s32 0, %v3335
        %v3337 = vrot.slane %v3333, %v3336
        %v3338 = vmul.f32 %v2982, %v3337
        %v3339 = vmul.f32 %v2983, %v3337
        %v3340 = vmul.f32 %v2984, %v3337
        %v3341 = vmul.f32 %v2985, %v3337
        %v3342 = vmul.f32 %v2986, %v3337
        %v3343 = vmul.f32 %v2987, %v3337
        %v3344 = vmul.f32 %v2988, %v3337
        %v3345 = vmul.f32 %v2989, %v3337
        %v3346 = vmul.f32 %v2990, %v3337
        %v3347 = vmul.f32 %v2991, %v3337
        %v3348 = vmul.f32 %v2992, %v3337
        %v3349 = vmul.f32 %v2993, %v3337
        %v3350 = vmul.f32 %v2994, %v3337
        %v3351 = vmul.f32 %v2995, %v3337
        %v3352 = vmul.f32 %v2996, %v3337
        %v3353 = vmul.f32 %v2997, %v3337
        %v3354 = vmul.f32 %v2998, %v3337
        %v3355 = vmul.f32 %v2999, %v3337
        %v3356 = vmul.f32 %v3000, %v3337
        %v3357 = vmul.f32 %v3001, %v3337
        %v3358 = vmul.f32 %v3002, %v3337
        %v3359 = vmul.f32 %v3003, %v3337
        %v3360 = vmul.f32 %v3004, %v3337
        %v3361 = vmul.f32 %v3005, %v3337
        %v3362 = vmul.f32 %v3006, %v3337
        %v3363 = vmul.f32 %v3007, %v3337
        %v3364 = vmul.f32 %v3008, %v3337
        %v3365 = vmul.f32 %v3009, %v3337
        %v3366 = vmul.f32 %v3010, %v3337
        %v3367 = vmul.f32 %v3011, %v3337
        %v3368 = vmul.f32 %v3012, %v3337
        %v3369 = vmul.f32 %v3013, %v3337
        %v3370 = vadd.f32 %v3301, %v3338
        %v3371 = vadd.f32 %v3302, %v3339
        %v3372 = vadd.f32 %v3303, %v3340
        %v3373 = vadd.f32 %v3304, %v3341
        %v3374 = vadd.f32 %v3305, %v3342
        %v3375 = vadd.f32 %v3306, %v3343
        %v3376 = vadd.f32 %v3307, %v3344
        %v3377 = vadd.f32 %v3308, %v3345
        %v3378 = vadd.f32 %v3309, %v3346
        %v3379 = vadd.f32 %v3310, %v3347
        %v3380 = vadd.f32 %v3311, %v3348
        %v3381 = vadd.f32 %v3312, %v3349
        %v3382 = vadd.f32 %v3313, %v3350
        %v3383 = vadd.f32 %v3314, %v3351
        %v3384 = vadd.f32 %v3315, %v3352
        %v3385 = vadd.f32 %v3316, %v3353
        %v3386 = vadd.f32 %v3317, %v3354
        %v3387 = vadd.f32 %v3318, %v3355
        %v3388 = vadd.f32 %v3319, %v3356
        %v3389 = vadd.f32 %v3320, %v3357
        %v3390 = vadd.f32 %v3321, %v3358
        %v3391 = vadd.f32 %v3322, %v3359
        %v3392 = vadd.f32 %v3323, %v3360
        %v3393 = vadd.f32 %v3324, %v3361
        %v3394 = vadd.f32 %v3325, %v3362
        %v3395 = vadd.f32 %v3326, %v3363
        %v3396 = vadd.f32 %v3327, %v3364
        %v3397 = vadd.f32 %v3328, %v3365
        %v3398 = vadd.f32 %v3329, %v3366
        %v3399 = vadd.f32 %v3330, %v3367
        %v3400 = vadd.f32 %v3331, %v3368
        %v3401 = vadd.f32 %v3332, %v3369
        %v3402 = vld [vmem:[%s8 + $0x4] sm:$0x1]
        %v3403 = vlaneseq
        %v3404 = vshrl.u32 %v3403, 7
        %v3405 = vsub.s32 0, %v3404
        %v3406 = vrot.slane %v3402, %v3405
        %v3407 = vmul.f32 %v2984, %v3406
        %v3408 = vmul.f32 %v2985, %v3406
        %v3409 = vmul.f32 %v2986, %v3406
        %v3410 = vmul.f32 %v2987, %v3406
        %v3411 = vmul.f32 %v2988, %v3406
        %v3412 = vmul.f32 %v2989, %v3406
        %v3413 = vmul.f32 %v2990, %v3406
        %v3414 = vmul.f32 %v2991, %v3406
        %v3415 = vmul.f32 %v2992, %v3406
        %v3416 = vmul.f32 %v2993, %v3406
        %v3417 = vmul.f32 %v2994, %v3406
        %v3418 = vmul.f32 %v2995, %v3406
        %v3419 = vmul.f32 %v2996, %v3406
        %v3420 = vmul.f32 %v2997, %v3406
        %v3421 = vmul.f32 %v2998, %v3406
        %v3422 = vmul.f32 %v2999, %v3406
        %v3423 = vmul.f32 %v3000, %v3406
        %v3424 = vmul.f32 %v3001, %v3406
        %v3425 = vmul.f32 %v3002, %v3406
        %v3426 = vmul.f32 %v3003, %v3406
        %v3427 = vmul.f32 %v3004, %v3406
        %v3428 = vmul.f32 %v3005, %v3406
        %v3429 = vmul.f32 %v3006, %v3406
        %v3430 = vmul.f32 %v3007, %v3406
        %v3431 = vmul.f32 %v3008, %v3406
        %v3432 = vmul.f32 %v3009, %v3406
        %v3433 = vmul.f32 %v3010, %v3406
        %v3434 = vmul.f32 %v3011, %v3406
        %v3435 = vmul.f32 %v3012, %v3406
        %v3436 = vmul.f32 %v3013, %v3406
        %v3437 = vmul.f32 %v3014, %v3406
        %v3438 = vmul.f32 %v3015, %v3406
        %v3439 = vadd.f32 %v3370, %v3407
        %v3440 = vadd.f32 %v3371, %v3408
        %v3441 = vadd.f32 %v3372, %v3409
        %v3442 = vadd.f32 %v3373, %v3410
        %v3443 = vadd.f32 %v3374, %v3411
        %v3444 = vadd.f32 %v3375, %v3412
        %v3445 = vadd.f32 %v3376, %v3413
        %v3446 = vadd.f32 %v3377, %v3414
        %v3447 = vadd.f32 %v3378, %v3415
        %v3448 = vadd.f32 %v3379, %v3416
        %v3449 = vadd.f32 %v3380, %v3417
        %v3450 = vadd.f32 %v3381, %v3418
        %v3451 = vadd.f32 %v3382, %v3419
        %v3452 = vadd.f32 %v3383, %v3420
        %v3453 = vadd.f32 %v3384, %v3421
        %v3454 = vadd.f32 %v3385, %v3422
        %v3455 = vadd.f32 %v3386, %v3423
        %v3456 = vadd.f32 %v3387, %v3424
        %v3457 = vadd.f32 %v3388, %v3425
        %v3458 = vadd.f32 %v3389, %v3426
        %v3459 = vadd.f32 %v3390, %v3427
        %v3460 = vadd.f32 %v3391, %v3428
        %v3461 = vadd.f32 %v3392, %v3429
        %v3462 = vadd.f32 %v3393, %v3430
        %v3463 = vadd.f32 %v3394, %v3431
        %v3464 = vadd.f32 %v3395, %v3432
        %v3465 = vadd.f32 %v3396, %v3433
        %v3466 = vadd.f32 %v3397, %v3434
        %v3467 = vadd.f32 %v3398, %v3435
        %v3468 = vadd.f32 %v3399, %v3436
        %v3469 = vadd.f32 %v3400, %v3437
        %v3470 = vadd.f32 %v3401, %v3438
        %v3471 = vld [vmem:[%s8 + $0x7] sm:$0x1]
        %v3472 = vlaneseq
        %v3473 = vshrl.u32 %v3472, 7
        %v3474 = vsub.s32 0, %v3473
        %v3475 = vrot.slane %v3471, %v3474
        %v3476 = vmul.f32 %v2986, %v3475
        %v3477 = vmul.f32 %v2987, %v3475
        %v3478 = vmul.f32 %v2988, %v3475
        %v3479 = vmul.f32 %v2989, %v3475
        %v3480 = vmul.f32 %v2990, %v3475
        %v3481 = vmul.f32 %v2991, %v3475
        %v3482 = vmul.f32 %v2992, %v3475
        %v3483 = vmul.f32 %v2993, %v3475
        %v3484 = vmul.f32 %v2994, %v3475
        %v3485 = vmul.f32 %v2995, %v3475
        %v3486 = vmul.f32 %v2996, %v3475
        %v3487 = vmul.f32 %v2997, %v3475
        %v3488 = vmul.f32 %v2998, %v3475
        %v3489 = vmul.f32 %v2999, %v3475
        %v3490 = vmul.f32 %v3000, %v3475
        %v3491 = vmul.f32 %v3001, %v3475
        %v3492 = vmul.f32 %v3002, %v3475
        %v3493 = vmul.f32 %v3003, %v3475
        %v3494 = vmul.f32 %v3004, %v3475
        %v3495 = vmul.f32 %v3005, %v3475
        %v3496 = vmul.f32 %v3006, %v3475
        %v3497 = vmul.f32 %v3007, %v3475
        %v3498 = vmul.f32 %v3008, %v3475
        %v3499 = vmul.f32 %v3009, %v3475
        %v3500 = vmul.f32 %v3010, %v3475
        %v3501 = vmul.f32 %v3011, %v3475
        %v3502 = vmul.f32 %v3012, %v3475
        %v3503 = vmul.f32 %v3013, %v3475
        %v3504 = vmul.f32 %v3014, %v3475
        %v3505 = vmul.f32 %v3015, %v3475
        %v3506 = vmul.f32 %v3016, %v3475
        %v3507 = vmul.f32 %v3017, %v3475
        %v3508 = vadd.f32 %v3439, %v3476
        %v3509 = vadd.f32 %v3440, %v3477
        %v3510 = vadd.f32 %v3441, %v3478
        %v3511 = vadd.f32 %v3442, %v3479
        %v3512 = vadd.f32 %v3443, %v3480
        %v3513 = vadd.f32 %v3444, %v3481
        %v3514 = vadd.f32 %v3445, %v3482
        %v3515 = vadd.f32 %v3446, %v3483
        %v3516 = vadd.f32 %v3447, %v3484
        %v3517 = vadd.f32 %v3448, %v3485
        %v3518 = vadd.f32 %v3449, %v3486
        %v3519 = vadd.f32 %v3450, %v3487
        %v3520 = vadd.f32 %v3451, %v3488
        %v3521 = vadd.f32 %v3452, %v3489
        %v3522 = vadd.f32 %v3453, %v3490
        %v3523 = vadd.f32 %v3454, %v3491
        %v3524 = vadd.f32 %v3455, %v3492
        %v3525 = vadd.f32 %v3456, %v3493
        %v3526 = vadd.f32 %v3457, %v3494
        %v3527 = vadd.f32 %v3458, %v3495
        %v3528 = vadd.f32 %v3459, %v3496
        %v3529 = vadd.f32 %v3460, %v3497
        %v3530 = vadd.f32 %v3461, %v3498
        %v3531 = vadd.f32 %v3462, %v3499
        %v3532 = vadd.f32 %v3463, %v3500
        %v3533 = vadd.f32 %v3464, %v3501
        %v3534 = vadd.f32 %v3465, %v3502
        %v3535 = vadd.f32 %v3466, %v3503
        %v3536 = vadd.f32 %v3467, %v3504
        %v3537 = vadd.f32 %v3468, %v3505
        %v3538 = vadd.f32 %v3469, %v3506
        %v3539 = vadd.f32 %v3470, %v3507
        %v3540 = vrot.slane %v2982, 1
        %v3541 = vrot.slane %v2984, 1
        %v3542 = vrot.slane %v2986, 1
        %v3543 = vrot.slane %v2988, 1
        %v3544 = vrot.slane %v2990, 1
        %v3545 = vrot.slane %v2992, 1
        %v3546 = vrot.slane %v2994, 1
        %v3547 = vrot.slane %v2996, 1
        %v3548 = vrot.slane %v2998, 1
        %v3549 = vrot.slane %v3000, 1
        %v3550 = vrot.slane %v3002, 1
        %v3551 = vrot.slane %v3004, 1
        %v3552 = vrot.slane %v3006, 1
        %v3553 = vrot.slane %v3008, 1
        %v3554 = vrot.slane %v3010, 1
        %v3555 = vrot.slane %v3012, 1
        %v3556 = vrot.slane %v3014, 1
        %v3557 = vrot.slane %v3016, 1
        %v3558 = vrot.slane %v2983, 1
        %v3559 = vrot.slane %v2985, 1
        %v3560 = vrot.slane %v2987, 1
        %v3561 = vrot.slane %v2989, 1
        %v3562 = vrot.slane %v2991, 1
        %v3563 = vrot.slane %v2993, 1
        %v3564 = vrot.slane %v2995, 1
        %v3565 = vrot.slane %v2997, 1
        %v3566 = vrot.slane %v2999, 1
        %v3567 = vrot.slane %v3001, 1
        %v3568 = vrot.slane %v3003, 1
        %v3569 = vrot.slane %v3005, 1
        %v3570 = vrot.slane %v3007, 1
        %v3571 = vrot.slane %v3009, 1
        %v3572 = vrot.slane %v3011, 1
        %v3573 = vrot.slane %v3013, 1
        %v3574 = vrot.slane %v3015, 1
        %v3575 = vrot.slane %v3017, 1
        %v3576 = vsel %vm841, %v3540, %v3558
        %v3577 = vsel %vm841, %v3541, %v3559
        %v3578 = vsel %vm841, %v3542, %v3560
        %v3579 = vsel %vm841, %v3543, %v3561
        %v3580 = vsel %vm841, %v3544, %v3562
        %v3581 = vsel %vm841, %v3545, %v3563
        %v3582 = vsel %vm841, %v3546, %v3564
        %v3583 = vsel %vm841, %v3547, %v3565
        %v3584 = vsel %vm841, %v3548, %v3566
        %v3585 = vsel %vm841, %v3549, %v3567
        %v3586 = vsel %vm841, %v3550, %v3568
        %v3587 = vsel %vm841, %v3551, %v3569
        %v3588 = vsel %vm841, %v3552, %v3570
        %v3589 = vsel %vm841, %v3553, %v3571
        %v3590 = vsel %vm841, %v3554, %v3572
        %v3591 = vsel %vm841, %v3555, %v3573
        %v3592 = vsel %vm841, %v3556, %v3574
        %v3593 = vsel %vm841, %v3557, %v3575
        %v3594 = vsel %vm841, %v3558, %v3540
        %v3595 = vsel %vm841, %v3559, %v3541
        %v3596 = vsel %vm841, %v3560, %v3542
        %v3597 = vsel %vm841, %v3561, %v3543
        %v3598 = vsel %vm841, %v3562, %v3544
        %v3599 = vsel %vm841, %v3563, %v3545
        %v3600 = vsel %vm841, %v3564, %v3546
        %v3601 = vsel %vm841, %v3565, %v3547
        %v3602 = vsel %vm841, %v3566, %v3548
        %v3603 = vsel %vm841, %v3567, %v3549
        %v3604 = vsel %vm841, %v3568, %v3550
        %v3605 = vsel %vm841, %v3569, %v3551
        %v3606 = vsel %vm841, %v3570, %v3552
        %v3607 = vsel %vm841, %v3571, %v3553
        %v3608 = vsel %vm841, %v3572, %v3554
        %v3609 = vsel %vm841, %v3573, %v3555
        %v3610 = vsel %vm841, %v3574, %v3556
        %v3611 = vsel %vm841, %v3575, %v3557
        %v3612 = vsel %vm886, 0.0, %v3576
        %v3613 = vsel %vm887, 0.0, %v3594
        %v3614 = vsel %vm886, 0.0, %v3577
        %v3615 = vsel %vm887, 0.0, %v3595
        %v3616 = vsel %vm886, 0.0, %v3578
        %v3617 = vsel %vm887, 0.0, %v3596
        %v3618 = vsel %vm886, 0.0, %v3579
        %v3619 = vsel %vm887, 0.0, %v3597
        %v3620 = vsel %vm886, 0.0, %v3580
        %v3621 = vsel %vm887, 0.0, %v3598
        %v3622 = vsel %vm886, 0.0, %v3581
        %v3623 = vsel %vm887, 0.0, %v3599
        %v3624 = vsel %vm886, 0.0, %v3582
        %v3625 = vsel %vm887, 0.0, %v3600
        %v3626 = vsel %vm886, 0.0, %v3583
        %v3627 = vsel %vm887, 0.0, %v3601
        %v3628 = vsel %vm886, 0.0, %v3584
        %v3629 = vsel %vm887, 0.0, %v3602
        %v3630 = vsel %vm886, 0.0, %v3585
        %v3631 = vsel %vm887, 0.0, %v3603
        %v3632 = vsel %vm886, 0.0, %v3586
        %v3633 = vsel %vm887, 0.0, %v3604
        %v3634 = vsel %vm886, 0.0, %v3587
        %v3635 = vsel %vm887, 0.0, %v3605
        %v3636 = vsel %vm886, 0.0, %v3588
        %v3637 = vsel %vm887, 0.0, %v3606
        %v3638 = vsel %vm886, 0.0, %v3589
        %v3639 = vsel %vm887, 0.0, %v3607
        %v3640 = vsel %vm886, 0.0, %v3590
        %v3641 = vsel %vm887, 0.0, %v3608
        %v3642 = vsel %vm886, 0.0, %v3591
        %v3643 = vsel %vm887, 0.0, %v3609
        %v3644 = vsel %vm886, 0.0, %v3592
        %v3645 = vsel %vm887, 0.0, %v3610
        %v3646 = vsel %vm886, 0.0, %v3593
        %v3647 = vsel %vm887, 0.0, %v3611
        %v3648 = vld [vmem:[%s8 + $0x2] sm:$0x1]
        %v3649 = vlaneseq
        %v3650 = vshrl.u32 %v3649, 7
        %v3651 = vsub.s32 0, %v3650
        %v3652 = vrot.slane %v3648, %v3651
        %v3653 = vmul.f32 %v3612, %v3652
        %v3654 = vmul.f32 %v3613, %v3652
        %v3655 = vmul.f32 %v3614, %v3652
        %v3656 = vmul.f32 %v3615, %v3652
        %v3657 = vmul.f32 %v3616, %v3652
        %v3658 = vmul.f32 %v3617, %v3652
        %v3659 = vmul.f32 %v3618, %v3652
        %v3660 = vmul.f32 %v3619, %v3652
        %v3661 = vmul.f32 %v3620, %v3652
        %v3662 = vmul.f32 %v3621, %v3652
        %v3663 = vmul.f32 %v3622, %v3652
        %v3664 = vmul.f32 %v3623, %v3652
        %v3665 = vmul.f32 %v3624, %v3652
        %v3666 = vmul.f32 %v3625, %v3652
        %v3667 = vmul.f32 %v3626, %v3652
        %v3668 = vmul.f32 %v3627, %v3652
        %v3669 = vmul.f32 %v3628, %v3652
        %v3670 = vmul.f32 %v3629, %v3652
        %v3671 = vmul.f32 %v3630, %v3652
        %v3672 = vmul.f32 %v3631, %v3652
        %v3673 = vmul.f32 %v3632, %v3652
        %v3674 = vmul.f32 %v3633, %v3652
        %v3675 = vmul.f32 %v3634, %v3652
        %v3676 = vmul.f32 %v3635, %v3652
        %v3677 = vmul.f32 %v3636, %v3652
        %v3678 = vmul.f32 %v3637, %v3652
        %v3679 = vmul.f32 %v3638, %v3652
        %v3680 = vmul.f32 %v3639, %v3652
        %v3681 = vmul.f32 %v3640, %v3652
        %v3682 = vmul.f32 %v3641, %v3652
        %v3683 = vmul.f32 %v3642, %v3652
        %v3684 = vmul.f32 %v3643, %v3652
        %v3685 = vadd.f32 %v3508, %v3653
        %v3686 = vadd.f32 %v3509, %v3654
        %v3687 = vadd.f32 %v3510, %v3655
        %v3688 = vadd.f32 %v3511, %v3656
        %v3689 = vadd.f32 %v3512, %v3657
        %v3690 = vadd.f32 %v3513, %v3658
        %v3691 = vadd.f32 %v3514, %v3659
        %v3692 = vadd.f32 %v3515, %v3660
        %v3693 = vadd.f32 %v3516, %v3661
        %v3694 = vadd.f32 %v3517, %v3662
        %v3695 = vadd.f32 %v3518, %v3663
        %v3696 = vadd.f32 %v3519, %v3664
        %v3697 = vadd.f32 %v3520, %v3665
        %v3698 = vadd.f32 %v3521, %v3666
        %v3699 = vadd.f32 %v3522, %v3667
        %v3700 = vadd.f32 %v3523, %v3668
        %v3701 = vadd.f32 %v3524, %v3669
        %v3702 = vadd.f32 %v3525, %v3670
        %v3703 = vadd.f32 %v3526, %v3671
        %v3704 = vadd.f32 %v3527, %v3672
        %v3705 = vadd.f32 %v3528, %v3673
        %v3706 = vadd.f32 %v3529, %v3674
        %v3707 = vadd.f32 %v3530, %v3675
        %v3708 = vadd.f32 %v3531, %v3676
        %v3709 = vadd.f32 %v3532, %v3677
        %v3710 = vadd.f32 %v3533, %v3678
        %v3711 = vadd.f32 %v3534, %v3679
        %v3712 = vadd.f32 %v3535, %v3680
        %v3713 = vadd.f32 %v3536, %v3681
        %v3714 = vadd.f32 %v3537, %v3682
        %v3715 = vadd.f32 %v3538, %v3683
        %v3716 = vadd.f32 %v3539, %v3684
        %v3717 = vld [vmem:[%s8 + $0x5] sm:$0x1]
        %v3718 = vlaneseq
        %v3719 = vshrl.u32 %v3718, 7
        %v3720 = vsub.s32 0, %v3719
        %v3721 = vrot.slane %v3717, %v3720
        %v3722 = vmul.f32 %v3614, %v3721
        %v3723 = vmul.f32 %v3615, %v3721
        %v3724 = vmul.f32 %v3616, %v3721
        %v3725 = vmul.f32 %v3617, %v3721
        %v3726 = vmul.f32 %v3618, %v3721
        %v3727 = vmul.f32 %v3619, %v3721
        %v3728 = vmul.f32 %v3620, %v3721
        %v3729 = vmul.f32 %v3621, %v3721
        %v3730 = vmul.f32 %v3622, %v3721
        %v3731 = vmul.f32 %v3623, %v3721
        %v3732 = vmul.f32 %v3624, %v3721
        %v3733 = vmul.f32 %v3625, %v3721
        %v3734 = vmul.f32 %v3626, %v3721
        %v3735 = vmul.f32 %v3627, %v3721
        %v3736 = vmul.f32 %v3628, %v3721
        %v3737 = vmul.f32 %v3629, %v3721
        %v3738 = vmul.f32 %v3630, %v3721
        %v3739 = vmul.f32 %v3631, %v3721
        %v3740 = vmul.f32 %v3632, %v3721
        %v3741 = vmul.f32 %v3633, %v3721
        %v3742 = vmul.f32 %v3634, %v3721
        %v3743 = vmul.f32 %v3635, %v3721
        %v3744 = vmul.f32 %v3636, %v3721
        %v3745 = vmul.f32 %v3637, %v3721
        %v3746 = vmul.f32 %v3638, %v3721
        %v3747 = vmul.f32 %v3639, %v3721
        %v3748 = vmul.f32 %v3640, %v3721
        %v3749 = vmul.f32 %v3641, %v3721
        %v3750 = vmul.f32 %v3642, %v3721
        %v3751 = vmul.f32 %v3643, %v3721
        %v3752 = vmul.f32 %v3644, %v3721
        %v3753 = vmul.f32 %v3645, %v3721
        %v3754 = vadd.f32 %v3685, %v3722
        %v3755 = vadd.f32 %v3686, %v3723
        %v3756 = vadd.f32 %v3687, %v3724
        %v3757 = vadd.f32 %v3688, %v3725
        %v3758 = vadd.f32 %v3689, %v3726
        %v3759 = vadd.f32 %v3690, %v3727
        %v3760 = vadd.f32 %v3691, %v3728
        %v3761 = vadd.f32 %v3692, %v3729
        %v3762 = vadd.f32 %v3693, %v3730
        %v3763 = vadd.f32 %v3694, %v3731
        %v3764 = vadd.f32 %v3695, %v3732
        %v3765 = vadd.f32 %v3696, %v3733
        %v3766 = vadd.f32 %v3697, %v3734
        %v3767 = vadd.f32 %v3698, %v3735
        %v3768 = vadd.f32 %v3699, %v3736
        %v3769 = vadd.f32 %v3700, %v3737
        %v3770 = vadd.f32 %v3701, %v3738
        %v3771 = vadd.f32 %v3702, %v3739
        %v3772 = vadd.f32 %v3703, %v3740
        %v3773 = vadd.f32 %v3704, %v3741
        %v3774 = vadd.f32 %v3705, %v3742
        %v3775 = vadd.f32 %v3706, %v3743
        %v3776 = vadd.f32 %v3707, %v3744
        %v3777 = vadd.f32 %v3708, %v3745
        %v3778 = vadd.f32 %v3709, %v3746
        %v3779 = vadd.f32 %v3710, %v3747
        %v3780 = vadd.f32 %v3711, %v3748
        %v3781 = vadd.f32 %v3712, %v3749
        %v3782 = vadd.f32 %v3713, %v3750
        %v3783 = vadd.f32 %v3714, %v3751
        %v3784 = vadd.f32 %v3715, %v3752
        %v3785 = vadd.f32 %v3716, %v3753
        %v3786 = vld [vmem:[%s8 + $0x8] sm:$0x1]
        %v3787 = vlaneseq
        %v3788 = vshrl.u32 %v3787, 7
        %v3789 = vsub.s32 0, %v3788
        %v3790 = vrot.slane %v3786, %v3789
        %v3791 = vmul.f32 %v3616, %v3790
        %v3792 = vmul.f32 %v3617, %v3790
        %v3793 = vmul.f32 %v3618, %v3790
        %v3794 = vmul.f32 %v3619, %v3790
        %v3795 = vmul.f32 %v3620, %v3790
        %v3796 = vmul.f32 %v3621, %v3790
        %v3797 = vmul.f32 %v3622, %v3790
        %v3798 = vmul.f32 %v3623, %v3790
        %v3799 = vmul.f32 %v3624, %v3790
        %v3800 = vmul.f32 %v3625, %v3790
        %v3801 = vmul.f32 %v3626, %v3790
        %v3802 = vmul.f32 %v3627, %v3790
        %v3803 = vmul.f32 %v3628, %v3790
        %v3804 = vmul.f32 %v3629, %v3790
        %v3805 = vmul.f32 %v3630, %v3790
        %v3806 = vmul.f32 %v3631, %v3790
        %v3807 = vmul.f32 %v3632, %v3790
        %v3808 = vmul.f32 %v3633, %v3790
        %v3809 = vmul.f32 %v3634, %v3790
        %v3810 = vmul.f32 %v3635, %v3790
        %v3811 = vmul.f32 %v3636, %v3790
        %v3812 = vmul.f32 %v3637, %v3790
        %v3813 = vmul.f32 %v3638, %v3790
        %v3814 = vmul.f32 %v3639, %v3790
        %v3815 = vmul.f32 %v3640, %v3790
        %v3816 = vmul.f32 %v3641, %v3790
        %v3817 = vmul.f32 %v3642, %v3790
        %v3818 = vmul.f32 %v3643, %v3790
        %v3819 = vmul.f32 %v3644, %v3790
        %v3820 = vmul.f32 %v3645, %v3790
        %v3821 = vmul.f32 %v3646, %v3790
        %v3822 = vmul.f32 %v3647, %v3790
        %v3823 = vadd.f32 %v3754, %v3791
        %v3824 = vadd.f32 %v3755, %v3792
        %v3825 = vadd.f32 %v3756, %v3793
        %v3826 = vadd.f32 %v3757, %v3794
        %v3827 = vadd.f32 %v3758, %v3795
        %v3828 = vadd.f32 %v3759, %v3796
        %v3829 = vadd.f32 %v3760, %v3797
        %v3830 = vadd.f32 %v3761, %v3798
        %v3831 = vadd.f32 %v3762, %v3799
        %v3832 = vadd.f32 %v3763, %v3800
        %v3833 = vadd.f32 %v3764, %v3801
        %v3834 = vadd.f32 %v3765, %v3802
        %v3835 = vadd.f32 %v3766, %v3803
        %v3836 = vadd.f32 %v3767, %v3804
        %v3837 = vadd.f32 %v3768, %v3805
        %v3838 = vadd.f32 %v3769, %v3806
        %v3839 = vadd.f32 %v3770, %v3807
        %v3840 = vadd.f32 %v3771, %v3808
        %v3841 = vadd.f32 %v3772, %v3809
        %v3842 = vadd.f32 %v3773, %v3810
        %v3843 = vadd.f32 %v3774, %v3811
        %v3844 = vadd.f32 %v3775, %v3812
        %v3845 = vadd.f32 %v3776, %v3813
        %v3846 = vadd.f32 %v3777, %v3814
        %v3847 = vadd.f32 %v3778, %v3815
        %v3848 = vadd.f32 %v3779, %v3816
        %v3849 = vadd.f32 %v3780, %v3817
        %v3850 = vadd.f32 %v3781, %v3818
        %v3851 = vadd.f32 %v3782, %v3819
        %v3852 = vadd.f32 %v3783, %v3820
        %v3853 = vadd.f32 %v3784, %v3821
        %v3854 = vadd.f32 %v3785, %v3822
        %v3855 = vpack.c.bf16 %v3824, %v3823
        %v3856 = vpack.c.bf16 %v3826, %v3825
        %v3857 = vpack.c.bf16 %v3828, %v3827
        %v3858 = vpack.c.bf16 %v3830, %v3829
        %v3859 = vpack.c.bf16 %v3832, %v3831
        %v3860 = vpack.c.bf16 %v3834, %v3833
        %v3861 = vpack.c.bf16 %v3836, %v3835
        %v3862 = vpack.c.bf16 %v3838, %v3837
        %v3863 = vpack.c.bf16 %v3840, %v3839
        %v3864 = vpack.c.bf16 %v3842, %v3841
        %v3865 = vpack.c.bf16 %v3844, %v3843
        %v3866 = vpack.c.bf16 %v3846, %v3845
        %v3867 = vpack.c.bf16 %v3848, %v3847
        %v3868 = vpack.c.bf16 %v3850, %v3849
        %v3869 = vpack.c.bf16 %v3852, %v3851
        %v3870 = vpack.c.bf16 %v3854, %v3853
        %v3887 = vunpack.c.l.b16 %v3855
        %v3888 = vunpack.c.h.b16 %v3855
        %v3889 = vunpack.c.l.b16 %v3856
        %v3890 = vunpack.c.h.b16 %v3856
        %v3891 = vunpack.c.l.b16 %v3857
        %v3892 = vunpack.c.h.b16 %v3857
        %v3893 = vunpack.c.l.b16 %v3858
        %v3894 = vunpack.c.h.b16 %v3858
        %v3895 = vunpack.c.l.b16 %v3859
        %v3896 = vunpack.c.h.b16 %v3859
        %v3897 = vunpack.c.l.b16 %v3860
        %v3898 = vunpack.c.h.b16 %v3860
        %v3899 = vunpack.c.l.b16 %v3861
        %v3900 = vunpack.c.h.b16 %v3861
        %v3901 = vunpack.c.l.b16 %v3862
        %v3902 = vunpack.c.h.b16 %v3862
        %v3903 = vunpack.c.l.b16 %v3863
        %v3904 = vunpack.c.h.b16 %v3863
        %v3905 = vunpack.c.l.b16 %v3864
        %v3906 = vunpack.c.h.b16 %v3864
        %v3907 = vunpack.c.l.b16 %v3865
        %v3908 = vunpack.c.h.b16 %v3865
        %v3909 = vunpack.c.l.b16 %v3866
        %v3910 = vunpack.c.h.b16 %v3866
        %v3911 = vunpack.c.l.b16 %v3867
        %v3912 = vunpack.c.h.b16 %v3867
        %v3913 = vunpack.c.l.b16 %v3868
        %v3914 = vunpack.c.h.b16 %v3868
        %v3915 = vunpack.c.l.b16 %v3869
        %v3916 = vunpack.c.h.b16 %v3869
        %v3917 = vunpack.c.l.b16 %v3870
        %v3918 = vunpack.c.h.b16 %v3870
        %v3919 = vpack.c.b16 %v3887, %v3887
        %v3920 = vpack.c.b16 %v3888, %v3888
        %v3921 = vpack.c.b16 %v3889, %v3889
        %v3922 = vpack.c.b16 %v3890, %v3890
        %v3923 = vpack.c.b16 %v3891, %v3891
        %v3924 = vpack.c.b16 %v3892, %v3892
        %v3925 = vpack.c.b16 %v3893, %v3893
        %v3926 = vpack.c.b16 %v3894, %v3894
        %v3927 = vpack.c.b16 %v3895, %v3895
        %v3928 = vpack.c.b16 %v3896, %v3896
        %v3929 = vpack.c.b16 %v3897, %v3897
        %v3930 = vpack.c.b16 %v3898, %v3898
        %v3931 = vpack.c.b16 %v3899, %v3899
        %v3932 = vpack.c.b16 %v3900, %v3900
        %v3933 = vpack.c.b16 %v3901, %v3901
        %v3934 = vpack.c.b16 %v3902, %v3902
        %v3935 = vpack.c.b16 %v3903, %v3903
        %v3936 = vpack.c.b16 %v3904, %v3904
        %v3937 = vpack.c.b16 %v3905, %v3905
        %v3938 = vpack.c.b16 %v3906, %v3906
        %v3939 = vpack.c.b16 %v3907, %v3907
        %v3940 = vpack.c.b16 %v3908, %v3908
        %v3941 = vpack.c.b16 %v3909, %v3909
        %v3942 = vpack.c.b16 %v3910, %v3910
        %v3943 = vpack.c.b16 %v3911, %v3911
        %v3944 = vpack.c.b16 %v3912, %v3912
        %v3945 = vpack.c.b16 %v3913, %v3913
        %v3946 = vpack.c.b16 %v3914, %v3914
        %v3947 = vpack.c.b16 %v3915, %v3915
        %v3948 = vpack.c.b16 %v3916, %v3916
        %v3949 = vpack.c.b16 %v3917, %v3917
        %v3950 = vpack.c.b16 %v3918, %v3918
        %vm3983 = vcmask 388096
        %3984 = vst.msk [vmem:[%s520] sm:$0xf] %vm3983, %v3919
        %3985 = vst.msk [vmem:[%s520 + $0x4] sm:$0xf] %vm3983, %v3920
        %3986 = vst.msk [vmem:[%s520 + $0x8] sm:$0xf] %vm3983, %v3921
        %3987 = vst.msk [vmem:[%s520 + $0xc] sm:$0xf] %vm3983, %v3922
        %3988 = vst.msk [vmem:[%s520 + $0x10] sm:$0xf] %vm3983, %v3923
        %3989 = vst.msk [vmem:[%s520 + $0x14] sm:$0xf] %vm3983, %v3924
        %3990 = vst.msk [vmem:[%s520 + $0x18] sm:$0xf] %vm3983, %v3925
        %3991 = vst.msk [vmem:[%s520 + $0x1c] sm:$0xf] %vm3983, %v3926
        %3992 = vst.msk [vmem:[%s520 + $0x20] sm:$0xf] %vm3983, %v3927
        %3993 = vst.msk [vmem:[%s520 + $0x24] sm:$0xf] %vm3983, %v3928
        %3994 = vst.msk [vmem:[%s520 + $0x28] sm:$0xf] %vm3983, %v3929
        %3995 = vst.msk [vmem:[%s520 + $0x2c] sm:$0xf] %vm3983, %v3930
        %3996 = vst.msk [vmem:[%s520 + $0x30] sm:$0xf] %vm3983, %v3931
        %3997 = vst.msk [vmem:[%s520 + $0x34] sm:$0xf] %vm3983, %v3932
        %3998 = vst.msk [vmem:[%s520 + $0x38] sm:$0xf] %vm3983, %v3933
        %3999 = vst.msk [vmem:[%s520 + $0x3c] sm:$0xf] %vm3983, %v3934
        %4000 = vst.msk [vmem:[%s520 + $0x40] sm:$0xf] %vm3983, %v3935
        %4001 = vst.msk [vmem:[%s520 + $0x44] sm:$0xf] %vm3983, %v3936
        %4002 = vst.msk [vmem:[%s520 + $0x48] sm:$0xf] %vm3983, %v3937
        %4003 = vst.msk [vmem:[%s520 + $0x4c] sm:$0xf] %vm3983, %v3938
        %4004 = vst.msk [vmem:[%s520 + $0x50] sm:$0xf] %vm3983, %v3939
        %4005 = vst.msk [vmem:[%s520 + $0x54] sm:$0xf] %vm3983, %v3940
        %4006 = vst.msk [vmem:[%s520 + $0x58] sm:$0xf] %vm3983, %v3941
        %4007 = vst.msk [vmem:[%s520 + $0x5c] sm:$0xf] %vm3983, %v3942
        %4008 = vst.msk [vmem:[%s520 + $0x60] sm:$0xf] %vm3983, %v3943
        %4009 = vst.msk [vmem:[%s520 + $0x64] sm:$0xf] %vm3983, %v3944
        %4010 = vst.msk [vmem:[%s520 + $0x68] sm:$0xf] %vm3983, %v3945
        %4011 = vst.msk [vmem:[%s520 + $0x6c] sm:$0xf] %vm3983, %v3946
        %4012 = vst.msk [vmem:[%s520 + $0x70] sm:$0xf] %vm3983, %v3947
        %4013 = vst.msk [vmem:[%s520 + $0x74] sm:$0xf] %vm3983, %v3948
        %4014 = vst.msk [vmem:[%s520 + $0x78] sm:$0xf] %vm3983, %v3949
        %4015 = vst.msk [vmem:[%s520 + $0x7c] sm:$0xf] %vm3983, %v3950
        %s4016 = sand.u32 %s282, 1
        %s4017 = scalar_lea.sflag [#allocation4], %s4016
        %s4018 = sand.u32 %s282, 1
        %s4019 = smul.addr %s4018, 128
        %s4020 = scalar_lea.vmem [#allocation8], %s4019
        %s4021 = sand.u32 %s310, 1
        %s4022 = scalar_lea.sflag [#allocation10], %s4021
        %s4023 = sand.u32 %s310, 1
        %s4024 = smul.addr %s4023, 128
        %s4025 = scalar_lea.vmem [#allocation9], %s4024
        // Predicated region
        $region69: #{tpu_custom_call.1} parent=55 // pred_check
          %p4026 = pneg %p292
        $region70: #{tpu_custom_call.1} parent=55 // pred_check_branch
          %4028 = sbr.rel (%p4026) target = $region72
        $region71: #{tpu_custom_call.1} parent=55 // pred_region
          %s4029 = smul.u32 16, %s39
          %s4031 = ssub.s32 2048, 2048
          %4032 = vsyncadd %s4017, %s4031
          %s4033 = smul.addr %s4029, 2
          %s4034 = smul.addr %s38, 32
          %s4035 = sadd.s32 %s4033, %s4034
          %s4036 = smul.addr %s4035, 64
          %s4037 = scalar_lea.hbm %s9, %s4036
          %s4038 = sshll.u32 %s4020, 4
          %s4039 = int_to_ptr.vmem [resolvable:$true] %s4038
          %4044 = dma.vmem_to_hbm [thread:$0]  %s4039, 2048, %s4037, %s4017, 64, 64, 4
        $region72: #{tpu_custom_call.1} parent=55 // pred_fallthru
          _
        // Predicated region
        $region73: #{tpu_custom_call.1} parent=55 // pred_check
          %p4045 = pneg %p320
        $region74: #{tpu_custom_call.1} parent=55 // pred_check_branch
          %4047 = sbr.rel (%p4045) target = $region76
        $region75: #{tpu_custom_call.1} parent=55 // pred_region
          %s4048 = smul.u32 16, %s39
          %s4050 = ssub.s32 2048, 2048
          %4051 = vsyncadd %s4022, %s4050
          %s4052 = smul.addr %s4048, 2
          %s4053 = smul.addr %s38, 32
          %s4054 = sadd.s32 %s4052, %s4053
          %s4055 = smul.addr %s4054, 64
          %s4056 = scalar_lea.hbm %s10, %s4055
          %s4057 = sshll.u32 %s4025, 4
          %s4058 = int_to_ptr.vmem [resolvable:$true] %s4057
          %4063 = dma.vmem_to_hbm [thread:$0]  %s4058, 2048, %s4056, %s4022, 64, 64, 4
        $region76: #{tpu_custom_call.1} parent=55 // pred_fallthru
          _
      $region56: #{tpu_custom_call.1} parent=5 // pred_fallthru
        _
      %p4064 = scmp.le.s32.totalorder 2, %s29
      // Predicated region
      $region77: #{tpu_custom_call.1} parent=5 // pred_check
        %p4065 = pneg %p4064
      $region78: #{tpu_custom_call.1} parent=5 // pred_check_branch
        %4067 = sbr.rel (%p4065) target = $region80
      $region79: #{tpu_custom_call.1} parent=5 // pred_region
        %s4068 = ssub.s32 %s29, 2
        // Predicated region
        $region81: #{tpu_custom_call.1} parent=79 // pred_check
          %p4069 = pneg %p298
        $region82: #{tpu_custom_call.1} parent=79 // pred_check_branch
          %4071 = sbr.rel (%p4069) target = $region84
        $region83: #{tpu_custom_call.1} parent=79 // pred_region
          %s4072 = sand.u32 %s283, 1
          %s4073 = scalar_lea.sflag [#allocation4], %s4072
          %s4074 = sand.u32 %s283, 1
          %s4075 = smul.addr %s4074, 128
          %s4076 = scalar_lea.vmem [#allocation8], %s4075
          %4077 = dma.done %s4073, 2048
        $region84: #{tpu_custom_call.1} parent=79 // pred_fallthru
          _
        // Predicated region
        $region85: #{tpu_custom_call.1} parent=79 // pred_check
          %p4078 = pneg %p326
        $region86: #{tpu_custom_call.1} parent=79 // pred_check_branch
          %4080 = sbr.rel (%p4078) target = $region88
        $region87: #{tpu_custom_call.1} parent=79 // pred_region
          %s4081 = sand.u32 %s311, 1
          %s4082 = scalar_lea.sflag [#allocation10], %s4081
          %s4083 = sand.u32 %s311, 1
          %s4084 = smul.addr %s4083, 128
          %s4085 = scalar_lea.vmem [#allocation9], %s4084
          %4086 = dma.done %s4082, 2048
        $region88: #{tpu_custom_call.1} parent=79 // pred_fallthru
          _
      $region80: #{tpu_custom_call.1} parent=5 // pred_fallthru
        _
    $region6: #{tpu_custom_call.1} parent=1 // loop_footer
      %s33 = sadd.s32 1, %s29
    $region7: #{tpu_custom_call.1} parent=1 // loop_footer_branch
      %28 = sbr.rel target = $region3
    $region8: #{tpu_custom_call.1} parent=1 // loop_exit
      _
    %4087 = vsyncpa [#allocation3], 1
    %s4088 = scalar_lea.sflag [#allocation3], 1
    %4089 = vsyncpa %s4088, 1
    %4090 = vsyncpa [#allocation6], 1
    %s4091 = scalar_lea.sflag [#allocation6], 1
    %4092 = vsyncpa %s4091, 1
    %4093 = vsyncpa [#allocation4], 1
    %s4094 = scalar_lea.sflag [#allocation4], 1
    %4095 = vsyncpa %s4094, 1
    %4096 = vsyncpa [#allocation10], 1
    %s4097 = scalar_lea.sflag [#allocation10], 1
    %4098 = vsyncpa %s4097, 1

</llo_original>
